<compile_context>
chip_gen: v5e
topology: v5e:2x2
jax: 0.10.0
libtpu: 0.0.40
codegen_flags: <defaults>
</compile_context>

<pallas_src>
import math
import functools

import jax
import jax.numpy as jnp
from jax import lax
from jax.experimental import pallas as pl
from jax.experimental.pallas import tpu as pltpu


# ----------------------------- in-kernel helpers -----------------------------

def _layernorm(x, g, b, eps=1e-5):
    mu = jnp.mean(x, axis=-1, keepdims=True)
    xc = x - mu
    var = jnp.mean(xc * xc, axis=-1, keepdims=True)
    return xc * lax.rsqrt(var + eps) * g + b


def _erf(z):
    # TODO(synk): torch uses exact erf-GELU; erf has no guaranteed Mosaic
    # lowering, so we use the Abramowitz&Stegun 7.1.26 rational approximation
    # (|err| <= 1.5e-7, i.e. f32-exact for a forward pass) built from
    # abs/where/exp/div which all lower on TPU.
    a1, a2, a3, a4, a5 = (0.254829592, -0.284496736, 1.421413741,
                          -1.453152027, 1.061405429)
    p = 0.3275911
    sgn = jnp.where(z >= 0.0, 1.0, -1.0)
    za = jnp.abs(z)
    t = 1.0 / (1.0 + p * za)
    poly = ((((a5 * t + a4) * t + a3) * t + a2) * t + a1) * t
    return sgn * (1.0 - poly * jnp.exp(-(za * za)))


def _gelu(x):
    return 0.5 * x * (1.0 + _erf(x * (1.0 / math.sqrt(2.0))))


# ----------------------------- Pallas kernels -----------------------------

def _matmul_relu_kernel(x_ref, w_ref, o_ref):
    """im2col conv: bf16 (tm, K) @ bf16 (K, D), f32 accumulate, ReLU (no bias)."""
    y = jnp.dot(x_ref[...], w_ref[...], preferred_element_type=jnp.float32)
    o_ref[...] = jnp.maximum(y, 0.0).astype(o_ref.dtype)


def _transformer_kernel(tok_ref, pos_ref,
                        ln1g_ref, ln1b_ref, wqkv_ref, wproj_ref, bproj_ref,
                        ln2g_ref, ln2b_ref, wfc1_ref, bfc1_ref, wfc2_ref, bfc2_ref,
                        lnfg_ref, lnfb_ref, wap_ref, bap_ref, wfc_ref, bfc_ref,
                        o_ref, *, num_heads, num_layers):
    """Whole TransformerClassifier for one batch element:
       x = tokens + pos_emb
       repeat L times: x = norm1(x + proj(MHSA(pre_norm(x))));  x = x + fc2(gelu(fc1(x)))
       logits = fc( seq_pool( final_norm(x) ) )."""
    x = tok_ref[0].astype(jnp.float32) + pos_ref[0].astype(jnp.float32)   # (N, D)
    n, d = x.shape
    hd = d // num_heads
    scale = 1.0 / math.sqrt(hd)

    for l in range(num_layers):
        # ---------------- attention half ----------------
        h = _layernorm(x, ln1g_ref[l], ln1b_ref[l])                       # pre_norm
        qkv = jnp.dot(h.astype(jnp.bfloat16), wqkv_ref[l],
                      preferred_element_type=jnp.float32)                 # (N, 3D), no bias
        attn = None
        for i in range(num_heads):
            q = qkv[:, i * hd:(i + 1) * hd]
            k = qkv[:, d + i * hd: d + (i + 1) * hd]
            v = qkv[:, 2 * d + i * hd: 2 * d + (i + 1) * hd]
            s = lax.dot_general(q.astype(jnp.bfloat16), k.astype(jnp.bfloat16),
                                (((1,), (1,)), ((), ())),
                                preferred_element_type=jnp.float32) * scale
            s = s - jnp.max(s, axis=-1, keepdims=True)
            p = jnp.exp(s)
            p = p * pl.reciprocal(jnp.sum(p, axis=-1, keepdims=True), approx=True)
            ho = jnp.dot(p.astype(jnp.bfloat16), v.astype(jnp.bfloat16),
                         preferred_element_type=jnp.float32)              # (N, hd)
            # Fold the hd-wide head output straight through its block of the
            # projection weight (stored as (L, H, hd, D)); avoids any lane-
            # sparse scratch stores and the concat of head outputs.
            contrib = jnp.dot(ho.astype(jnp.bfloat16), wproj_ref[l, i],
                              preferred_element_type=jnp.float32)         # (N, D)
            attn = contrib if attn is None else attn + contrib
        x = x + attn + bproj_ref[l]                                       # residual + proj bias
        x = _layernorm(x, ln2g_ref[l], ln2b_ref[l])                       # norm1

        # ---------------- MLP half ----------------
        hm = jnp.dot(x.astype(jnp.bfloat16), wfc1_ref[l],
                     preferred_element_type=jnp.float32) + bfc1_ref[l]    # (N, ff)
        hm = _gelu(hm)
        x = x + jnp.dot(hm.astype(jnp.bfloat16), wfc2_ref[l],
                        preferred_element_type=jnp.float32) + bfc2_ref[l]

    # ---------------- head: final LN + sequence pooling + fc ----------------
    x = _layernorm(x, lnfg_ref[...], lnfb_ref[...])
    a = jnp.dot(x, wap_ref[...], preferred_element_type=jnp.float32) + bap_ref[...]  # (N,1)
    a = a - jnp.max(a, axis=0, keepdims=True)
    a = jnp.exp(a)
    a = a * pl.reciprocal(jnp.sum(a, axis=0, keepdims=True), approx=True)  # softmax over tokens
    pooled = jnp.sum(a * x, axis=0, keepdims=True)                         # (1, D)
    logits = jnp.dot(pooled, wfc_ref[...],
                     preferred_element_type=jnp.float32) + bfc_ref[...]
    o_ref[0] = logits.astype(o_ref.dtype)


# ----------------------------- pallas_call wrappers -----------------------------

def _bcast_spec(a):
    nd = a.ndim
    return pl.BlockSpec(a.shape, lambda b: (0,) * nd)


def _pallas_conv_matmul_relu(x_bf16, w_bf16):
    M, K = x_bf16.shape
    D = w_bf16.shape[1]
    gm = 2 if M % 32 == 0 else 1          # >=2 parallel M blocks (v7x dual-TC)
    tm = M // gm
    return pl.pallas_call(
        _matmul_relu_kernel,
        grid=(gm,),
        in_specs=[pl.BlockSpec((tm, K), lambda i: (i, 0)),
                  pl.BlockSpec((K, D), lambda i: (0, 0))],
        out_specs=pl.BlockSpec((tm, D), lambda i: (i, 0)),
        out_shape=jax.ShapeDtypeStruct((M, D), jnp.float32),
        compiler_params=pltpu.CompilerParams(dimension_semantics=("parallel",)),
    )(x_bf16, w_bf16)


def _pallas_transformer(tokens, params, cfg):
    B, N, D = tokens.shape
    C = cfg['num_classes']
    ws = (params['pos_emb'],
          params['ln1_g'], params['ln1_b'], params['w_qkv'], params['w_proj'],
          params['b_proj'], params['ln2_g'], params['ln2_b'],
          params['w_fc1'], params['b_fc1'], params['w_fc2'], params['b_fc2'],
          params['lnf_g'], params['lnf_b'], params['w_ap'], params['b_ap'],
          params['w_fc'], params['b_fc'])
    out = pl.pallas_call(
        functools.partial(_transformer_kernel,
                          num_heads=cfg['num_heads'],
                          num_layers=cfg['num_layers']),
        grid=(B,),
        in_specs=[pl.BlockSpec((1, N, D), lambda b: (b, 0, 0))]
                 + [_bcast_spec(w) for w in ws],
        out_specs=pl.BlockSpec((1, 1, C), lambda b: (b, 0, 0)),
        out_shape=jax.ShapeDtypeStruct((B, 1, C), jnp.float32),
        compiler_params=pltpu.CompilerParams(dimension_semantics=("parallel",)),
    )(tokens, *ws)
    return out.reshape(B, C)


# ----------------------------- Model forward -----------------------------

def tokenizer_forward(x_nchw, w_mat_bf16, cfg):
    """Conv2d(k=7,s=2,p=3,bias=False) + ReLU + MaxPool2d(3,2,1), flatten to tokens."""
    B, Cin, H, W = x_nchw.shape
    k, s, pad = cfg['kernel_size'], cfg['stride'], cfg['padding']
    pk, ps, pp = cfg['pooling_kernel_size'], cfg['pooling_stride'], cfg['pooling_padding']
    D = cfg['embedding_dim']
    OH = (H + 2 * pad - k) // s + 1
    OW = (W + 2 * pad - k) // s + 1
    Kraw = Cin * k * k
    Kpad = w_mat_bf16.shape[0]

    # TODO(synk): im2col is built with XLA glue (fine at 16x16); for large
    # images build rows in-kernel from a VMEM-resident padded image instead.
    xp = jnp.pad(x_nchw, ((0, 0), (0, 0), (pad, pad), (pad, pad)))
    cols = []
    for di in range(k):
        for dj in range(k):
            cols.append(xp[:, :, di:di + s * OH:s, dj:dj + s * OW:s])  # (B,Cin,OH,OW)
    patches = jnp.stack(cols, axis=2)                        # (B, Cin, k*k, OH, OW)
    patches = patches.reshape(B, Kraw, OH, OW)                # channel-major = torch weight.view order
    patches = patches.transpose(0, 2, 3, 1).reshape(B * OH * OW, Kraw)
    patches = jnp.pad(patches, ((0, 0), (0, Kpad - Kraw)))    # pad K 147 -> 160 (zeros)

    y = _pallas_conv_matmul_relu(patches.astype(jnp.bfloat16), w_mat_bf16)
    y = y.reshape(B, OH, OW, D)                               # NHWC, f32

    # MaxPool2d(3, 2, padding=1) — small windowed max kept as XLA glue
    y = lax.reduce_window(y, -jnp.inf, lax.max,
                          window_dimensions=(1, pk, pk, 1),
                          window_strides=(1, ps, ps, 1),
                          padding=((0, 0), (pp, pp), (pp, pp), (0, 0)))
    PH = (OH + 2 * pp - pk) // ps + 1
    PW = (OW + 2 * pp - pk) // ps + 1
    return y.reshape(B, PH * PW, D)                           # (B, N, D) tokens


def cct_forward(x_nchw, params, cfg):
    tokens = tokenizer_forward(x_nchw, params['w_mat'], cfg)
    return _pallas_transformer(tokens, params, cfg)


# ----------------------------- Parameter init -----------------------------

def init_params(key, cfg):
    D = cfg['embedding_dim']
    Cin = cfg['n_input_channels']
    k = cfg['kernel_size']
    ff = int(D * cfg['mlp_ratio'])
    L = cfg['num_layers']
    C = cfg['num_classes']
    N = cfg['seq_len']
    H = cfg['num_heads']
    hd = D // H
    Kraw = Cin * k * k
    Kpad = ((Kraw + 15) // 16) * 16     # bf16 sublane-friendly contraction dim

    keys = jax.random.split(key, 4 + L)

    def rnd(kk, shape, std=0.02):
        return (std * jax.random.normal(kk, shape)).astype(jnp.float32)

    conv_w = rnd(keys[0], (D, Cin, k, k), std=0.1)            # Conv2d weight, no bias
    w_mat = conv_w.reshape(D, Kraw).T                         # (Kraw, D), torch weight.view order
    w_mat = jnp.pad(w_mat, ((0, Kpad - Kraw), (0, 0))).astype(jnp.bfloat16)

    wq, wp, w1, w2 = [], [], [], []
    for l in range(L):
        lk = jax.random.split(keys[4 + l], 4)
        wq.append(rnd(lk[0], (D, 3 * D)))                     # qkv Linear, bias=False
        wp.append(rnd(lk[1], (D, D)))                         # attention proj
        w1.append(rnd(lk[2], (D, ff)))
        w2.append(rnd(lk[3], (ff, D)))

    params = {
        'w_mat': w_mat,
        'pos_emb': rnd(keys[1], (1, N, D), std=0.2),          # learnable positional embedding
        # stacked per-layer weights (bf16 matmul operands, f32 biases/LN)
        'ln1_g': jnp.ones((L, 1, D), jnp.float32),
        'ln1_b': jnp.zeros((L, 1, D), jnp.float32),
        'w_qkv': jnp.stack(wq).astype(jnp.bfloat16),                       # (L, D, 3D)
        'w_proj': jnp.stack(wp).reshape(L, H, hd, D).astype(jnp.bfloat16), # rows grouped per head
        'b_proj': jnp.zeros((L, 1, D), jnp.float32),
        'ln2_g': jnp.ones((L, 1, D), jnp.float32),
        'ln2_b': jnp.zeros((L, 1, D), jnp.float32),
        'w_fc1': jnp.stack(w1).astype(jnp.bfloat16),                       # (L, D, ff)
        'b_fc1': jnp.zeros((L, 1, ff), jnp.float32),
        'w_fc2': jnp.stack(w2).astype(jnp.bfloat16),                       # (L, ff, D)
        'b_fc2': jnp.zeros((L, 1, D), jnp.float32),
        # head
        'lnf_g': jnp.ones((1, D), jnp.float32),
        'lnf_b': jnp.zeros((1, D), jnp.float32),
        'w_ap': rnd(keys[2], (D, 1)),                          # attention_pool Linear(D, 1)
        'b_ap': jnp.zeros((1, 1), jnp.float32),
        'w_fc': rnd(keys[3], (D, C)),                          # fc Linear(D, num_classes)
        'b_fc': jnp.zeros((1, C), jnp.float32),
    }
    return params


# ----------------------------- Main -----------------------------

if __name__ == "__main__":
    cfg = dict(
        img_size=16, n_input_channels=3, embedding_dim=32,
        kernel_size=7, stride=2, padding=3,
        pooling_kernel_size=3, pooling_stride=2, pooling_padding=1,
        num_layers=2, num_heads=4, mlp_ratio=4.0, num_classes=10,
    )
    # sequence length implied by tokenizer: conv(16,k7,s2,p3) -> 8 ; maxpool(3,2,1) -> 4 ; 4*4 = 16 tokens
    OH = (cfg['img_size'] + 2 * cfg['padding'] - cfg['kernel_size']) // cfg['stride'] + 1
    PH = (OH + 2 * cfg['pooling_padding'] - cfg['pooling_kernel_size']) // cfg['pooling_stride'] + 1
    cfg['seq_len'] = PH * PH

    key = jax.random.PRNGKey(0)
    kp, kx = jax.random.split(key)
    params = init_params(kp, cfg)
    x = jax.random.normal(
        kx, (2, cfg['n_input_channels'], cfg['img_size'], cfg['img_size']), jnp.float32)

    run = jax.jit(lambda inp: cct_forward(inp, params, cfg))
    out = run(x)
    jax.block_until_ready(out)
    assert out.shape == (2, cfg['num_classes']), out.shape
    print("KERNEL_OK")
</pallas_src>

<mosaic_0001>
module attributes {stable_mosaic.version = 11 : i64} {
  func.func @_matmul_relu_kernel(%arg0: i32, %arg1: memref<64x160xbf16, #tpu.memory_space<vmem>>, %arg2: memref<160x32xbf16, #tpu.memory_space<vmem>>, %arg3: memref<64x32xf32, #tpu.memory_space<vmem>>) attributes {dimension_semantics = [#tpu.dimension_semantics<parallel>], iteration_bounds = array<i64: 2>, scalar_prefetch = 0 : i64, scratch_operands = 0 : i64, tpu.core_type = #tpu.core_type<tc>, window_params = [{transform_indices = @transform_0, window_bounds = array<i64: 64, 160>}, {pipeline_mode = #tpu.pipeline_mode<synchronous>, transform_indices = @transform_1, window_bounds = array<i64: 160, 32>}, {transform_indices = @transform_2, window_bounds = array<i64: 64, 32>}]} {
    %c0 = arith.constant 0 : index
    %c0_0 = arith.constant 0 : index
    %0 = vector.load %arg1[%c0, %c0_0] : memref<64x160xbf16, #tpu.memory_space<vmem>>, vector<64x160xbf16>
    %c0_1 = arith.constant 0 : index
    %c0_2 = arith.constant 0 : index
    %1 = vector.load %arg2[%c0_1, %c0_2] : memref<160x32xbf16, #tpu.memory_space<vmem>>, vector<160x32xbf16>
    %cst = arith.constant dense<0.000000e+00> : vector<64x32xf32>
    %2 = tpu.matmul %0, %1, %cst {dimension_numbers = #tpu.dot_dimension_numbers<[1], [0], [0], [1], [0, 0, 1, 1], [], []>} : vector<64x160xbf16>, vector<160x32xbf16>, vector<64x32xf32> -> vector<64x32xf32>
    %cst_3 = arith.constant 0.000000e+00 : f32
    %3 = vector.broadcast %cst_3 : f32 to vector<64x32xf32>
    %4 = arith.maximumf %2, %3 : vector<64x32xf32>
    %c0_4 = arith.constant 0 : index
    %c0_5 = arith.constant 0 : index
    %5 = vector.load %arg3[%c0_4, %c0_5] : memref<64x32xf32, #tpu.memory_space<vmem>>, vector<64x32xf32>
    tpu.vector_store %arg3[%c0_4, %c0_5], %4 {strides = array<i32>} : memref<64x32xf32, #tpu.memory_space<vmem>>, vector<64x32xf32>,
    return
  }
  func.func @transform_0(%arg0: i32) -> (i32, i32) {
    %c0_i32 = arith.constant 0 : i32
    %c0_i32_0 = arith.constant 0 : i32
    return %arg0, %c0_i32 : i32, i32
  }
  func.func @transform_1(%arg0: i32) -> (i32, i32) {
    %c0_i32 = arith.constant 0 : i32
    %c0_i32_0 = arith.constant 0 : i32
    %c0_i32_1 = arith.constant 0 : i32
    return %c0_i32, %c0_i32_0 : i32, i32
  }
  func.func @transform_2(%arg0: i32) -> (i32, i32) {
    %c0_i32 = arith.constant 0 : i32
    %c0_i32_0 = arith.constant 0 : i32
    return %arg0, %c0_i32 : i32, i32
  }
}

module attributes {stable_mosaic.version = 11 : i64} {
  func.func @_transformer_kernel(%arg0: i32, %arg1: memref<1x16x32xf32, #tpu.memory_space<vmem>>, %arg2: memref<1x16x32xf32, #tpu.memory_space<vmem>>, %arg3: memref<2x1x32xf32, #tpu.memory_space<vmem>>, %arg4: memref<2x1x32xf32, #tpu.memory_space<vmem>>, %arg5: memref<2x32x96xbf16, #tpu.memory_space<vmem>>, %arg6: memref<2x4x8x32xbf16, #tpu.memory_space<vmem>>, %arg7: memref<2x1x32xf32, #tpu.memory_space<vmem>>, %arg8: memref<2x1x32xf32, #tpu.memory_space<vmem>>, %arg9: memref<2x1x32xf32, #tpu.memory_space<vmem>>, %arg10: memref<2x32x128xbf16, #tpu.memory_space<vmem>>, %arg11: memref<2x1x128xf32, #tpu.memory_space<vmem>>, %arg12: memref<2x128x32xbf16, #tpu.memory_space<vmem>>, %arg13: memref<2x1x32xf32, #tpu.memory_space<vmem>>, %arg14: memref<1x32xf32, #tpu.memory_space<vmem>>, %arg15: memref<1x32xf32, #tpu.memory_space<vmem>>, %arg16: memref<32x1xf32, #tpu.memory_space<vmem>>, %arg17: memref<1x1xf32, #tpu.memory_space<vmem>>, %arg18: memref<32x10xf32, #tpu.memory_space<vmem>>, %arg19: memref<1x10xf32, #tpu.memory_space<vmem>>, %arg20: memref<1x1x10xf32, #tpu.memory_space<vmem>>) attributes {dimension_semantics = [#tpu.dimension_semantics<parallel>], iteration_bounds = array<i64: 2>, scalar_prefetch = 0 : i64, scratch_operands = 0 : i64, tpu.core_type = #tpu.core_type<tc>, window_params = [{transform_indices = @transform_0, window_bounds = array<i64: 1, 16, 32>}, {pipeline_mode = #tpu.pipeline_mode<synchronous>, transform_indices = @transform_1, window_bounds = array<i64: 1, 16, 32>}, {pipeline_mode = #tpu.pipeline_mode<synchronous>, transform_indices = @transform_2, window_bounds = array<i64: 2, 1, 32>}, {pipeline_mode = #tpu.pipeline_mode<synchronous>, transform_indices = @transform_3, window_bounds = array<i64: 2, 1, 32>}, {pipeline_mode = #tpu.pipeline_mode<synchronous>, transform_indices = @transform_4, window_bounds = array<i64: 2, 32, 96>}, {pipeline_mode = #tpu.pipeline_mode<synchronous>, transform_indices = @transform_5, window_bounds = array<i64: 2, 4, 8, 32>}, {pipeline_mode = #tpu.pipeline_mode<synchronous>, transform_indices = @transform_6, window_bounds = array<i64: 2, 1, 32>}, {pipeline_mode = #tpu.pipeline_mode<synchronous>, transform_indices = @transform_7, window_bounds = array<i64: 2, 1, 32>}, {pipeline_mode = #tpu.pipeline_mode<synchronous>, transform_indices = @transform_8, window_bounds = array<i64: 2, 1, 32>}, {pipeline_mode = #tpu.pipeline_mode<synchronous>, transform_indices = @transform_9, window_bounds = array<i64: 2, 32, 128>}, {pipeline_mode = #tpu.pipeline_mode<synchronous>, transform_indices = @transform_10, window_bounds = array<i64: 2, 1, 128>}, {pipeline_mode = #tpu.pipeline_mode<synchronous>, transform_indices = @transform_11, window_bounds = array<i64: 2, 128, 32>}, {pipeline_mode = #tpu.pipeline_mode<synchronous>, transform_indices = @transform_12, window_bounds = array<i64: 2, 1, 32>}, {pipeline_mode = #tpu.pipeline_mode<synchronous>, transform_indices = @transform_13, window_bounds = array<i64: 1, 32>}, {pipeline_mode = #tpu.pipeline_mode<synchronous>, transform_indices = @transform_14, window_bounds = array<i64: 1, 32>}, {pipeline_mode = #tpu.pipeline_mode<synchronous>, transform_indices = @transform_15, window_bounds = array<i64: 32, 1>}, {pipeline_mode = #tpu.pipeline_mode<synchronous>, transform_indices = @transform_16, window_bounds = array<i64: 1, 1>}, {pipeline_mode = #tpu.pipeline_mode<synchronous>, transform_indices = @transform_17, window_bounds = array<i64: 32, 10>}, {pipeline_mode = #tpu.pipeline_mode<synchronous>, transform_indices = @transform_18, window_bounds = array<i64: 1, 10>}, {transform_indices = @transform_19, window_bounds = array<i64: 1, 1, 10>}]} {
    %c0 = arith.constant 0 : index
    %c0_0 = arith.constant 0 : index
    %c0_1 = arith.constant 0 : index
    %0 = vector.load %arg1[%c0, %c0_0, %c0_1] : memref<1x16x32xf32, #tpu.memory_space<vmem>>, vector<1x16x32xf32>
    %1 = vector.shape_cast %0 : vector<1x16x32xf32> to vector<16x32xf32>
    %c0_2 = arith.constant 0 : index
    %c0_3 = arith.constant 0 : index
    %c0_4 = arith.constant 0 : index
    %2 = vector.load %arg2[%c0_2, %c0_3, %c0_4] : memref<1x16x32xf32, #tpu.memory_space<vmem>>, vector<1x16x32xf32>
    %3 = vector.shape_cast %2 : vector<1x16x32xf32> to vector<16x32xf32>
    %4 = arith.addf %1, %3 : vector<16x32xf32>
    %c0_5 = arith.constant 0 : index
    %c0_6 = arith.constant 0 : index
    %c0_7 = arith.constant 0 : index
    %5 = vector.load %arg3[%c0_5, %c0_6, %c0_7] : memref<2x1x32xf32, #tpu.memory_space<vmem>>, vector<1x1x32xf32>
    %6 = vector.shape_cast %5 : vector<1x1x32xf32> to vector<1x32xf32>
    %c0_8 = arith.constant 0 : index
    %c0_9 = arith.constant 0 : index
    %c0_10 = arith.constant 0 : index
    %7 = vector.load %arg4[%c0_8, %c0_9, %c0_10] : memref<2x1x32xf32, #tpu.memory_space<vmem>>, vector<1x1x32xf32>
    %8 = vector.shape_cast %7 : vector<1x1x32xf32> to vector<1x32xf32>
    %cst = arith.constant dense<0.000000e+00> : vector<16xf32>
    %9 = vector.multi_reduction <add>, %4, %cst [1] : vector<16x32xf32> to vector<16xf32>
    %10 = vector.shape_cast %9 : vector<16xf32> to vector<16x1xf32>
    %cst_11 = arith.constant 3.200000e+01 : f32
    %11 = vector.broadcast %cst_11 : f32 to vector<16x1xf32>
    %12 = arith.divf %10, %11 : vector<16x1xf32>
    %13 = vector.broadcast %12 : vector<16x1xf32> to vector<16x32xf32>
    %14 = arith.subf %4, %13 : vector<16x32xf32>
    %15 = arith.mulf %14, %14 : vector<16x32xf32>
    %cst_12 = arith.constant dense<0.000000e+00> : vector<16xf32>
    %16 = vector.multi_reduction <add>, %15, %cst_12 [1] : vector<16x32xf32> to vector<16xf32>
    %17 = vector.shape_cast %16 : vector<16xf32> to vector<16x1xf32>
    %cst_13 = arith.constant 3.200000e+01 : f32
    %18 = vector.broadcast %cst_13 : f32 to vector<16x1xf32>
    %19 = arith.divf %17, %18 : vector<16x1xf32>
    %cst_14 = arith.constant 9.99999974E-6 : f32
    %20 = vector.broadcast %cst_14 : f32 to vector<16x1xf32>
    %21 = arith.addf %19, %20 : vector<16x1xf32>
    %22 = math.rsqrt %21 : vector<16x1xf32>
    %23 = vector.broadcast %22 : vector<16x1xf32> to vector<16x32xf32>
    %24 = arith.mulf %14, %23 : vector<16x32xf32>
    %25 = vector.broadcast %6 : vector<1x32xf32> to vector<16x32xf32>
    %26 = arith.mulf %24, %25 : vector<16x32xf32>
    %27 = vector.broadcast %8 : vector<1x32xf32> to vector<16x32xf32>
    %28 = arith.addf %26, %27 : vector<16x32xf32>
    %29 = arith.truncf %28 : vector<16x32xf32> to vector<16x32xbf16>
    %c0_15 = arith.constant 0 : index
    %c0_16 = arith.constant 0 : index
    %c0_17 = arith.constant 0 : index
    %30 = vector.load %arg5[%c0_15, %c0_16, %c0_17] : memref<2x32x96xbf16, #tpu.memory_space<vmem>>, vector<1x32x96xbf16>
    %31 = vector.shape_cast %30 : vector<1x32x96xbf16> to vector<32x96xbf16>
    %cst_18 = arith.constant dense<0.000000e+00> : vector<16x96xf32>
    %32 = tpu.matmul %29, %31, %cst_18 {dimension_numbers = #tpu.dot_dimension_numbers<[1], [0], [0], [1], [0, 0, 1, 1], [], []>} : vector<16x32xbf16>, vector<32x96xbf16>, vector<16x96xf32> -> vector<16x96xf32>
    %33 = vector.extract_strided_slice %32 {offsets = [0, 0], sizes = [16, 8], strides = [1, 1]} : vector<16x96xf32> to vector<16x8xf32>
    %34 = vector.extract_strided_slice %32 {offsets = [0, 32], sizes = [16, 8], strides = [1, 1]} : vector<16x96xf32> to vector<16x8xf32>
    %35 = vector.extract_strided_slice %32 {offsets = [0, 64], sizes = [16, 8], strides = [1, 1]} : vector<16x96xf32> to vector<16x8xf32>
    %36 = arith.truncf %33 : vector<16x8xf32> to vector<16x8xbf16>
    %37 = arith.truncf %34 : vector<16x8xf32> to vector<16x8xbf16>
    %cst_19 = arith.constant dense<0.000000e+00> : vector<16x16xf32>
    %38 = tpu.matmul %36, %37, %cst_19 {dimension_numbers = #tpu.dot_dimension_numbers<[1], [1], [0], [0], [0, 0, 1, 0], [], []>} : vector<16x8xbf16>, vector<16x8xbf16>, vector<16x16xf32> -> vector<16x16xf32>
    %cst_20 = arith.constant 0.353553385 : f32
    %39 = vector.broadcast %cst_20 : f32 to vector<16x16xf32>
    %40 = arith.mulf %38, %39 : vector<16x16xf32>
    %cst_21 = arith.constant dense<0xFF800000> : vector<16xf32>
    %41 = vector.multi_reduction <maximumf>, %40, %cst_21 [1] : vector<16x16xf32> to vector<16xf32>
    %42 = vector.shape_cast %41 : vector<16xf32> to vector<16x1xf32>
    %43 = vector.broadcast %42 : vector<16x1xf32> to vector<16x16xf32>
    %44 = arith.subf %40, %43 : vector<16x16xf32>
    %45 = math.exp %44 : vector<16x16xf32>
    %cst_22 = arith.constant dense<0.000000e+00> : vector<16xf32>
    %46 = vector.multi_reduction <add>, %45, %cst_22 [1] : vector<16x16xf32> to vector<16xf32>
    %47 = vector.shape_cast %46 : vector<16xf32> to vector<16x1xf32>
    %48 = tpu.reciprocal %47 {approx = true} : vector<16x1xf32> -> vector<16x1xf32>
    %49 = vector.broadcast %48 : vector<16x1xf32> to vector<16x16xf32>
    %50 = arith.mulf %45, %49 : vector<16x16xf32>
    %51 = arith.truncf %50 : vector<16x16xf32> to vector<16x16xbf16>
    %52 = arith.truncf %35 : vector<16x8xf32> to vector<16x8xbf16>
    %cst_23 = arith.constant dense<0.000000e+00> : vector<16x8xf32>
    %53 = tpu.matmul %51, %52, %cst_23 {dimension_numbers = #tpu.dot_dimension_numbers<[1], [0], [0], [1], [0, 0, 1, 1], [], []>} : vector<16x16xbf16>, vector<16x8xbf16>, vector<16x8xf32> -> vector<16x8xf32>
    %54 = arith.truncf %53 : vector<16x8xf32> to vector<16x8xbf16>
    %c0_24 = arith.constant 0 : index
    %c0_25 = arith.constant 0 : index
    %c0_26 = arith.constant 0 : index
    %c0_27 = arith.constant 0 : index
    %55 = vector.load %arg6[%c0_24, %c0_25, %c0_26, %c0_27] : memref<2x4x8x32xbf16, #tpu.memory_space<vmem>>, vector<1x1x8x32xbf16>
    %56 = vector.shape_cast %55 : vector<1x1x8x32xbf16> to vector<8x32xbf16>
    %cst_28 = arith.constant dense<0.000000e+00> : vector<16x32xf32>
    %57 = tpu.matmul %54, %56, %cst_28 {dimension_numbers = #tpu.dot_dimension_numbers<[1], [0], [0], [1], [0, 0, 1, 1], [], []>} : vector<16x8xbf16>, vector<8x32xbf16>, vector<16x32xf32> -> vector<16x32xf32>
    %58 = vector.extract_strided_slice %32 {offsets = [0, 8], sizes = [16, 8], strides = [1, 1]} : vector<16x96xf32> to vector<16x8xf32>
    %59 = vector.extract_strided_slice %32 {offsets = [0, 40], sizes = [16, 8], strides = [1, 1]} : vector<16x96xf32> to vector<16x8xf32>
    %60 = vector.extract_strided_slice %32 {offsets = [0, 72], sizes = [16, 8], strides = [1, 1]} : vector<16x96xf32> to vector<16x8xf32>
    %61 = arith.truncf %58 : vector<16x8xf32> to vector<16x8xbf16>
    %62 = arith.truncf %59 : vector<16x8xf32> to vector<16x8xbf16>
    %cst_29 = arith.constant dense<0.000000e+00> : vector<16x16xf32>
    %63 = tpu.matmul %61, %62, %cst_29 {dimension_numbers = #tpu.dot_dimension_numbers<[1], [1], [0], [0], [0, 0, 1, 0], [], []>} : vector<16x8xbf16>, vector<16x8xbf16>, vector<16x16xf32> -> vector<16x16xf32>
    %cst_30 = arith.constant 0.353553385 : f32
    %64 = vector.broadcast %cst_30 : f32 to vector<16x16xf32>
    %65 = arith.mulf %63, %64 : vector<16x16xf32>
    %cst_31 = arith.constant dense<0xFF800000> : vector<16xf32>
    %66 = vector.multi_reduction <maximumf>, %65, %cst_31 [1] : vector<16x16xf32> to vector<16xf32>
    %67 = vector.shape_cast %66 : vector<16xf32> to vector<16x1xf32>
    %68 = vector.broadcast %67 : vector<16x1xf32> to vector<16x16xf32>
    %69 = arith.subf %65, %68 : vector<16x16xf32>
    %70 = math.exp %69 : vector<16x16xf32>
    %cst_32 = arith.constant dense<0.000000e+00> : vector<16xf32>
    %71 = vector.multi_reduction <add>, %70, %cst_32 [1] : vector<16x16xf32> to vector<16xf32>
    %72 = vector.shape_cast %71 : vector<16xf32> to vector<16x1xf32>
    %73 = tpu.reciprocal %72 {approx = true} : vector<16x1xf32> -> vector<16x1xf32>
    %74 = vector.broadcast %73 : vector<16x1xf32> to vector<16x16xf32>
    %75 = arith.mulf %70, %74 : vector<16x16xf32>
    %76 = arith.truncf %75 : vector<16x16xf32> to vector<16x16xbf16>
    %77 = arith.truncf %60 : vector<16x8xf32> to vector<16x8xbf16>
    %cst_33 = arith.constant dense<0.000000e+00> : vector<16x8xf32>
    %78 = tpu.matmul %76, %77, %cst_33 {dimension_numbers = #tpu.dot_dimension_numbers<[1], [0], [0], [1], [0, 0, 1, 1], [], []>} : vector<16x16xbf16>, vector<16x8xbf16>, vector<16x8xf32> -> vector<16x8xf32>
    %79 = arith.truncf %78 : vector<16x8xf32> to vector<16x8xbf16>
    %c0_34 = arith.constant 0 : index
    %c1 = arith.constant 1 : index
    %c0_35 = arith.constant 0 : index
    %c0_36 = arith.constant 0 : index
    %80 = vector.load %arg6[%c0_34, %c1, %c0_35, %c0_36] : memref<2x4x8x32xbf16, #tpu.memory_space<vmem>>, vector<1x1x8x32xbf16>
    %81 = vector.shape_cast %80 : vector<1x1x8x32xbf16> to vector<8x32xbf16>
    %cst_37 = arith.constant dense<0.000000e+00> : vector<16x32xf32>
    %82 = tpu.matmul %79, %81, %cst_37 {dimension_numbers = #tpu.dot_dimension_numbers<[1], [0], [0], [1], [0, 0, 1, 1], [], []>} : vector<16x8xbf16>, vector<8x32xbf16>, vector<16x32xf32> -> vector<16x32xf32>
    %83 = arith.addf %57, %82 : vector<16x32xf32>
    %84 = vector.extract_strided_slice %32 {offsets = [0, 16], sizes = [16, 8], strides = [1, 1]} : vector<16x96xf32> to vector<16x8xf32>
    %85 = vector.extract_strided_slice %32 {offsets = [0, 48], sizes = [16, 8], strides = [1, 1]} : vector<16x96xf32> to vector<16x8xf32>
    %86 = vector.extract_strided_slice %32 {offsets = [0, 80], sizes = [16, 8], strides = [1, 1]} : vector<16x96xf32> to vector<16x8xf32>
    %87 = arith.truncf %84 : vector<16x8xf32> to vector<16x8xbf16>
    %88 = arith.truncf %85 : vector<16x8xf32> to vector<16x8xbf16>
    %cst_38 = arith.constant dense<0.000000e+00> : vector<16x16xf32>
    %89 = tpu.matmul %87, %88, %cst_38 {dimension_numbers = #tpu.dot_dimension_numbers<[1], [1], [0], [0], [0, 0, 1, 0], [], []>} : vector<16x8xbf16>, vector<16x8xbf16>, vector<16x16xf32> -> vector<16x16xf32>
    %cst_39 = arith.constant 0.353553385 : f32
    %90 = vector.broadcast %cst_39 : f32 to vector<16x16xf32>
    %91 = arith.mulf %89, %90 : vector<16x16xf32>
    %cst_40 = arith.constant dense<0xFF800000> : vector<16xf32>
    %92 = vector.multi_reduction <maximumf>, %91, %cst_40 [1] : vector<16x16xf32> to vector<16xf32>
    %93 = vector.shape_cast %92 : vector<16xf32> to vector<16x1xf32>
    %94 = vector.broadcast %93 : vector<16x1xf32> to vector<16x16xf32>
    %95 = arith.subf %91, %94 : vector<16x16xf32>
    %96 = math.exp %95 : vector<16x16xf32>
    %cst_41 = arith.constant dense<0.000000e+00> : vector<16xf32>
    %97 = vector.multi_reduction <add>, %96, %cst_41 [1] : vector<16x16xf32> to vector<16xf32>
    %98 = vector.shape_cast %97 : vector<16xf32> to vector<16x1xf32>
    %99 = tpu.reciprocal %98 {approx = true} : vector<16x1xf32> -> vector<16x1xf32>
    %100 = vector.broadcast %99 : vector<16x1xf32> to vector<16x16xf32>
    %101 = arith.mulf %96, %100 : vector<16x16xf32>
    %102 = arith.truncf %101 : vector<16x16xf32> to vector<16x16xbf16>
    %103 = arith.truncf %86 : vector<16x8xf32> to vector<16x8xbf16>
    %cst_42 = arith.constant dense<0.000000e+00> : vector<16x8xf32>
    %104 = tpu.matmul %102, %103, %cst_42 {dimension_numbers = #tpu.dot_dimension_numbers<[1], [0], [0], [1], [0, 0, 1, 1], [], []>} : vector<16x16xbf16>, vector<16x8xbf16>, vector<16x8xf32> -> vector<16x8xf32>
    %105 = arith.truncf %104 : vector<16x8xf32> to vector<16x8xbf16>
    %c0_43 = arith.constant 0 : index
    %c2 = arith.constant 2 : index
    %c0_44 = arith.constant 0 : index
    %c0_45 = arith.constant 0 : index
    %106 = vector.load %arg6[%c0_43, %c2, %c0_44, %c0_45] : memref<2x4x8x32xbf16, #tpu.memory_space<vmem>>, vector<1x1x8x32xbf16>
    %107 = vector.shape_cast %106 : vector<1x1x8x32xbf16> to vector<8x32xbf16>
    %cst_46 = arith.constant dense<0.000000e+00> : vector<16x32xf32>
    %108 = tpu.matmul %105, %107, %cst_46 {dimension_numbers = #tpu.dot_dimension_numbers<[1], [0], [0], [1], [0, 0, 1, 1], [], []>} : vector<16x8xbf16>, vector<8x32xbf16>, vector<16x32xf32> -> vector<16x32xf32>
    %109 = arith.addf %83, %108 : vector<16x32xf32>
    %110 = vector.extract_strided_slice %32 {offsets = [0, 24], sizes = [16, 8], strides = [1, 1]} : vector<16x96xf32> to vector<16x8xf32>
    %111 = vector.extract_strided_slice %32 {offsets = [0, 56], sizes = [16, 8], strides = [1, 1]} : vector<16x96xf32> to vector<16x8xf32>
    %112 = vector.extract_strided_slice %32 {offsets = [0, 88], sizes = [16, 8], strides = [1, 1]} : vector<16x96xf32> to vector<16x8xf32>
    %113 = arith.truncf %110 : vector<16x8xf32> to vector<16x8xbf16>
    %114 = arith.truncf %111 : vector<16x8xf32> to vector<16x8xbf16>
    %cst_47 = arith.constant dense<0.000000e+00> : vector<16x16xf32>
    %115 = tpu.matmul %113, %114, %cst_47 {dimension_numbers = #tpu.dot_dimension_numbers<[1], [1], [0], [0], [0, 0, 1, 0], [], []>} : vector<16x8xbf16>, vector<16x8xbf16>, vector<16x16xf32> -> vector<16x16xf32>
    %cst_48 = arith.constant 0.353553385 : f32
    %116 = vector.broadcast %cst_48 : f32 to vector<16x16xf32>
    %117 = arith.mulf %115, %116 : vector<16x16xf32>
    %cst_49 = arith.constant dense<0xFF800000> : vector<16xf32>
    %118 = vector.multi_reduction <maximumf>, %117, %cst_49 [1] : vector<16x16xf32> to vector<16xf32>
    %119 = vector.shape_cast %118 : vector<16xf32> to vector<16x1xf32>
    %120 = vector.broadcast %119 : vector<16x1xf32> to vector<16x16xf32>
    %121 = arith.subf %117, %120 : vector<16x16xf32>
    %122 = math.exp %121 : vector<16x16xf32>
    %cst_50 = arith.constant dense<0.000000e+00> : vector<16xf32>
    %123 = vector.multi_reduction <add>, %122, %cst_50 [1] : vector<16x16xf32> to vector<16xf32>
    %124 = vector.shape_cast %123 : vector<16xf32> to vector<16x1xf32>
    %125 = tpu.reciprocal %124 {approx = true} : vector<16x1xf32> -> vector<16x1xf32>
    %126 = vector.broadcast %125 : vector<16x1xf32> to vector<16x16xf32>
    %127 = arith.mulf %122, %126 : vector<16x16xf32>
    %128 = arith.truncf %127 : vector<16x16xf32> to vector<16x16xbf16>
    %129 = arith.truncf %112 : vector<16x8xf32> to vector<16x8xbf16>
    %cst_51 = arith.constant dense<0.000000e+00> : vector<16x8xf32>
    %130 = tpu.matmul %128, %129, %cst_51 {dimension_numbers = #tpu.dot_dimension_numbers<[1], [0], [0], [1], [0, 0, 1, 1], [], []>} : vector<16x16xbf16>, vector<16x8xbf16>, vector<16x8xf32> -> vector<16x8xf32>
    %131 = arith.truncf %130 : vector<16x8xf32> to vector<16x8xbf16>
    %c0_52 = arith.constant 0 : index
    %c3 = arith.constant 3 : index
    %c0_53 = arith.constant 0 : index
    %c0_54 = arith.constant 0 : index
    %132 = vector.load %arg6[%c0_52, %c3, %c0_53, %c0_54] : memref<2x4x8x32xbf16, #tpu.memory_space<vmem>>, vector<1x1x8x32xbf16>
    %133 = vector.shape_cast %132 : vector<1x1x8x32xbf16> to vector<8x32xbf16>
    %cst_55 = arith.constant dense<0.000000e+00> : vector<16x32xf32>
    %134 = tpu.matmul %131, %133, %cst_55 {dimension_numbers = #tpu.dot_dimension_numbers<[1], [0], [0], [1], [0, 0, 1, 1], [], []>} : vector<16x8xbf16>, vector<8x32xbf16>, vector<16x32xf32> -> vector<16x32xf32>
    %135 = arith.addf %109, %134 : vector<16x32xf32>
    %136 = arith.addf %4, %135 : vector<16x32xf32>
    %c0_56 = arith.constant 0 : index
    %c0_57 = arith.constant 0 : index
    %c0_58 = arith.constant 0 : index
    %137 = vector.load %arg7[%c0_56, %c0_57, %c0_58] : memref<2x1x32xf32, #tpu.memory_space<vmem>>, vector<1x1x32xf32>
    %138 = vector.shape_cast %137 : vector<1x1x32xf32> to vector<1x32xf32>
    %139 = vector.broadcast %138 : vector<1x32xf32> to vector<16x32xf32>
    %140 = arith.addf %136, %139 : vector<16x32xf32>
    %c0_59 = arith.constant 0 : index
    %c0_60 = arith.constant 0 : index
    %c0_61 = arith.constant 0 : index
    %141 = vector.load %arg8[%c0_59, %c0_60, %c0_61] : memref<2x1x32xf32, #tpu.memory_space<vmem>>, vector<1x1x32xf32>
    %142 = vector.shape_cast %141 : vector<1x1x32xf32> to vector<1x32xf32>
    %c0_62 = arith.constant 0 : index
    %c0_63 = arith.constant 0 : index
    %c0_64 = arith.constant 0 : index
    %143 = vector.load %arg9[%c0_62, %c0_63, %c0_64] : memref<2x1x32xf32, #tpu.memory_space<vmem>>, vector<1x1x32xf32>
    %144 = vector.shape_cast %143 : vector<1x1x32xf32> to vector<1x32xf32>
    %cst_65 = arith.constant dense<0.000000e+00> : vector<16xf32>
    %145 = vector.multi_reduction <add>, %140, %cst_65 [1] : vector<16x32xf32> to vector<16xf32>
    %146 = vector.shape_cast %145 : vector<16xf32> to vector<16x1xf32>
    %cst_66 = arith.constant 3.200000e+01 : f32
    %147 = vector.broadcast %cst_66 : f32 to vector<16x1xf32>
    %148 = arith.divf %146, %147 : vector<16x1xf32>
    %149 = vector.broadcast %148 : vector<16x1xf32> to vector<16x32xf32>
    %150 = arith.subf %140, %149 : vector<16x32xf32>
    %151 = arith.mulf %150, %150 : vector<16x32xf32>
    %cst_67 = arith.constant dense<0.000000e+00> : vector<16xf32>
    %152 = vector.multi_reduction <add>, %151, %cst_67 [1] : vector<16x32xf32> to vector<16xf32>
    %153 = vector.shape_cast %152 : vector<16xf32> to vector<16x1xf32>
    %cst_68 = arith.constant 3.200000e+01 : f32
    %154 = vector.broadcast %cst_68 : f32 to vector<16x1xf32>
    %155 = arith.divf %153, %154 : vector<16x1xf32>
    %cst_69 = arith.constant 9.99999974E-6 : f32
    %156 = vector.broadcast %cst_69 : f32 to vector<16x1xf32>
    %157 = arith.addf %155, %156 : vector<16x1xf32>
    %158 = math.rsqrt %157 : vector<16x1xf32>
    %159 = vector.broadcast %158 : vector<16x1xf32> to vector<16x32xf32>
    %160 = arith.mulf %150, %159 : vector<16x32xf32>
    %161 = vector.broadcast %142 : vector<1x32xf32> to vector<16x32xf32>
    %162 = arith.mulf %160, %161 : vector<16x32xf32>
    %163 = vector.broadcast %144 : vector<1x32xf32> to vector<16x32xf32>
    %164 = arith.addf %162, %163 : vector<16x32xf32>
    %165 = arith.truncf %164 : vector<16x32xf32> to vector<16x32xbf16>
    %c0_70 = arith.constant 0 : index
    %c0_71 = arith.constant 0 : index
    %c0_72 = arith.constant 0 : index
    %166 = vector.load %arg10[%c0_70, %c0_71, %c0_72] : memref<2x32x128xbf16, #tpu.memory_space<vmem>>, vector<1x32x128xbf16>
    %167 = vector.shape_cast %166 : vector<1x32x128xbf16> to vector<32x128xbf16>
    %cst_73 = arith.constant dense<0.000000e+00> : vector<16x128xf32>
    %168 = tpu.matmul %165, %167, %cst_73 {dimension_numbers = #tpu.dot_dimension_numbers<[1], [0], [0], [1], [0, 0, 1, 1], [], []>} : vector<16x32xbf16>, vector<32x128xbf16>, vector<16x128xf32> -> vector<16x128xf32>
    %c0_74 = arith.constant 0 : index
    %c0_75 = arith.constant 0 : index
    %c0_76 = arith.constant 0 : index
    %169 = vector.load %arg11[%c0_74, %c0_75, %c0_76] : memref<2x1x128xf32, #tpu.memory_space<vmem>>, vector<1x1x128xf32>
    %170 = vector.shape_cast %169 : vector<1x1x128xf32> to vector<1x128xf32>
    %171 = vector.broadcast %170 : vector<1x128xf32> to vector<16x128xf32>
    %172 = arith.addf %168, %171 : vector<16x128xf32>
    %cst_77 = arith.constant 5.000000e-01 : f32
    %173 = vector.broadcast %cst_77 : f32 to vector<16x128xf32>
    %174 = arith.mulf %173, %172 : vector<16x128xf32>
    %cst_78 = arith.constant 0.707106769 : f32
    %175 = vector.broadcast %cst_78 : f32 to vector<16x128xf32>
    %176 = arith.mulf %172, %175 : vector<16x128xf32>
    %cst_79 = arith.constant 0.000000e+00 : f32
    %177 = vector.broadcast %cst_79 : f32 to vector<16x128xf32>
    %178 = arith.cmpf oge, %176, %177 : vector<16x128xf32>
    %cst_80 = arith.constant 1.000000e+00 : f32
    %cst_81 = arith.constant -1.000000e+00 : f32
    %179 = vector.broadcast %cst_80 : f32 to vector<16x128xf32>
    %180 = vector.broadcast %cst_81 : f32 to vector<16x128xf32>
    %181 = arith.select %178, %179, %180 : vector<16x128xi1>, vector<16x128xf32>
    %182 = math.absf %176 : vector<16x128xf32>
    %cst_82 = arith.constant 0.327591091 : f32
    %183 = vector.broadcast %cst_82 : f32 to vector<16x128xf32>
    %184 = arith.mulf %183, %182 : vector<16x128xf32>
    %cst_83 = arith.constant 1.000000e+00 : f32
    %185 = vector.broadcast %cst_83 : f32 to vector<16x128xf32>
    %186 = arith.addf %185, %184 : vector<16x128xf32>
    %cst_84 = arith.constant 1.000000e+00 : f32
    %187 = vector.broadcast %cst_84 : f32 to vector<16x128xf32>
    %188 = arith.divf %187, %186 : vector<16x128xf32>
    %cst_85 = arith.constant 1.06140542 : f32
    %189 = vector.broadcast %cst_85 : f32 to vector<16x128xf32>
    %190 = arith.mulf %189, %188 : vector<16x128xf32>
    %cst_86 = arith.constant -1.45315206 : f32
    %191 = vector.broadcast %cst_86 : f32 to vector<16x128xf32>
    %192 = arith.addf %190, %191 : vector<16x128xf32>
    %193 = arith.mulf %192, %188 : vector<16x128xf32>
    %cst_87 = arith.constant 1.42141378 : f32
    %194 = vector.broadcast %cst_87 : f32 to vector<16x128xf32>
    %195 = arith.addf %193, %194 : vector<16x128xf32>
    %196 = arith.mulf %195, %188 : vector<16x128xf32>
    %cst_88 = arith.constant -0.284496725 : f32
    %197 = vector.broadcast %cst_88 : f32 to vector<16x128xf32>
    %198 = arith.addf %196, %197 : vector<16x128xf32>
    %199 = arith.mulf %198, %188 : vector<16x128xf32>
    %cst_89 = arith.constant 0.254829586 : f32
    %200 = vector.broadcast %cst_89 : f32 to vector<16x128xf32>
    %201 = arith.addf %199, %200 : vector<16x128xf32>
    %202 = arith.mulf %201, %188 : vector<16x128xf32>
    %203 = arith.mulf %182, %182 : vector<16x128xf32>
    %cst_90 = arith.constant 0.000000e+00 : f32
    %204 = vector.broadcast %cst_90 : f32 to vector<16x128xf32>
    %205 = arith.subf %204, %203 : vector<16x128xf32>
    %206 = math.exp %205 : vector<16x128xf32>
    %207 = arith.mulf %202, %206 : vector<16x128xf32>
    %cst_91 = arith.constant 1.000000e+00 : f32
    %208 = vector.broadcast %cst_91 : f32 to vector<16x128xf32>
    %209 = arith.subf %208, %207 : vector<16x128xf32>
    %210 = arith.mulf %181, %209 : vector<16x128xf32>
    %cst_92 = arith.constant 1.000000e+00 : f32
    %211 = vector.broadcast %cst_92 : f32 to vector<16x128xf32>
    %212 = arith.addf %211, %210 : vector<16x128xf32>
    %213 = arith.mulf %174, %212 : vector<16x128xf32>
    %214 = arith.truncf %213 : vector<16x128xf32> to vector<16x128xbf16>
    %c0_93 = arith.constant 0 : index
    %c0_94 = arith.constant 0 : index
    %c0_95 = arith.constant 0 : index
    %215 = vector.load %arg12[%c0_93, %c0_94, %c0_95] : memref<2x128x32xbf16, #tpu.memory_space<vmem>>, vector<1x128x32xbf16>
    %216 = vector.shape_cast %215 : vector<1x128x32xbf16> to vector<128x32xbf16>
    %cst_96 = arith.constant dense<0.000000e+00> : vector<16x32xf32>
    %217 = tpu.matmul %214, %216, %cst_96 {dimension_numbers = #tpu.dot_dimension_numbers<[1], [0], [0], [1], [0, 0, 1, 1], [], []>} : vector<16x128xbf16>, vector<128x32xbf16>, vector<16x32xf32> -> vector<16x32xf32>
    %218 = arith.addf %164, %217 : vector<16x32xf32>
    %c0_97 = arith.constant 0 : index
    %c0_98 = arith.constant 0 : index
    %c0_99 = arith.constant 0 : index
    %219 = vector.load %arg13[%c0_97, %c0_98, %c0_99] : memref<2x1x32xf32, #tpu.memory_space<vmem>>, vector<1x1x32xf32>
    %220 = vector.shape_cast %219 : vector<1x1x32xf32> to vector<1x32xf32>
    %221 = vector.broadcast %220 : vector<1x32xf32> to vector<16x32xf32>
    %222 = arith.addf %218, %221 : vector<16x32xf32>
    %c1_100 = arith.constant 1 : index
    %c0_101 = arith.constant 0 : index
    %c0_102 = arith.constant 0 : index
    %223 = vector.load %arg3[%c1_100, %c0_101, %c0_102] : memref<2x1x32xf32, #tpu.memory_space<vmem>>, vector<1x1x32xf32>
    %224 = vector.shape_cast %223 : vector<1x1x32xf32> to vector<1x32xf32>
    %c1_103 = arith.constant 1 : index
    %c0_104 = arith.constant 0 : index
    %c0_105 = arith.constant 0 : index
    %225 = vector.load %arg4[%c1_103, %c0_104, %c0_105] : memref<2x1x32xf32, #tpu.memory_space<vmem>>, vector<1x1x32xf32>
    %226 = vector.shape_cast %225 : vector<1x1x32xf32> to vector<1x32xf32>
    %cst_106 = arith.constant dense<0.000000e+00> : vector<16xf32>
    %227 = vector.multi_reduction <add>, %222, %cst_106 [1] : vector<16x32xf32> to vector<16xf32>
    %228 = vector.shape_cast %227 : vector<16xf32> to vector<16x1xf32>
    %cst_107 = arith.constant 3.200000e+01 : f32
    %229 = vector.broadcast %cst_107 : f32 to vector<16x1xf32>
    %230 = arith.divf %228, %229 : vector<16x1xf32>
    %231 = vector.broadcast %230 : vector<16x1xf32> to vector<16x32xf32>
    %232 = arith.subf %222, %231 : vector<16x32xf32>
    %233 = arith.mulf %232, %232 : vector<16x32xf32>
    %cst_108 = arith.constant dense<0.000000e+00> : vector<16xf32>
    %234 = vector.multi_reduction <add>, %233, %cst_108 [1] : vector<16x32xf32> to vector<16xf32>
    %235 = vector.shape_cast %234 : vector<16xf32> to vector<16x1xf32>
    %cst_109 = arith.constant 3.200000e+01 : f32
    %236 = vector.broadcast %cst_109 : f32 to vector<16x1xf32>
    %237 = arith.divf %235, %236 : vector<16x1xf32>
    %cst_110 = arith.constant 9.99999974E-6 : f32
    %238 = vector.broadcast %cst_110 : f32 to vector<16x1xf32>
    %239 = arith.addf %237, %238 : vector<16x1xf32>
    %240 = math.rsqrt %239 : vector<16x1xf32>
    %241 = vector.broadcast %240 : vector<16x1xf32> to vector<16x32xf32>
    %242 = arith.mulf %232, %241 : vector<16x32xf32>
    %243 = vector.broadcast %224 : vector<1x32xf32> to vector<16x32xf32>
    %244 = arith.mulf %242, %243 : vector<16x32xf32>
    %245 = vector.broadcast %226 : vector<1x32xf32> to vector<16x32xf32>
    %246 = arith.addf %244, %245 : vector<16x32xf32>
    %247 = arith.truncf %246 : vector<16x32xf32> to vector<16x32xbf16>
    %c1_111 = arith.constant 1 : index
    %c0_112 = arith.constant 0 : index
    %c0_113 = arith.constant 0 : index
    %248 = vector.load %arg5[%c1_111, %c0_112, %c0_113] : memref<2x32x96xbf16, #tpu.memory_space<vmem>>, vector<1x32x96xbf16>
    %249 = vector.shape_cast %248 : vector<1x32x96xbf16> to vector<32x96xbf16>
    %cst_114 = arith.constant dense<0.000000e+00> : vector<16x96xf32>
    %250 = tpu.matmul %247, %249, %cst_114 {dimension_numbers = #tpu.dot_dimension_numbers<[1], [0], [0], [1], [0, 0, 1, 1], [], []>} : vector<16x32xbf16>, vector<32x96xbf16>, vector<16x96xf32> -> vector<16x96xf32>
    %251 = vector.extract_strided_slice %250 {offsets = [0, 0], sizes = [16, 8], strides = [1, 1]} : vector<16x96xf32> to vector<16x8xf32>
    %252 = vector.extract_strided_slice %250 {offsets = [0, 32], sizes = [16, 8], strides = [1, 1]} : vector<16x96xf32> to vector<16x8xf32>
    %253 = vector.extract_strided_slice %250 {offsets = [0, 64], sizes = [16, 8], strides = [1, 1]} : vector<16x96xf32> to vector<16x8xf32>
    %254 = arith.truncf %251 : vector<16x8xf32> to vector<16x8xbf16>
    %255 = arith.truncf %252 : vector<16x8xf32> to vector<16x8xbf16>
    %cst_115 = arith.constant dense<0.000000e+00> : vector<16x16xf32>
    %256 = tpu.matmul %254, %255, %cst_115 {dimension_numbers = #tpu.dot_dimension_numbers<[1], [1], [0], [0], [0, 0, 1, 0], [], []>} : vector<16x8xbf16>, vector<16x8xbf16>, vector<16x16xf32> -> vector<16x16xf32>
    %cst_116 = arith.constant 0.353553385 : f32
    %257 = vector.broadcast %cst_116 : f32 to vector<16x16xf32>
    %258 = arith.mulf %256, %257 : vector<16x16xf32>
    %cst_117 = arith.constant dense<0xFF800000> : vector<16xf32>
    %259 = vector.multi_reduction <maximumf>, %258, %cst_117 [1] : vector<16x16xf32> to vector<16xf32>
    %260 = vector.shape_cast %259 : vector<16xf32> to vector<16x1xf32>
    %261 = vector.broadcast %260 : vector<16x1xf32> to vector<16x16xf32>
    %262 = arith.subf %258, %261 : vector<16x16xf32>
    %263 = math.exp %262 : vector<16x16xf32>
    %cst_118 = arith.constant dense<0.000000e+00> : vector<16xf32>
    %264 = vector.multi_reduction <add>, %263, %cst_118 [1] : vector<16x16xf32> to vector<16xf32>
    %265 = vector.shape_cast %264 : vector<16xf32> to vector<16x1xf32>
    %266 = tpu.reciprocal %265 {approx = true} : vector<16x1xf32> -> vector<16x1xf32>
    %267 = vector.broadcast %266 : vector<16x1xf32> to vector<16x16xf32>
    %268 = arith.mulf %263, %267 : vector<16x16xf32>
    %269 = arith.truncf %268 : vector<16x16xf32> to vector<16x16xbf16>
    %270 = arith.truncf %253 : vector<16x8xf32> to vector<16x8xbf16>
    %cst_119 = arith.constant dense<0.000000e+00> : vector<16x8xf32>
    %271 = tpu.matmul %269, %270, %cst_119 {dimension_numbers = #tpu.dot_dimension_numbers<[1], [0], [0], [1], [0, 0, 1, 1], [], []>} : vector<16x16xbf16>, vector<16x8xbf16>, vector<16x8xf32> -> vector<16x8xf32>
    %272 = arith.truncf %271 : vector<16x8xf32> to vector<16x8xbf16>
    %c1_120 = arith.constant 1 : index
    %c0_121 = arith.constant 0 : index
    %c0_122 = arith.constant 0 : index
    %c0_123 = arith.constant 0 : index
    %273 = vector.load %arg6[%c1_120, %c0_121, %c0_122, %c0_123] : memref<2x4x8x32xbf16, #tpu.memory_space<vmem>>, vector<1x1x8x32xbf16>
    %274 = vector.shape_cast %273 : vector<1x1x8x32xbf16> to vector<8x32xbf16>
    %cst_124 = arith.constant dense<0.000000e+00> : vector<16x32xf32>
    %275 = tpu.matmul %272, %274, %cst_124 {dimension_numbers = #tpu.dot_dimension_numbers<[1], [0], [0], [1], [0, 0, 1, 1], [], []>} : vector<16x8xbf16>, vector<8x32xbf16>, vector<16x32xf32> -> vector<16x32xf32>
    %276 = vector.extract_strided_slice %250 {offsets = [0, 8], sizes = [16, 8], strides = [1, 1]} : vector<16x96xf32> to vector<16x8xf32>
    %277 = vector.extract_strided_slice %250 {offsets = [0, 40], sizes = [16, 8], strides = [1, 1]} : vector<16x96xf32> to vector<16x8xf32>
    %278 = vector.extract_strided_slice %250 {offsets = [0, 72], sizes = [16, 8], strides = [1, 1]} : vector<16x96xf32> to vector<16x8xf32>
    %279 = arith.truncf %276 : vector<16x8xf32> to vector<16x8xbf16>
    %280 = arith.truncf %277 : vector<16x8xf32> to vector<16x8xbf16>
    %cst_125 = arith.constant dense<0.000000e+00> : vector<16x16xf32>
    %281 = tpu.matmul %279, %280, %cst_125 {dimension_numbers = #tpu.dot_dimension_numbers<[1], [1], [0], [0], [0, 0, 1, 0], [], []>} : vector<16x8xbf16>, vector<16x8xbf16>, vector<16x16xf32> -> vector<16x16xf32>
    %cst_126 = arith.constant 0.353553385 : f32
    %282 = vector.broadcast %cst_126 : f32 to vector<16x16xf32>
    %283 = arith.mulf %281, %282 : vector<16x16xf32>
    %cst_127 = arith.constant dense<0xFF800000> : vector<16xf32>
    %284 = vector.multi_reduction <maximumf>, %283, %cst_127 [1] : vector<16x16xf32> to vector<16xf32>
    %285 = vector.shape_cast %284 : vector<16xf32> to vector<16x1xf32>
    %286 = vector.broadcast %285 : vector<16x1xf32> to vector<16x16xf32>
    %287 = arith.subf %283, %286 : vector<16x16xf32>
    %288 = math.exp %287 : vector<16x16xf32>
    %cst_128 = arith.constant dense<0.000000e+00> : vector<16xf32>
    %289 = vector.multi_reduction <add>, %288, %cst_128 [1] : vector<16x16xf32> to vector<16xf32>
    %290 = vector.shape_cast %289 : vector<16xf32> to vector<16x1xf32>
    %291 = tpu.reciprocal %290 {approx = true} : vector<16x1xf32> -> vector<16x1xf32>
    %292 = vector.broadcast %291 : vector<16x1xf32> to vector<16x16xf32>
    %293 = arith.mulf %288, %292 : vector<16x16xf32>
    %294 = arith.truncf %293 : vector<16x16xf32> to vector<16x16xbf16>
    %295 = arith.truncf %278 : vector<16x8xf32> to vector<16x8xbf16>
    %cst_129 = arith.constant dense<0.000000e+00> : vector<16x8xf32>
    %296 = tpu.matmul %294, %295, %cst_129 {dimension_numbers = #tpu.dot_dimension_numbers<[1], [0], [0], [1], [0, 0, 1, 1], [], []>} : vector<16x16xbf16>, vector<16x8xbf16>, vector<16x8xf32> -> vector<16x8xf32>
    %297 = arith.truncf %296 : vector<16x8xf32> to vector<16x8xbf16>
    %c1_130 = arith.constant 1 : index
    %c1_131 = arith.constant 1 : index
    %c0_132 = arith.constant 0 : index
    %c0_133 = arith.constant 0 : index
    %298 = vector.load %arg6[%c1_130, %c1_131, %c0_132, %c0_133] : memref<2x4x8x32xbf16, #tpu.memory_space<vmem>>, vector<1x1x8x32xbf16>
    %299 = vector.shape_cast %298 : vector<1x1x8x32xbf16> to vector<8x32xbf16>
    %cst_134 = arith.constant dense<0.000000e+00> : vector<16x32xf32>
    %300 = tpu.matmul %297, %299, %cst_134 {dimension_numbers = #tpu.dot_dimension_numbers<[1], [0], [0], [1], [0, 0, 1, 1], [], []>} : vector<16x8xbf16>, vector<8x32xbf16>, vector<16x32xf32> -> vector<16x32xf32>
    %301 = arith.addf %275, %300 : vector<16x32xf32>
    %302 = vector.extract_strided_slice %250 {offsets = [0, 16], sizes = [16, 8], strides = [1, 1]} : vector<16x96xf32> to vector<16x8xf32>
    %303 = vector.extract_strided_slice %250 {offsets = [0, 48], sizes = [16, 8], strides = [1, 1]} : vector<16x96xf32> to vector<16x8xf32>
    %304 = vector.extract_strided_slice %250 {offsets = [0, 80], sizes = [16, 8], strides = [1, 1]} : vector<16x96xf32> to vector<16x8xf32>
    %305 = arith.truncf %302 : vector<16x8xf32> to vector<16x8xbf16>
    %306 = arith.truncf %303 : vector<16x8xf32> to vector<16x8xbf16>
    %cst_135 = arith.constant dense<0.000000e+00> : vector<16x16xf32>
    %307 = tpu.matmul %305, %306, %cst_135 {dimension_numbers = #tpu.dot_dimension_numbers<[1], [1], [0], [0], [0, 0, 1, 0], [], []>} : vector<16x8xbf16>, vector<16x8xbf16>, vector<16x16xf32> -> vector<16x16xf32>
    %cst_136 = arith.constant 0.353553385 : f32
    %308 = vector.broadcast %cst_136 : f32 to vector<16x16xf32>
    %309 = arith.mulf %307, %308 : vector<16x16xf32>
    %cst_137 = arith.constant dense<0xFF800000> : vector<16xf32>
    %310 = vector.multi_reduction <maximumf>, %309, %cst_137 [1] : vector<16x16xf32> to vector<16xf32>
    %311 = vector.shape_cast %310 : vector<16xf32> to vector<16x1xf32>
    %312 = vector.broadcast %311 : vector<16x1xf32> to vector<16x16xf32>
    %313 = arith.subf %309, %312 : vector<16x16xf32>
    %314 = math.exp %313 : vector<16x16xf32>
    %cst_138 = arith.constant dense<0.000000e+00> : vector<16xf32>
    %315 = vector.multi_reduction <add>, %314, %cst_138 [1] : vector<16x16xf32> to vector<16xf32>
    %316 = vector.shape_cast %315 : vector<16xf32> to vector<16x1xf32>
    %317 = tpu.reciprocal %316 {approx = true} : vector<16x1xf32> -> vector<16x1xf32>
    %318 = vector.broadcast %317 : vector<16x1xf32> to vector<16x16xf32>
    %319 = arith.mulf %314, %318 : vector<16x16xf32>
    %320 = arith.truncf %319 : vector<16x16xf32> to vector<16x16xbf16>
    %321 = arith.truncf %304 : vector<16x8xf32> to vector<16x8xbf16>
    %cst_139 = arith.constant dense<0.000000e+00> : vector<16x8xf32>
    %322 = tpu.matmul %320, %321, %cst_139 {dimension_numbers = #tpu.dot_dimension_numbers<[1], [0], [0], [1], [0, 0, 1, 1], [], []>} : vector<16x16xbf16>, vector<16x8xbf16>, vector<16x8xf32> -> vector<16x8xf32>
    %323 = arith.truncf %322 : vector<16x8xf32> to vector<16x8xbf16>
    %c1_140 = arith.constant 1 : index
    %c2_141 = arith.constant 2 : index
    %c0_142 = arith.constant 0 : index
    %c0_143 = arith.constant 0 : index
    %324 = vector.load %arg6[%c1_140, %c2_141, %c0_142, %c0_143] : memref<2x4x8x32xbf16, #tpu.memory_space<vmem>>, vector<1x1x8x32xbf16>
    %325 = vector.shape_cast %324 : vector<1x1x8x32xbf16> to vector<8x32xbf16>
    %cst_144 = arith.constant dense<0.000000e+00> : vector<16x32xf32>
    %326 = tpu.matmul %323, %325, %cst_144 {dimension_numbers = #tpu.dot_dimension_numbers<[1], [0], [0], [1], [0, 0, 1, 1], [], []>} : vector<16x8xbf16>, vector<8x32xbf16>, vector<16x32xf32> -> vector<16x32xf32>
    %327 = arith.addf %301, %326 : vector<16x32xf32>
    %328 = vector.extract_strided_slice %250 {offsets = [0, 24], sizes = [16, 8], strides = [1, 1]} : vector<16x96xf32> to vector<16x8xf32>
    %329 = vector.extract_strided_slice %250 {offsets = [0, 56], sizes = [16, 8], strides = [1, 1]} : vector<16x96xf32> to vector<16x8xf32>
    %330 = vector.extract_strided_slice %250 {offsets = [0, 88], sizes = [16, 8], strides = [1, 1]} : vector<16x96xf32> to vector<16x8xf32>
    %331 = arith.truncf %328 : vector<16x8xf32> to vector<16x8xbf16>
    %332 = arith.truncf %329 : vector<16x8xf32> to vector<16x8xbf16>
    %cst_145 = arith.constant dense<0.000000e+00> : vector<16x16xf32>
    %333 = tpu.matmul %331, %332, %cst_145 {dimension_numbers = #tpu.dot_dimension_numbers<[1], [1], [0], [0], [0, 0, 1, 0], [], []>} : vector<16x8xbf16>, vector<16x8xbf16>, vector<16x16xf32> -> vector<16x16xf32>
    %cst_146 = arith.constant 0.353553385 : f32
    %334 = vector.broadcast %cst_146 : f32 to vector<16x16xf32>
    %335 = arith.mulf %333, %334 : vector<16x16xf32>
    %cst_147 = arith.constant dense<0xFF800000> : vector<16xf32>
    %336 = vector.multi_reduction <maximumf>, %335, %cst_147 [1] : vector<16x16xf32> to vector<16xf32>
    %337 = vector.shape_cast %336 : vector<16xf32> to vector<16x1xf32>
    %338 = vector.broadcast %337 : vector<16x1xf32> to vector<16x16xf32>
    %339 = arith.subf %335, %338 : vector<16x16xf32>
    %340 = math.exp %339 : vector<16x16xf32>
    %cst_148 = arith.constant dense<0.000000e+00> : vector<16xf32>
    %341 = vector.multi_reduction <add>, %340, %cst_148 [1] : vector<16x16xf32> to vector<16xf32>
    %342 = vector.shape_cast %341 : vector<16xf32> to vector<16x1xf32>
    %343 = tpu.reciprocal %342 {approx = true} : vector<16x1xf32> -> vector<16x1xf32>
    %344 = vector.broadcast %343 : vector<16x1xf32> to vector<16x16xf32>
    %345 = arith.mulf %340, %344 : vector<16x16xf32>
    %346 = arith.truncf %345 : vector<16x16xf32> to vector<16x16xbf16>
    %347 = arith.truncf %330 : vector<16x8xf32> to vector<16x8xbf16>
    %cst_149 = arith.constant dense<0.000000e+00> : vector<16x8xf32>
    %348 = tpu.matmul %346, %347, %cst_149 {dimension_numbers = #tpu.dot_dimension_numbers<[1], [0], [0], [1], [0, 0, 1, 1], [], []>} : vector<16x16xbf16>, vector<16x8xbf16>, vector<16x8xf32> -> vector<16x8xf32>
    %349 = arith.truncf %348 : vector<16x8xf32> to vector<16x8xbf16>
    %c1_150 = arith.constant 1 : index
    %c3_151 = arith.constant 3 : index
    %c0_152 = arith.constant 0 : index
    %c0_153 = arith.constant 0 : index
    %350 = vector.load %arg6[%c1_150, %c3_151, %c0_152, %c0_153] : memref<2x4x8x32xbf16, #tpu.memory_space<vmem>>, vector<1x1x8x32xbf16>
    %351 = vector.shape_cast %350 : vector<1x1x8x32xbf16> to vector<8x32xbf16>
    %cst_154 = arith.constant dense<0.000000e+00> : vector<16x32xf32>
    %352 = tpu.matmul %349, %351, %cst_154 {dimension_numbers = #tpu.dot_dimension_numbers<[1], [0], [0], [1], [0, 0, 1, 1], [], []>} : vector<16x8xbf16>, vector<8x32xbf16>, vector<16x32xf32> -> vector<16x32xf32>
    %353 = arith.addf %327, %352 : vector<16x32xf32>
    %354 = arith.addf %222, %353 : vector<16x32xf32>
    %c1_155 = arith.constant 1 : index
    %c0_156 = arith.constant 0 : index
    %c0_157 = arith.constant 0 : index
    %355 = vector.load %arg7[%c1_155, %c0_156, %c0_157] : memref<2x1x32xf32, #tpu.memory_space<vmem>>, vector<1x1x32xf32>
    %356 = vector.shape_cast %355 : vector<1x1x32xf32> to vector<1x32xf32>
    %357 = vector.broadcast %356 : vector<1x32xf32> to vector<16x32xf32>
    %358 = arith.addf %354, %357 : vector<16x32xf32>
    %c1_158 = arith.constant 1 : index
    %c0_159 = arith.constant 0 : index
    %c0_160 = arith.constant 0 : index
    %359 = vector.load %arg8[%c1_158, %c0_159, %c0_160] : memref<2x1x32xf32, #tpu.memory_space<vmem>>, vector<1x1x32xf32>
    %360 = vector.shape_cast %359 : vector<1x1x32xf32> to vector<1x32xf32>
    %c1_161 = arith.constant 1 : index
    %c0_162 = arith.constant 0 : index
    %c0_163 = arith.constant 0 : index
    %361 = vector.load %arg9[%c1_161, %c0_162, %c0_163] : memref<2x1x32xf32, #tpu.memory_space<vmem>>, vector<1x1x32xf32>
    %362 = vector.shape_cast %361 : vector<1x1x32xf32> to vector<1x32xf32>
    %cst_164 = arith.constant dense<0.000000e+00> : vector<16xf32>
    %363 = vector.multi_reduction <add>, %358, %cst_164 [1] : vector<16x32xf32> to vector<16xf32>
    %364 = vector.shape_cast %363 : vector<16xf32> to vector<16x1xf32>
    %cst_165 = arith.constant 3.200000e+01 : f32
    %365 = vector.broadcast %cst_165 : f32 to vector<16x1xf32>
    %366 = arith.divf %364, %365 : vector<16x1xf32>
    %367 = vector.broadcast %366 : vector<16x1xf32> to vector<16x32xf32>
    %368 = arith.subf %358, %367 : vector<16x32xf32>
    %369 = arith.mulf %368, %368 : vector<16x32xf32>
    %cst_166 = arith.constant dense<0.000000e+00> : vector<16xf32>
    %370 = vector.multi_reduction <add>, %369, %cst_166 [1] : vector<16x32xf32> to vector<16xf32>
    %371 = vector.shape_cast %370 : vector<16xf32> to vector<16x1xf32>
    %cst_167 = arith.constant 3.200000e+01 : f32
    %372 = vector.broadcast %cst_167 : f32 to vector<16x1xf32>
    %373 = arith.divf %371, %372 : vector<16x1xf32>
    %cst_168 = arith.constant 9.99999974E-6 : f32
    %374 = vector.broadcast %cst_168 : f32 to vector<16x1xf32>
    %375 = arith.addf %373, %374 : vector<16x1xf32>
    %376 = math.rsqrt %375 : vector<16x1xf32>
    %377 = vector.broadcast %376 : vector<16x1xf32> to vector<16x32xf32>
    %378 = arith.mulf %368, %377 : vector<16x32xf32>
    %379 = vector.broadcast %360 : vector<1x32xf32> to vector<16x32xf32>
    %380 = arith.mulf %378, %379 : vector<16x32xf32>
    %381 = vector.broadcast %362 : vector<1x32xf32> to vector<16x32xf32>
    %382 = arith.addf %380, %381 : vector<16x32xf32>
    %383 = arith.truncf %382 : vector<16x32xf32> to vector<16x32xbf16>
    %c1_169 = arith.constant 1 : index
    %c0_170 = arith.constant 0 : index
    %c0_171 = arith.constant 0 : index
    %384 = vector.load %arg10[%c1_169, %c0_170, %c0_171] : memref<2x32x128xbf16, #tpu.memory_space<vmem>>, vector<1x32x128xbf16>
    %385 = vector.shape_cast %384 : vector<1x32x128xbf16> to vector<32x128xbf16>
    %cst_172 = arith.constant dense<0.000000e+00> : vector<16x128xf32>
    %386 = tpu.matmul %383, %385, %cst_172 {dimension_numbers = #tpu.dot_dimension_numbers<[1], [0], [0], [1], [0, 0, 1, 1], [], []>} : vector<16x32xbf16>, vector<32x128xbf16>, vector<16x128xf32> -> vector<16x128xf32>
    %c1_173 = arith.constant 1 : index
    %c0_174 = arith.constant 0 : index
    %c0_175 = arith.constant 0 : index
    %387 = vector.load %arg11[%c1_173, %c0_174, %c0_175] : memref<2x1x128xf32, #tpu.memory_space<vmem>>, vector<1x1x128xf32>
    %388 = vector.shape_cast %387 : vector<1x1x128xf32> to vector<1x128xf32>
    %389 = vector.broadcast %388 : vector<1x128xf32> to vector<16x128xf32>
    %390 = arith.addf %386, %389 : vector<16x128xf32>
    %cst_176 = arith.constant 5.000000e-01 : f32
    %391 = vector.broadcast %cst_176 : f32 to vector<16x128xf32>
    %392 = arith.mulf %391, %390 : vector<16x128xf32>
    %cst_177 = arith.constant 0.707106769 : f32
    %393 = vector.broadcast %cst_177 : f32 to vector<16x128xf32>
    %394 = arith.mulf %390, %393 : vector<16x128xf32>
    %cst_178 = arith.constant 0.000000e+00 : f32
    %395 = vector.broadcast %cst_178 : f32 to vector<16x128xf32>
    %396 = arith.cmpf oge, %394, %395 : vector<16x128xf32>
    %cst_179 = arith.constant 1.000000e+00 : f32
    %cst_180 = arith.constant -1.000000e+00 : f32
    %397 = vector.broadcast %cst_179 : f32 to vector<16x128xf32>
    %398 = vector.broadcast %cst_180 : f32 to vector<16x128xf32>
    %399 = arith.select %396, %397, %398 : vector<16x128xi1>, vector<16x128xf32>
    %400 = math.absf %394 : vector<16x128xf32>
    %cst_181 = arith.constant 0.327591091 : f32
    %401 = vector.broadcast %cst_181 : f32 to vector<16x128xf32>
    %402 = arith.mulf %401, %400 : vector<16x128xf32>
    %cst_182 = arith.constant 1.000000e+00 : f32
    %403 = vector.broadcast %cst_182 : f32 to vector<16x128xf32>
    %404 = arith.addf %403, %402 : vector<16x128xf32>
    %cst_183 = arith.constant 1.000000e+00 : f32
    %405 = vector.broadcast %cst_183 : f32 to vector<16x128xf32>
    %406 = arith.divf %405, %404 : vector<16x128xf32>
    %cst_184 = arith.constant 1.06140542 : f32
    %407 = vector.broadcast %cst_184 : f32 to vector<16x128xf32>
    %408 = arith.mulf %407, %406 : vector<16x128xf32>
    %cst_185 = arith.constant -1.45315206 : f32
    %409 = vector.broadcast %cst_185 : f32 to vector<16x128xf32>
    %410 = arith.addf %408, %409 : vector<16x128xf32>
    %411 = arith.mulf %410, %406 : vector<16x128xf32>
    %cst_186 = arith.constant 1.42141378 : f32
    %412 = vector.broadcast %cst_186 : f32 to vector<16x128xf32>
    %413 = arith.addf %411, %412 : vector<16x128xf32>
    %414 = arith.mulf %413, %406 : vector<16x128xf32>
    %cst_187 = arith.constant -0.284496725 : f32
    %415 = vector.broadcast %cst_187 : f32 to vector<16x128xf32>
    %416 = arith.addf %414, %415 : vector<16x128xf32>
    %417 = arith.mulf %416, %406 : vector<16x128xf32>
    %cst_188 = arith.constant 0.254829586 : f32
    %418 = vector.broadcast %cst_188 : f32 to vector<16x128xf32>
    %419 = arith.addf %417, %418 : vector<16x128xf32>
    %420 = arith.mulf %419, %406 : vector<16x128xf32>
    %421 = arith.mulf %400, %400 : vector<16x128xf32>
    %cst_189 = arith.constant 0.000000e+00 : f32
    %422 = vector.broadcast %cst_189 : f32 to vector<16x128xf32>
    %423 = arith.subf %422, %421 : vector<16x128xf32>
    %424 = math.exp %423 : vector<16x128xf32>
    %425 = arith.mulf %420, %424 : vector<16x128xf32>
    %cst_190 = arith.constant 1.000000e+00 : f32
    %426 = vector.broadcast %cst_190 : f32 to vector<16x128xf32>
    %427 = arith.subf %426, %425 : vector<16x128xf32>
    %428 = arith.mulf %399, %427 : vector<16x128xf32>
    %cst_191 = arith.constant 1.000000e+00 : f32
    %429 = vector.broadcast %cst_191 : f32 to vector<16x128xf32>
    %430 = arith.addf %429, %428 : vector<16x128xf32>
    %431 = arith.mulf %392, %430 : vector<16x128xf32>
    %432 = arith.truncf %431 : vector<16x128xf32> to vector<16x128xbf16>
    %c1_192 = arith.constant 1 : index
    %c0_193 = arith.constant 0 : index
    %c0_194 = arith.constant 0 : index
    %433 = vector.load %arg12[%c1_192, %c0_193, %c0_194] : memref<2x128x32xbf16, #tpu.memory_space<vmem>>, vector<1x128x32xbf16>
    %434 = vector.shape_cast %433 : vector<1x128x32xbf16> to vector<128x32xbf16>
    %cst_195 = arith.constant dense<0.000000e+00> : vector<16x32xf32>
    %435 = tpu.matmul %432, %434, %cst_195 {dimension_numbers = #tpu.dot_dimension_numbers<[1], [0], [0], [1], [0, 0, 1, 1], [], []>} : vector<16x128xbf16>, vector<128x32xbf16>, vector<16x32xf32> -> vector<16x32xf32>
    %436 = arith.addf %382, %435 : vector<16x32xf32>
    %c1_196 = arith.constant 1 : index
    %c0_197 = arith.constant 0 : index
    %c0_198 = arith.constant 0 : index
    %437 = vector.load %arg13[%c1_196, %c0_197, %c0_198] : memref<2x1x32xf32, #tpu.memory_space<vmem>>, vector<1x1x32xf32>
    %438 = vector.shape_cast %437 : vector<1x1x32xf32> to vector<1x32xf32>
    %439 = vector.broadcast %438 : vector<1x32xf32> to vector<16x32xf32>
    %440 = arith.addf %436, %439 : vector<16x32xf32>
    %c0_199 = arith.constant 0 : index
    %c0_200 = arith.constant 0 : index
    %441 = vector.load %arg14[%c0_199, %c0_200] : memref<1x32xf32, #tpu.memory_space<vmem>>, vector<1x32xf32>
    %c0_201 = arith.constant 0 : index
    %c0_202 = arith.constant 0 : index
    %442 = vector.load %arg15[%c0_201, %c0_202] : memref<1x32xf32, #tpu.memory_space<vmem>>, vector<1x32xf32>
    %cst_203 = arith.constant dense<0.000000e+00> : vector<16xf32>
    %443 = vector.multi_reduction <add>, %440, %cst_203 [1] : vector<16x32xf32> to vector<16xf32>
    %444 = vector.shape_cast %443 : vector<16xf32> to vector<16x1xf32>
    %cst_204 = arith.constant 3.200000e+01 : f32
    %445 = vector.broadcast %cst_204 : f32 to vector<16x1xf32>
    %446 = arith.divf %444, %445 : vector<16x1xf32>
    %447 = vector.broadcast %446 : vector<16x1xf32> to vector<16x32xf32>
    %448 = arith.subf %440, %447 : vector<16x32xf32>
    %449 = arith.mulf %448, %448 : vector<16x32xf32>
    %cst_205 = arith.constant dense<0.000000e+00> : vector<16xf32>
    %450 = vector.multi_reduction <add>, %449, %cst_205 [1] : vector<16x32xf32> to vector<16xf32>
    %451 = vector.shape_cast %450 : vector<16xf32> to vector<16x1xf32>
    %cst_206 = arith.constant 3.200000e+01 : f32
    %452 = vector.broadcast %cst_206 : f32 to vector<16x1xf32>
    %453 = arith.divf %451, %452 : vector<16x1xf32>
    %cst_207 = arith.constant 9.99999974E-6 : f32
    %454 = vector.broadcast %cst_207 : f32 to vector<16x1xf32>
    %455 = arith.addf %453, %454 : vector<16x1xf32>
    %456 = math.rsqrt %455 : vector<16x1xf32>
    %457 = vector.broadcast %456 : vector<16x1xf32> to vector<16x32xf32>
    %458 = arith.mulf %448, %457 : vector<16x32xf32>
    %459 = vector.broadcast %441 : vector<1x32xf32> to vector<16x32xf32>
    %460 = arith.mulf %458, %459 : vector<16x32xf32>
    %461 = vector.broadcast %442 : vector<1x32xf32> to vector<16x32xf32>
    %462 = arith.addf %460, %461 : vector<16x32xf32>
    %c0_208 = arith.constant 0 : index
    %c0_209 = arith.constant 0 : index
    %463 = vector.load %arg16[%c0_208, %c0_209] : memref<32x1xf32, #tpu.memory_space<vmem>>, vector<32x1xf32>
    %cst_210 = arith.constant dense<0.000000e+00> : vector<16x1xf32>
    %464 = tpu.matmul %462, %463, %cst_210 {dimension_numbers = #tpu.dot_dimension_numbers<[1], [0], [0], [1], [0, 0, 1, 1], [], []>} : vector<16x32xf32>, vector<32x1xf32>, vector<16x1xf32> -> vector<16x1xf32>
    %c0_211 = arith.constant 0 : index
    %c0_212 = arith.constant 0 : index
    %465 = vector.load %arg17[%c0_211, %c0_212] : memref<1x1xf32, #tpu.memory_space<vmem>>, vector<1x1xf32>
    %466 = vector.broadcast %465 : vector<1x1xf32> to vector<16x1xf32>
    %467 = arith.addf %464, %466 : vector<16x1xf32>
    %cst_213 = arith.constant dense<0xFF800000> : vector<1xf32>
    %468 = vector.multi_reduction <maximumf>, %467, %cst_213 [0] : vector<16x1xf32> to vector<1xf32>
    %469 = vector.shape_cast %468 : vector<1xf32> to vector<1x1xf32>
    %470 = vector.broadcast %469 : vector<1x1xf32> to vector<16x1xf32>
    %471 = arith.subf %467, %470 : vector<16x1xf32>
    %472 = math.exp %471 : vector<16x1xf32>
    %cst_214 = arith.constant dense<0.000000e+00> : vector<1xf32>
    %473 = vector.multi_reduction <add>, %472, %cst_214 [0] : vector<16x1xf32> to vector<1xf32>
    %474 = vector.shape_cast %473 : vector<1xf32> to vector<1x1xf32>
    %475 = tpu.reciprocal %474 {approx = true} : vector<1x1xf32> -> vector<1x1xf32>
    %476 = vector.broadcast %475 : vector<1x1xf32> to vector<16x1xf32>
    %477 = arith.mulf %472, %476 : vector<16x1xf32>
    %478 = vector.broadcast %477 : vector<16x1xf32> to vector<16x32xf32>
    %479 = arith.mulf %478, %462 : vector<16x32xf32>
    %cst_215 = arith.constant dense<0.000000e+00> : vector<32xf32>
    %480 = vector.multi_reduction <add>, %479, %cst_215 [0] : vector<16x32xf32> to vector<32xf32>
    %481 = vector.shape_cast %480 : vector<32xf32> to vector<1x32xf32>
    %c0_216 = arith.constant 0 : index
    %c0_217 = arith.constant 0 : index
    %482 = vector.load %arg18[%c0_216, %c0_217] : memref<32x10xf32, #tpu.memory_space<vmem>>, vector<32x10xf32>
    %cst_218 = arith.constant dense<0.000000e+00> : vector<1x10xf32>
    %483 = tpu.matmul %481, %482, %cst_218 {dimension_numbers = #tpu.dot_dimension_numbers<[1], [0], [0], [1], [0, 0, 1, 1], [], []>} : vector<1x32xf32>, vector<32x10xf32>, vector<1x10xf32> -> vector<1x10xf32>
    %c0_219 = arith.constant 0 : index
    %c0_220 = arith.constant 0 : index
    %484 = vector.load %arg19[%c0_219, %c0_220] : memref<1x10xf32, #tpu.memory_space<vmem>>, vector<1x10xf32>
    %485 = arith.addf %483, %484 : vector<1x10xf32>
    %c0_221 = arith.constant 0 : index
    %c0_222 = arith.constant 0 : index
    %c0_223 = arith.constant 0 : index
    %486 = vector.load %arg20[%c0_221, %c0_222, %c0_223] : memref<1x1x10xf32, #tpu.memory_space<vmem>>, vector<1x1x10xf32>
    %487 = vector.shape_cast %486 : vector<1x1x10xf32> to vector<1x10xf32>
    %488 = vector.shape_cast %485 : vector<1x10xf32> to vector<1x1x10xf32>
    tpu.vector_store %arg20[%c0_221, %c0_222, %c0_223], %488 {strides = array<i32>} : memref<1x1x10xf32, #tpu.memory_space<vmem>>, vector<1x1x10xf32>,
    return
  }
  func.func @transform_0(%arg0: i32) -> (i32, i32, i32) {
    %c0_i32 = arith.constant 0 : i32
    %c0_i32_0 = arith.constant 0 : i32
    %c0_i32_1 = arith.constant 0 : i32
    return %arg0, %c0_i32, %c0_i32_0 : i32, i32, i32
  }
  func.func @transform_1(%arg0: i32) -> (i32, i32, i32) {
    %c0_i32 = arith.constant 0 : i32
    %c0_i32_0 = arith.constant 0 : i32
    %c0_i32_1 = arith.constant 0 : i32
    %c0_i32_2 = arith.constant 0 : i32
    return %c0_i32, %c0_i32_0, %c0_i32_1 : i32, i32, i32
  }
  func.func @transform_2(%arg0: i32) -> (i32, i32, i32) {
    %c0_i32 = arith.constant 0 : i32
    %c0_i32_0 = arith.constant 0 : i32
    %c0_i32_1 = arith.constant 0 : i32
    %c0_i32_2 = arith.constant 0 : i32
    return %c0_i32, %c0_i32_0, %c0_i32_1 : i32, i32, i32
  }
  func.func @transform_3(%arg0: i32) -> (i32, i32, i32) {
    %c0_i32 = arith.constant 0 : i32
    %c0_i32_0 = arith.constant 0 : i32
    %c0_i32_1 = arith.constant 0 : i32
    %c0_i32_2 = arith.constant 0 : i32
    return %c0_i32, %c0_i32_0, %c0_i32_1 : i32, i32, i32
  }
  func.func @transform_4(%arg0: i32) -> (i32, i32, i32) {
    %c0_i32 = arith.constant 0 : i32
    %c0_i32_0 = arith.constant 0 : i32
    %c0_i32_1 = arith.constant 0 : i32
    %c0_i32_2 = arith.constant 0 : i32
    return %c0_i32, %c0_i32_0, %c0_i32_1 : i32, i32, i32
  }
  func.func @transform_5(%arg0: i32) -> (i32, i32, i32, i32) {
    %c0_i32 = arith.constant 0 : i32
    %c0_i32_0 = arith.constant 0 : i32
    %c0_i32_1 = arith.constant 0 : i32
    %c0_i32_2 = arith.constant 0 : i32
    %c0_i32_3 = arith.constant 0 : i32
    return %c0_i32, %c0_i32_0, %c0_i32_1, %c0_i32_2 : i32, i32, i32, i32
  }
  func.func @transform_6(%arg0: i32) -> (i32, i32, i32) {
    %c0_i32 = arith.constant 0 : i32
    %c0_i32_0 = arith.constant 0 : i32
    %c0_i32_1 = arith.constant 0 : i32
    %c0_i32_2 = arith.constant 0 : i32
    return %c0_i32, %c0_i32_0, %c0_i32_1 : i32, i32, i32
  }
  func.func @transform_7(%arg0: i32) -> (i32, i32, i32) {
    %c0_i32 = arith.constant 0 : i32
    %c0_i32_0 = arith.constant 0 : i32
    %c0_i32_1 = arith.constant 0 : i32
    %c0_i32_2 = arith.constant 0 : i32
    return %c0_i32, %c0_i32_0, %c0_i32_1 : i32, i32, i32
  }
  func.func @transform_8(%arg0: i32) -> (i32, i32, i32) {
    %c0_i32 = arith.constant 0 : i32
    %c0_i32_0 = arith.constant 0 : i32
    %c0_i32_1 = arith.constant 0 : i32
    %c0_i32_2 = arith.constant 0 : i32
    return %c0_i32, %c0_i32_0, %c0_i32_1 : i32, i32, i32
  }
  func.func @transform_9(%arg0: i32) -> (i32, i32, i32) {
    %c0_i32 = arith.constant 0 : i32
    %c0_i32_0 = arith.constant 0 : i32
    %c0_i32_1 = arith.constant 0 : i32
    %c0_i32_2 = arith.constant 0 : i32
    return %c0_i32, %c0_i32_0, %c0_i32_1 : i32, i32, i32
  }
  func.func @transform_10(%arg0: i32) -> (i32, i32, i32) {
    %c0_i32 = arith.constant 0 : i32
    %c0_i32_0 = arith.constant 0 : i32
    %c0_i32_1 = arith.constant 0 : i32
    %c0_i32_2 = arith.constant 0 : i32
    return %c0_i32, %c0_i32_0, %c0_i32_1 : i32, i32, i32
  }
  func.func @transform_11(%arg0: i32) -> (i32, i32, i32) {
    %c0_i32 = arith.constant 0 : i32
    %c0_i32_0 = arith.constant 0 : i32
    %c0_i32_1 = arith.constant 0 : i32
    %c0_i32_2 = arith.constant 0 : i32
    return %c0_i32, %c0_i32_0, %c0_i32_1 : i32, i32, i32
  }
  func.func @transform_12(%arg0: i32) -> (i32, i32, i32) {
    %c0_i32 = arith.constant 0 : i32
    %c0_i32_0 = arith.constant 0 : i32
    %c0_i32_1 = arith.constant 0 : i32
    %c0_i32_2 = arith.constant 0 : i32
    return %c0_i32, %c0_i32_0, %c0_i32_1 : i32, i32, i32
  }
  func.func @transform_13(%arg0: i32) -> (i32, i32) {
    %c0_i32 = arith.constant 0 : i32
    %c0_i32_0 = arith.constant 0 : i32
    %c0_i32_1 = arith.constant 0 : i32
    return %c0_i32, %c0_i32_0 : i32, i32
  }
  func.func @transform_14(%arg0: i32) -> (i32, i32) {
    %c0_i32 = arith.constant 0 : i32
    %c0_i32_0 = arith.constant 0 : i32
    %c0_i32_1 = arith.constant 0 : i32
    return %c0_i32, %c0_i32_0 : i32, i32
  }
  func.func @transform_15(%arg0: i32) -> (i32, i32) {
    %c0_i32 = arith.constant 0 : i32
    %c0_i32_0 = arith.constant 0 : i32
    %c0_i32_1 = arith.constant 0 : i32
    return %c0_i32, %c0_i32_0 : i32, i32
  }
  func.func @transform_16(%arg0: i32) -> (i32, i32) {
    %c0_i32 = arith.constant 0 : i32
    %c0_i32_0 = arith.constant 0 : i32
    %c0_i32_1 = arith.constant 0 : i32
    return %c0_i32, %c0_i32_0 : i32, i32
  }
  func.func @transform_17(%arg0: i32) -> (i32, i32) {
    %c0_i32 = arith.constant 0 : i32
    %c0_i32_0 = arith.constant 0 : i32
    %c0_i32_1 = arith.constant 0 : i32
    return %c0_i32, %c0_i32_0 : i32, i32
  }
  func.func @transform_18(%arg0: i32) -> (i32, i32) {
    %c0_i32 = arith.constant 0 : i32
    %c0_i32_0 = arith.constant 0 : i32
    %c0_i32_1 = arith.constant 0 : i32
    return %c0_i32, %c0_i32_0 : i32, i32
  }
  func.func @transform_19(%arg0: i32) -> (i32, i32, i32) {
    %c0_i32 = arith.constant 0 : i32
    %c0_i32_0 = arith.constant 0 : i32
    %c0_i32_1 = arith.constant 0 : i32
    return %arg0, %c0_i32, %c0_i32_0 : i32, i32, i32
  }
}

</mosaic_0001>

<llo_original>
// kernel: _lambda_.2
$region0: #{_lambda_.2}
  #allocation0 [shape = 'u32[]', space=smem, size = 0x4, offset = 0x4, fixed_abs, tag = 'smem constant byte address 0x4 - core index']
  #allocation1 [shape = 'u32[72,128]{1,0:T(1,128)}', space=vmem, size = 0x9000, scoped, tag = 'internal scratch']
  %s0 = inlined_call_operand.vmem [shape: bf16[128,160], index: 0, kind: input, shape index: {}]
  %s1 = inlined_call_operand.vmem [shape: bf16[160,32], index: 1, kind: input, shape index: {}]
  %s2 = inlined_call_operand.vmem [shape: f32[128,32], index: 2, kind: output, shape index: {}]
  %s3 = sld [smem:[#allocation0]]
  $region41: #{_lambda_.2} parent=0
    _
  %s5 = ssub.s32 1, %s3
  %s6 = scalar_select 0, %s5, %s3
  loop: start=0, step=1, limit=4
  $region2: #{_lambda_.2} parent=0 // loop_pre_header
    _
  $region3: #{_lambda_.2} parent=0 // loop_header
    %s8 = sphi 0, %s12
    %p9 = scmp.ge.s32.totalorder %s8, 4
    %s18 = sphi 0, %s20
    %s21 = sphi 0, %s18
    %s22 = sphi 0, %s21
    %s38 = sphi 0, %s22
    %s42 = sphi 0, %s42
    %s44 = sphi 0, %s42
    %s45 = sphi 0, %s44
    %s59 = sphi 0, %s45
    %s65 = sphi 0, %s67
    %s68 = sphi 0, %s65
    %s69 = sphi 0, %s68
    %s85 = sphi 0, %s69
  $region4: #{_lambda_.2} parent=0 // loop_header_branch
    %11 = sbr.rel (%p9) target = $region8
  $region5: #{_lambda_.2} parent=0 // loop_body
    %s13 = ssub.s32 %s8, 1
    %s14 = ssub.s32 %s8, 2
    %s15 = sadd.s32 %s8, 1
    %s16 = ssub.s32 %s8, %s15
    %p17 = scmp.eq.s32.totalorder %s16, 0
    %s19 = sadd.s32 %s18, 1
    %s20 = scalar_select %p17, %s18, %s19
    %p23 = pneg %p17
    %p24 = scmp.eq.s32.totalorder %s8, 1
    %p25 = por %p23, %p24
    %p26 = scmp.ne.s32.totalorder %s18, %s21
    %p27 = scmp.eq.s32.totalorder %s8, 0
    %p28 = por %p26, %p27
    %p29 = scmp.ne.s32.totalorder %s18, %s21
    %p30 = scmp.eq.s32.totalorder %s13, 1
    %p31 = por %p29, %p30
    %p32 = scmp.ne.s32.totalorder %s21, %s22
    %p33 = scmp.eq.s32.totalorder %s13, 0
    %p34 = por %p32, %p33
    %p35 = scmp.ne.s32.totalorder %s21, %s22
    %p36 = scmp.eq.s32.totalorder %s14, 1
    %p37 = por %p35, %p36
    %p39 = scmp.ne.s32.totalorder %s22, %s38
    %p40 = scmp.eq.s32.totalorder %s14, 0
    %p41 = por %p39, %p40
    %s43 = sadd.s32 %s42, 1
    %p46 = scmp.eq.s32.totalorder %s8, 1
    %p47 = scmp.ne.s32.totalorder %s42, %s44
    %p48 = scmp.eq.s32.totalorder %s8, 0
    %p49 = por %p47, %p48
    %p50 = scmp.ne.s32.totalorder %s42, %s44
    %p51 = scmp.eq.s32.totalorder %s13, 1
    %p52 = por %p50, %p51
    %p53 = scmp.ne.s32.totalorder %s44, %s45
    %p54 = scmp.eq.s32.totalorder %s13, 0
    %p55 = por %p53, %p54
    %p56 = scmp.ne.s32.totalorder %s44, %s45
    %p57 = scmp.eq.s32.totalorder %s14, 1
    %p58 = por %p56, %p57
    %p60 = scmp.ne.s32.totalorder %s45, %s59
    %p61 = scmp.eq.s32.totalorder %s14, 0
    %p62 = por %p60, %p61
    %s63 = ssub.s32 %s8, %s15
    %p64 = scmp.eq.s32.totalorder %s63, 0
    %s66 = sadd.s32 %s65, 1
    %s67 = scalar_select %p64, %s65, %s66
    %p70 = pneg %p64
    %p71 = scmp.eq.s32.totalorder %s8, 1
    %p72 = por %p70, %p71
    %p73 = scmp.ne.s32.totalorder %s65, %s68
    %p74 = scmp.eq.s32.totalorder %s8, 0
    %p75 = por %p73, %p74
    %p76 = scmp.ne.s32.totalorder %s65, %s68
    %p77 = scmp.eq.s32.totalorder %s13, 1
    %p78 = por %p76, %p77
    %p79 = scmp.ne.s32.totalorder %s68, %s69
    %p80 = scmp.eq.s32.totalorder %s13, 0
    %p81 = por %p79, %p80
    %p82 = scmp.ne.s32.totalorder %s68, %s69
    %p83 = scmp.eq.s32.totalorder %s14, 1
    %p84 = por %p82, %p83
    %p86 = scmp.ne.s32.totalorder %s69, %s85
    %p87 = scmp.eq.s32.totalorder %s14, 0
    %p88 = por %p86, %p87
    %p89 = scmp.le.s32.totalorder 1, %s8
    %p90 = scmp.lt.s32.totalorder %s8, 3
    %p91 = pnand %p89, %p90
    %p92 = pneg %p91
    // Predicated region
    $region9: #{_lambda_.2} parent=5 // pred_check
      _
    $region10: #{_lambda_.2} parent=5 // pred_check_branch
      %94 = sbr.rel (%p91) target = $region12
    $region11: #{_lambda_.2} parent=5 // pred_region
      %s95 = ssub.s32 %s8, 1
      // Predicated region
      $region13: #{_lambda_.2} parent=11 // pred_check
        %p96 = pneg %p55
      $region14: #{_lambda_.2} parent=11 // pred_check_branch
        %98 = sbr.rel (%p96) target = $region16
      $region15: #{_lambda_.2} parent=11 // pred_region
        _
      $region16: #{_lambda_.2} parent=11 // pred_fallthru
        _
    $region12: #{_lambda_.2} parent=5 // pred_fallthru
      _
    %p99 = scmp.lt.s32.totalorder %s8, 2
    // Predicated region
    $region17: #{_lambda_.2} parent=5 // pred_check
      %p100 = pneg %p99
    $region18: #{_lambda_.2} parent=5 // pred_check_branch
      %102 = sbr.rel (%p100) target = $region20
    $region19: #{_lambda_.2} parent=5 // pred_region
      // Predicated region
      $region21: #{_lambda_.2} parent=19 // pred_check
        %p103 = pneg %p28
      $region22: #{_lambda_.2} parent=19 // pred_check_branch
        %105 = sbr.rel (%p103) target = $region24
      $region23: #{_lambda_.2} parent=19 // pred_region
        %s106 = smul.u32 8, %s8
        %p107 = scmp.lt.s32.totalorder %s106, 15
        %s108 = scalar_select %p107, %s106, 15
        %s109 = smul.addr %s108, 2
        %s110 = smul.addr %s109, 4
        %s111 = scalar_lea.vmem %s0, %s110
        %s112 = smul.u32 8, %s8
      $region24: #{_lambda_.2} parent=19 // pred_fallthru
        _
    $region20: #{_lambda_.2} parent=5 // pred_fallthru
      _
    %p113 = scmp.le.s32.totalorder 1, %s8
    %p114 = scmp.lt.s32.totalorder %s8, 3
    %p115 = pnand %p113, %p114
    %p116 = pneg %p115
    // Predicated region
    $region25: #{_lambda_.2} parent=5 // pred_check
      _
    $region26: #{_lambda_.2} parent=5 // pred_check_branch
      %118 = sbr.rel (%p115) target = $region28
    $region27: #{_lambda_.2} parent=5 // pred_region
      %s119 = ssub.s32 %s8, 1
      %s120 = smul.u32 8, %s13
      %p121 = scmp.lt.s32.totalorder %s120, 15
      %s122 = scalar_select %p121, %s120, 15
      %s123 = smul.addr %s122, 2
      %s124 = smul.addr %s123, 4
      %s125 = scalar_lea.vmem %s0, %s124
      %p126 = pneg %p34
      %p127 = pneg %p31
      %p128 = pneg %p55
      %p129 = pneg %p52
      %p130 = pneg %p81
      %p131 = pneg %p78
      %s132 = smul.u32 8, %s13
      %p133 = scmp.lt.s32.totalorder %s132, 15
      %s134 = scalar_select %p133, %s132, 15
      %s135 = smul.addr %s134, 8
      %s136 = scalar_lea.vmem %s2, %s135
      %s137 = smul.u32 8, %s13
      %p138 = scmp.lt.s32.totalorder %s137, 15
      %s139 = scalar_select %p138, %s137, 15
      %s140 = smul.addr %s139, 2
      %s141 = smul.addr %s140, 4
      %s142 = scalar_lea.vmem %s0, %s141
      %s143 = smul.u32 8, %s13
      %s144 = smul.u32 8, %s13
      %p145 = scmp.lt.s32.totalorder %s144, 15
      %s146 = scalar_select %p145, %s144, 15
      %s147 = smul.addr %s146, 8
      %s148 = scalar_lea.vmem %s2, %s147
      %s149 = smul.u32 8, %s13
      %v151 = vld [vmem:[%s142] sm:$0xff]
      %v152 = vld [vmem:[%s142 + $0x8] sm:$0xff]
      %v153 = vld [vmem:[%s142 + $0x10] sm:$0xff]
      %v154 = vld [vmem:[%s142 + $0x18] sm:$0xff]
      %v155 = vld [vmem:[%s142 + $0x20] sm:$0xff]
      %v156 = vld [vmem:[%s142 + $0x28] sm:$0xff]
      %v157 = vld [vmem:[%s142 + $0x30] sm:$0xff]
      %v158 = vld [vmem:[%s142 + $0x38] sm:$0xff]
      %v159 = vld [vmem:[%s1] sm:$0xf]
      %v160 = vld [vmem:[%s1 + $0x4] sm:$0xf]
      %v161 = vld [vmem:[%s1 + $0x8] sm:$0xf]
      %v162 = vld [vmem:[%s1 + $0xc] sm:$0xf]
      %v163 = vld [vmem:[%s1 + $0x10] sm:$0xf]
      %v164 = vld [vmem:[%s1 + $0x14] sm:$0xf]
      %v165 = vld [vmem:[%s1 + $0x18] sm:$0xf]
      %v166 = vld [vmem:[%s1 + $0x1c] sm:$0xf]
      %v167 = vld [vmem:[%s1 + $0x20] sm:$0xf]
      %v168 = vld [vmem:[%s1 + $0x24] sm:$0xf]
      %v169 = vld [vmem:[%s1 + $0x28] sm:$0xf]
      %v170 = vld [vmem:[%s1 + $0x2c] sm:$0xf]
      %v171 = vld [vmem:[%s1 + $0x30] sm:$0xf]
      %v172 = vld [vmem:[%s1 + $0x34] sm:$0xf]
      %v173 = vld [vmem:[%s1 + $0x38] sm:$0xf]
      %v174 = vld [vmem:[%s1 + $0x3c] sm:$0xf]
      %v175 = vld [vmem:[%s1 + $0x40] sm:$0xf]
      %v176 = vld [vmem:[%s1 + $0x44] sm:$0xf]
      %v177 = vld [vmem:[%s1 + $0x48] sm:$0xf]
      %v178 = vld [vmem:[%s1 + $0x4c] sm:$0xf]
      %v187 = vunpack.c.l.b16 %v151
      %v188 = vunpack.c.h.b16 %v151
      %v189 = vunpack.c.l.b16 %v152
      %v190 = vunpack.c.h.b16 %v152
      %v191 = vunpack.c.l.b16 %v153
      %v192 = vunpack.c.h.b16 %v153
      %v193 = vunpack.c.l.b16 %v154
      %v194 = vunpack.c.h.b16 %v154
      %v195 = vunpack.c.l.b16 %v155
      %v196 = vunpack.c.h.b16 %v155
      %v197 = vunpack.c.l.b16 %v156
      %v198 = vunpack.c.h.b16 %v156
      %v199 = vunpack.c.l.b16 %v157
      %v200 = vunpack.c.h.b16 %v157
      %v201 = vunpack.c.l.b16 %v158
      %v202 = vunpack.c.h.b16 %v158
      %v203 = vpack.c.b16 %v189, %v187
      %v204 = vpack.c.b16 %v190, %v188
      %v205 = vpack.c.b16 %v193, %v191
      %v206 = vpack.c.b16 %v194, %v192
      %v207 = vpack.c.b16 %v197, %v195
      %v208 = vpack.c.b16 %v198, %v196
      %v209 = vpack.c.b16 %v201, %v199
      %v210 = vpack.c.b16 %v202, %v200
      %v235 = vunpack.c.l.b16 %v159
      %v236 = vunpack.c.l.b16 %v160
      %v237 = vunpack.c.l.b16 %v161
      %v238 = vunpack.c.l.b16 %v162
      %v239 = vunpack.c.l.b16 %v163
      %v240 = vunpack.c.l.b16 %v164
      %v241 = vunpack.c.l.b16 %v165
      %v242 = vunpack.c.l.b16 %v166
      %v243 = vunpack.c.l.b16 %v167
      %v244 = vunpack.c.l.b16 %v168
      %v245 = vunpack.c.l.b16 %v169
      %v246 = vunpack.c.l.b16 %v170
      %v247 = vunpack.c.l.b16 %v171
      %v248 = vunpack.c.l.b16 %v172
      %v249 = vunpack.c.l.b16 %v173
      %v250 = vunpack.c.l.b16 %v174
      %v251 = vunpack.c.l.b16 %v175
      %v252 = vunpack.c.l.b16 %v176
      %v253 = vunpack.c.l.b16 %v177
      %v254 = vunpack.c.l.b16 %v178
      %v255 = vpack.c.b16 %v236, %v235
      %v256 = vpack.c.b16 %v238, %v237
      %v257 = vpack.c.b16 %v240, %v239
      %v258 = vpack.c.b16 %v242, %v241
      %v259 = vpack.c.b16 %v244, %v243
      %v260 = vpack.c.b16 %v246, %v245
      %v261 = vpack.c.b16 %v248, %v247
      %v262 = vpack.c.b16 %v250, %v249
      %v263 = vpack.c.b16 %v252, %v251
      %v264 = vpack.c.b16 %v254, %v253
      %vm275 = vcmask 261120
      %v277 = vsel %vm275, %v204, 0
      %v280 = vsel %vm275, %v206, 0
      %v283 = vsel %vm275, %v208, 0
      %v286 = vsel %vm275, %v210, 0
      %288 = vmatpush.bf16.msra.mxu0 %v262
      %289 = vmatpush.bf16.msra.mxu0 %v261
      %290 = vmatpush.bf16.msra.mxu0 %v260
      %291 = vmatpush.bf16.msra.mxu0 %v259
      %292 = vmatpush.bf16.msra.mxu0 %v258
      %293 = vmatpush.bf16.msra.mxu0 %v257
      %294 = vmatpush.bf16.msra.mxu0 %v256
      %295 = vmatpush.bf16.msra.mxu0 %v255
      %296 = vmatmul.bf16.gmra.mxu0 %v203
      %v297 = vpop.f32.mrf.mxu0
      %v298 = vadd.f32 0.0, %v297
      %v299 = vpop.f32.mrf.mxu0
      %v300 = vadd.f32 0.0, %v299
      %301 = vmatmul.bf16.gmra.mxu0 %v205
      %v302 = vpop.f32.mrf.mxu0
      %v303 = vadd.f32 0.0, %v302
      %v304 = vpop.f32.mrf.mxu0
      %v305 = vadd.f32 0.0, %v304
      %306 = vmatmul.bf16.gmra.mxu0 %v207
      %v307 = vpop.f32.mrf.mxu0
      %v308 = vadd.f32 0.0, %v307
      %v309 = vpop.f32.mrf.mxu0
      %v310 = vadd.f32 0.0, %v309
      %311 = vmatmul.bf16.gmra.mxu0 %v209
      %v312 = vpop.f32.mrf.mxu0
      %v313 = vadd.f32 0.0, %v312
      %v314 = vpop.f32.mrf.mxu0
      %v315 = vadd.f32 0.0, %v314
      %316 = vdwg.mxu0
      %317 = vmatpush.bf16.msra.mxu0 0
      %318 = vmatpush.bf16.msra.mxu0 0
      %319 = vmatpush.bf16.msra.mxu0 0
      %320 = vmatpush.bf16.msra.mxu0 0
      %321 = vmatpush.bf16.msra.mxu0 0
      %322 = vmatpush.bf16.msra.mxu0 0
      %323 = vmatpush.bf16.msra.mxu0 %v264
      %324 = vmatpush.bf16.msra.mxu0 %v263
      %325 = vmatmul.bf16.gmra.mxu0 %v277
      %v326 = vpop.f32.mrf.mxu0
      %v327 = vadd.f32 %v298, %v326
      %v328 = vpop.f32.mrf.mxu0
      %v329 = vadd.f32 %v300, %v328
      %330 = vmatmul.bf16.gmra.mxu0 %v280
      %v331 = vpop.f32.mrf.mxu0
      %v332 = vadd.f32 %v303, %v331
      %v333 = vpop.f32.mrf.mxu0
      %v334 = vadd.f32 %v305, %v333
      %335 = vmatmul.bf16.gmra.mxu0 %v283
      %v336 = vpop.f32.mrf.mxu0
      %v337 = vadd.f32 %v308, %v336
      %v338 = vpop.f32.mrf.mxu0
      %v339 = vadd.f32 %v310, %v338
      %340 = vmatmul.bf16.gmra.mxu0 %v286
      %v341 = vpop.f32.mrf.mxu0
      %v342 = vadd.f32 %v313, %v341
      %v343 = vpop.f32.mrf.mxu0
      %v344 = vadd.f32 %v315, %v343
      %345 = vdwg.mxu0
      %v346 = vmax.f32 %v327, 0.0
      %v347 = vmax.f32 %v329, 0.0
      %v348 = vmax.f32 %v332, 0.0
      %v349 = vmax.f32 %v334, 0.0
      %v350 = vmax.f32 %v337, 0.0
      %v351 = vmax.f32 %v339, 0.0
      %v352 = vmax.f32 %v342, 0.0
      %v353 = vmax.f32 %v344, 0.0
      %354 = vst.msk [vmem:[%s148] sm:$0xff] %vm275, %v346
      %355 = vst.msk [vmem:[%s148 + $0x8] sm:$0xff] %vm275, %v347
      %356 = vst.msk [vmem:[%s148 + $0x10] sm:$0xff] %vm275, %v348
      %357 = vst.msk [vmem:[%s148 + $0x18] sm:$0xff] %vm275, %v349
      %358 = vst.msk [vmem:[%s148 + $0x20] sm:$0xff] %vm275, %v350
      %359 = vst.msk [vmem:[%s148 + $0x28] sm:$0xff] %vm275, %v351
      %360 = vst.msk [vmem:[%s148 + $0x30] sm:$0xff] %vm275, %v352
      %361 = vst.msk [vmem:[%s148 + $0x38] sm:$0xff] %vm275, %v353
      %s362 = smul.u32 8, %s13
      %p363 = scmp.lt.s32.totalorder %s362, 15
      %s364 = scalar_select %p363, %s362, 15
      %s365 = smul.addr %s364, 8
      %s366 = scalar_lea.vmem %s2, %s365
      // Predicated region
      $region29: #{_lambda_.2} parent=27 // pred_check
        %p367 = pneg %p78
      $region30: #{_lambda_.2} parent=27 // pred_check_branch
        %369 = sbr.rel (%p367) target = $region32
      $region31: #{_lambda_.2} parent=27 // pred_region
        %s370 = smul.u32 8, %s13
      $region32: #{_lambda_.2} parent=27 // pred_fallthru
        _
    $region28: #{_lambda_.2} parent=5 // pred_fallthru
      _
    %p371 = scmp.le.s32.totalorder 2, %s8
    // Predicated region
    $region33: #{_lambda_.2} parent=5 // pred_check
      %p372 = pneg %p371
    $region34: #{_lambda_.2} parent=5 // pred_check_branch
      %374 = sbr.rel (%p372) target = $region36
    $region35: #{_lambda_.2} parent=5 // pred_region
      %s375 = ssub.s32 %s8, 2
      // Predicated region
      $region37: #{_lambda_.2} parent=35 // pred_check
        %p376 = pneg %p84
      $region38: #{_lambda_.2} parent=35 // pred_check_branch
        %378 = sbr.rel (%p376) target = $region40
      $region39: #{_lambda_.2} parent=35 // pred_region
        %s379 = smul.u32 8, %s14
        %p380 = scmp.lt.s32.totalorder %s379, 15
        %s381 = scalar_select %p380, %s379, 15
        %s382 = smul.addr %s381, 8
        %s383 = scalar_lea.vmem %s2, %s382
      $region40: #{_lambda_.2} parent=35 // pred_fallthru
        _
    $region36: #{_lambda_.2} parent=5 // pred_fallthru
      _
  $region6: #{_lambda_.2} parent=0 // loop_footer
    %s12 = sadd.s32 1, %s8
  $region7: #{_lambda_.2} parent=0 // loop_footer_branch
    %7 = sbr.rel target = $region3
  $region8: #{_lambda_.2} parent=0 // loop_exit
    _

// kernel: _lambda_.3
$region0: #{_lambda_.3}
  #allocation0 [shape = 'u32[]', space=smem, size = 0x4, offset = 0x4, fixed_abs, tag = 'smem constant byte address 0x4 - core index']
  #allocation1 [shape = 'u32[72,128]{1,0:T(1,128)}', space=vmem, size = 0x9000, scoped, tag = 'internal scratch']
  #allocation2 [shape = 'f32[1,1]{1,0:T(1,128)S(1)}', space=vmem, size = 0x200, scoped, tag = 'scoped memory for _lambda_.3']
  %s0 = inlined_call_operand.vmem [shape: f32[2,16,32], index: 0, kind: input, shape index: {}]
  %s1 = inlined_call_operand.vmem [shape: f32[1,16,32], index: 1, kind: input, shape index: {}]
  %s2 = inlined_call_operand.vmem [shape: f32[2,1,32], index: 2, kind: input, shape index: {}, may-alias: {2,7}]
  %s3 = inlined_call_operand.vmem [shape: f32[2,1,32], index: 3, kind: input, shape index: {}, may-alias: {3,6,8,12}]
  %s4 = inlined_call_operand.vmem [shape: bf16[2,32,96], index: 4, kind: input, shape index: {}]
  %s5 = inlined_call_operand.vmem [shape: bf16[2,4,8,32], index: 5, kind: input, shape index: {}]
  %s6 = inlined_call_operand.vmem [shape: f32[2,1,32], index: 6, kind: input, shape index: {}, may-alias: {3,6,8,12}]
  %s7 = inlined_call_operand.vmem [shape: f32[2,1,32], index: 7, kind: input, shape index: {}, may-alias: {2,7}]
  %s8 = inlined_call_operand.vmem [shape: f32[2,1,32], index: 8, kind: input, shape index: {}, may-alias: {3,6,8,12}]
  %s9 = inlined_call_operand.vmem [shape: bf16[2,32,128], index: 9, kind: input, shape index: {}]
  %s10 = inlined_call_operand.vmem [shape: f32[2,1,128], index: 10, kind: input, shape index: {}]
  %s11 = inlined_call_operand.vmem [shape: bf16[2,128,32], index: 11, kind: input, shape index: {}]
  %s12 = inlined_call_operand.vmem [shape: f32[2,1,32], index: 12, kind: input, shape index: {}, may-alias: {3,6,8,12}]
  %s13 = inlined_call_operand.vmem [shape: f32[1,32], index: 13, kind: input, shape index: {}]
  %s14 = inlined_call_operand.vmem [shape: f32[1,32], index: 14, kind: input, shape index: {}]
  %s15 = inlined_call_operand.vmem [shape: f32[32,1], index: 15, kind: input, shape index: {}]
  %s16 = inlined_call_operand.<no memory space> [shape: f32[1,1], index: 16, kind: input, shape index: {}]
  %s17 = inlined_call_operand.vmem [shape: f32[32,10], index: 17, kind: input, shape index: {}]
  %s18 = inlined_call_operand.vmem [shape: f32[1,10], index: 18, kind: input, shape index: {}]
  %s19 = inlined_call_operand.hbm [shape: f32[2,1,10], index: 19, kind: output, shape index: {}]
  %s20 = sld [smem:[#allocation0]]
  $region109: #{_lambda_.3} parent=0
    _
  %s22 = ssub.s32 1, %s20
  %s23 = scalar_select 0, %s22, %s20
  %v24 = vstv %s16
  %25 = vst [vmem:[#allocation2] sm:$0x1] %v24
  $region1: #{_lambda_.3} parent=0
    #allocation3 [shape = 'u8[1024]{0}', space=vmem, size = 0x400, scoped, tag = 'output window, operand 0']
    #allocation4 [shape = 's32[2]{0}', space=sflag, size = 0x8, scoped, tag = 'scoped memory for _lambda_.3']
    %26 = vsyncpa [#allocation4], 0
    %s27 = scalar_lea.sflag [#allocation4], 1
    %28 = vsyncpa %s27, 0
    loop: start=0, step=1, limit=4
    $region2: #{_lambda_.3} parent=1 // loop_pre_header
      _
    $region3: #{_lambda_.3} parent=1 // loop_header
      %s30 = sphi 0, %s34
      %p31 = scmp.ge.s32.totalorder %s30, 4
      %s40 = sphi 0, %s42
      %s43 = sphi 0, %s40
      %s44 = sphi 0, %s43
      %s60 = sphi 0, %s44
      %s64 = sphi 0, %s64
      %s66 = sphi 0, %s64
      %s67 = sphi 0, %s66
      %s81 = sphi 0, %s67
      %s85 = sphi 0, %s85
      %s87 = sphi 0, %s85
      %s88 = sphi 0, %s87
      %s102 = sphi 0, %s88
      %s106 = sphi 0, %s106
      %s108 = sphi 0, %s106
      %s109 = sphi 0, %s108
      %s123 = sphi 0, %s109
      %s127 = sphi 0, %s127
      %s129 = sphi 0, %s127
      %s130 = sphi 0, %s129
      %s144 = sphi 0, %s130
      %s148 = sphi 0, %s148
      %s150 = sphi 0, %s148
      %s151 = sphi 0, %s150
      %s165 = sphi 0, %s151
      %s169 = sphi 0, %s169
      %s171 = sphi 0, %s169
      %s172 = sphi 0, %s171
      %s186 = sphi 0, %s172
      %s190 = sphi 0, %s190
      %s192 = sphi 0, %s190
      %s193 = sphi 0, %s192
      %s207 = sphi 0, %s193
      %s211 = sphi 0, %s211
      %s213 = sphi 0, %s211
      %s214 = sphi 0, %s213
      %s228 = sphi 0, %s214
      %s232 = sphi 0, %s232
      %s234 = sphi 0, %s232
      %s235 = sphi 0, %s234
      %s249 = sphi 0, %s235
      %s253 = sphi 0, %s253
      %s255 = sphi 0, %s253
      %s256 = sphi 0, %s255
      %s270 = sphi 0, %s256
      %s274 = sphi 0, %s274
      %s276 = sphi 0, %s274
      %s277 = sphi 0, %s276
      %s291 = sphi 0, %s277
      %s295 = sphi 0, %s295
      %s297 = sphi 0, %s295
      %s298 = sphi 0, %s297
      %s312 = sphi 0, %s298
      %s316 = sphi 0, %s316
      %s318 = sphi 0, %s316
      %s319 = sphi 0, %s318
      %s333 = sphi 0, %s319
      %s337 = sphi 0, %s337
      %s339 = sphi 0, %s337
      %s340 = sphi 0, %s339
      %s354 = sphi 0, %s340
      %s358 = sphi 0, %s358
      %s360 = sphi 0, %s358
      %s361 = sphi 0, %s360
      %s375 = sphi 0, %s361
      %s379 = sphi 0, %s379
      %s381 = sphi 0, %s379
      %s382 = sphi 0, %s381
      %s396 = sphi 0, %s382
      %s400 = sphi 0, %s400
      %s402 = sphi 0, %s400
      %s403 = sphi 0, %s402
      %s417 = sphi 0, %s403
      %s421 = sphi 0, %s421
      %s423 = sphi 0, %s421
      %s424 = sphi 0, %s423
      %s438 = sphi 0, %s424
      %s444 = sphi 0, %s446
      %s447 = sphi 0, %s444
      %s448 = sphi 0, %s447
      %s464 = sphi 0, %s448
    $region4: #{_lambda_.3} parent=1 // loop_header_branch
      %33 = sbr.rel (%p31) target = $region8
    $region5: #{_lambda_.3} parent=1 // loop_body
      %s35 = ssub.s32 %s30, 1
      %s36 = ssub.s32 %s30, 2
      %s37 = sadd.s32 %s30, 1
      %s38 = ssub.s32 %s30, %s37
      %p39 = scmp.eq.s32.totalorder %s38, 0
      %s41 = sadd.s32 %s40, 1
      %s42 = scalar_select %p39, %s40, %s41
      %p45 = pneg %p39
      %p46 = scmp.eq.s32.totalorder %s30, 1
      %p47 = por %p45, %p46
      %p48 = scmp.ne.s32.totalorder %s40, %s43
      %p49 = scmp.eq.s32.totalorder %s30, 0
      %p50 = por %p48, %p49
      %p51 = scmp.ne.s32.totalorder %s40, %s43
      %p52 = scmp.eq.s32.totalorder %s35, 1
      %p53 = por %p51, %p52
      %p54 = scmp.ne.s32.totalorder %s43, %s44
      %p55 = scmp.eq.s32.totalorder %s35, 0
      %p56 = por %p54, %p55
      %p57 = scmp.ne.s32.totalorder %s43, %s44
      %p58 = scmp.eq.s32.totalorder %s36, 1
      %p59 = por %p57, %p58
      %p61 = scmp.ne.s32.totalorder %s44, %s60
      %p62 = scmp.eq.s32.totalorder %s36, 0
      %p63 = por %p61, %p62
      %s65 = sadd.s32 %s64, 1
      %p68 = scmp.eq.s32.totalorder %s30, 1
      %p69 = scmp.ne.s32.totalorder %s64, %s66
      %p70 = scmp.eq.s32.totalorder %s30, 0
      %p71 = por %p69, %p70
      %p72 = scmp.ne.s32.totalorder %s64, %s66
      %p73 = scmp.eq.s32.totalorder %s35, 1
      %p74 = por %p72, %p73
      %p75 = scmp.ne.s32.totalorder %s66, %s67
      %p76 = scmp.eq.s32.totalorder %s35, 0
      %p77 = por %p75, %p76
      %p78 = scmp.ne.s32.totalorder %s66, %s67
      %p79 = scmp.eq.s32.totalorder %s36, 1
      %p80 = por %p78, %p79
      %p82 = scmp.ne.s32.totalorder %s67, %s81
      %p83 = scmp.eq.s32.totalorder %s36, 0
      %p84 = por %p82, %p83
      %s86 = sadd.s32 %s85, 1
      %p89 = scmp.eq.s32.totalorder %s30, 1
      %p90 = scmp.ne.s32.totalorder %s85, %s87
      %p91 = scmp.eq.s32.totalorder %s30, 0
      %p92 = por %p90, %p91
      %p93 = scmp.ne.s32.totalorder %s85, %s87
      %p94 = scmp.eq.s32.totalorder %s35, 1
      %p95 = por %p93, %p94
      %p96 = scmp.ne.s32.totalorder %s87, %s88
      %p97 = scmp.eq.s32.totalorder %s35, 0
      %p98 = por %p96, %p97
      %p99 = scmp.ne.s32.totalorder %s87, %s88
      %p100 = scmp.eq.s32.totalorder %s36, 1
      %p101 = por %p99, %p100
      %p103 = scmp.ne.s32.totalorder %s88, %s102
      %p104 = scmp.eq.s32.totalorder %s36, 0
      %p105 = por %p103, %p104
      %s107 = sadd.s32 %s106, 1
      %p110 = scmp.eq.s32.totalorder %s30, 1
      %p111 = scmp.ne.s32.totalorder %s106, %s108
      %p112 = scmp.eq.s32.totalorder %s30, 0
      %p113 = por %p111, %p112
      %p114 = scmp.ne.s32.totalorder %s106, %s108
      %p115 = scmp.eq.s32.totalorder %s35, 1
      %p116 = por %p114, %p115
      %p117 = scmp.ne.s32.totalorder %s108, %s109
      %p118 = scmp.eq.s32.totalorder %s35, 0
      %p119 = por %p117, %p118
      %p120 = scmp.ne.s32.totalorder %s108, %s109
      %p121 = scmp.eq.s32.totalorder %s36, 1
      %p122 = por %p120, %p121
      %p124 = scmp.ne.s32.totalorder %s109, %s123
      %p125 = scmp.eq.s32.totalorder %s36, 0
      %p126 = por %p124, %p125
      %s128 = sadd.s32 %s127, 1
      %p131 = scmp.eq.s32.totalorder %s30, 1
      %p132 = scmp.ne.s32.totalorder %s127, %s129
      %p133 = scmp.eq.s32.totalorder %s30, 0
      %p134 = por %p132, %p133
      %p135 = scmp.ne.s32.totalorder %s127, %s129
      %p136 = scmp.eq.s32.totalorder %s35, 1
      %p137 = por %p135, %p136
      %p138 = scmp.ne.s32.totalorder %s129, %s130
      %p139 = scmp.eq.s32.totalorder %s35, 0
      %p140 = por %p138, %p139
      %p141 = scmp.ne.s32.totalorder %s129, %s130
      %p142 = scmp.eq.s32.totalorder %s36, 1
      %p143 = por %p141, %p142
      %p145 = scmp.ne.s32.totalorder %s130, %s144
      %p146 = scmp.eq.s32.totalorder %s36, 0
      %p147 = por %p145, %p146
      %s149 = sadd.s32 %s148, 1
      %p152 = scmp.eq.s32.totalorder %s30, 1
      %p153 = scmp.ne.s32.totalorder %s148, %s150
      %p154 = scmp.eq.s32.totalorder %s30, 0
      %p155 = por %p153, %p154
      %p156 = scmp.ne.s32.totalorder %s148, %s150
      %p157 = scmp.eq.s32.totalorder %s35, 1
      %p158 = por %p156, %p157
      %p159 = scmp.ne.s32.totalorder %s150, %s151
      %p160 = scmp.eq.s32.totalorder %s35, 0
      %p161 = por %p159, %p160
      %p162 = scmp.ne.s32.totalorder %s150, %s151
      %p163 = scmp.eq.s32.totalorder %s36, 1
      %p164 = por %p162, %p163
      %p166 = scmp.ne.s32.totalorder %s151, %s165
      %p167 = scmp.eq.s32.totalorder %s36, 0
      %p168 = por %p166, %p167
      %s170 = sadd.s32 %s169, 1
      %p173 = scmp.eq.s32.totalorder %s30, 1
      %p174 = scmp.ne.s32.totalorder %s169, %s171
      %p175 = scmp.eq.s32.totalorder %s30, 0
      %p176 = por %p174, %p175
      %p177 = scmp.ne.s32.totalorder %s169, %s171
      %p178 = scmp.eq.s32.totalorder %s35, 1
      %p179 = por %p177, %p178
      %p180 = scmp.ne.s32.totalorder %s171, %s172
      %p181 = scmp.eq.s32.totalorder %s35, 0
      %p182 = por %p180, %p181
      %p183 = scmp.ne.s32.totalorder %s171, %s172
      %p184 = scmp.eq.s32.totalorder %s36, 1
      %p185 = por %p183, %p184
      %p187 = scmp.ne.s32.totalorder %s172, %s186
      %p188 = scmp.eq.s32.totalorder %s36, 0
      %p189 = por %p187, %p188
      %s191 = sadd.s32 %s190, 1
      %p194 = scmp.eq.s32.totalorder %s30, 1
      %p195 = scmp.ne.s32.totalorder %s190, %s192
      %p196 = scmp.eq.s32.totalorder %s30, 0
      %p197 = por %p195, %p196
      %p198 = scmp.ne.s32.totalorder %s190, %s192
      %p199 = scmp.eq.s32.totalorder %s35, 1
      %p200 = por %p198, %p199
      %p201 = scmp.ne.s32.totalorder %s192, %s193
      %p202 = scmp.eq.s32.totalorder %s35, 0
      %p203 = por %p201, %p202
      %p204 = scmp.ne.s32.totalorder %s192, %s193
      %p205 = scmp.eq.s32.totalorder %s36, 1
      %p206 = por %p204, %p205
      %p208 = scmp.ne.s32.totalorder %s193, %s207
      %p209 = scmp.eq.s32.totalorder %s36, 0
      %p210 = por %p208, %p209
      %s212 = sadd.s32 %s211, 1
      %p215 = scmp.eq.s32.totalorder %s30, 1
      %p216 = scmp.ne.s32.totalorder %s211, %s213
      %p217 = scmp.eq.s32.totalorder %s30, 0
      %p218 = por %p216, %p217
      %p219 = scmp.ne.s32.totalorder %s211, %s213
      %p220 = scmp.eq.s32.totalorder %s35, 1
      %p221 = por %p219, %p220
      %p222 = scmp.ne.s32.totalorder %s213, %s214
      %p223 = scmp.eq.s32.totalorder %s35, 0
      %p224 = por %p222, %p223
      %p225 = scmp.ne.s32.totalorder %s213, %s214
      %p226 = scmp.eq.s32.totalorder %s36, 1
      %p227 = por %p225, %p226
      %p229 = scmp.ne.s32.totalorder %s214, %s228
      %p230 = scmp.eq.s32.totalorder %s36, 0
      %p231 = por %p229, %p230
      %s233 = sadd.s32 %s232, 1
      %p236 = scmp.eq.s32.totalorder %s30, 1
      %p237 = scmp.ne.s32.totalorder %s232, %s234
      %p238 = scmp.eq.s32.totalorder %s30, 0
      %p239 = por %p237, %p238
      %p240 = scmp.ne.s32.totalorder %s232, %s234
      %p241 = scmp.eq.s32.totalorder %s35, 1
      %p242 = por %p240, %p241
      %p243 = scmp.ne.s32.totalorder %s234, %s235
      %p244 = scmp.eq.s32.totalorder %s35, 0
      %p245 = por %p243, %p244
      %p246 = scmp.ne.s32.totalorder %s234, %s235
      %p247 = scmp.eq.s32.totalorder %s36, 1
      %p248 = por %p246, %p247
      %p250 = scmp.ne.s32.totalorder %s235, %s249
      %p251 = scmp.eq.s32.totalorder %s36, 0
      %p252 = por %p250, %p251
      %s254 = sadd.s32 %s253, 1
      %p257 = scmp.eq.s32.totalorder %s30, 1
      %p258 = scmp.ne.s32.totalorder %s253, %s255
      %p259 = scmp.eq.s32.totalorder %s30, 0
      %p260 = por %p258, %p259
      %p261 = scmp.ne.s32.totalorder %s253, %s255
      %p262 = scmp.eq.s32.totalorder %s35, 1
      %p263 = por %p261, %p262
      %p264 = scmp.ne.s32.totalorder %s255, %s256
      %p265 = scmp.eq.s32.totalorder %s35, 0
      %p266 = por %p264, %p265
      %p267 = scmp.ne.s32.totalorder %s255, %s256
      %p268 = scmp.eq.s32.totalorder %s36, 1
      %p269 = por %p267, %p268
      %p271 = scmp.ne.s32.totalorder %s256, %s270
      %p272 = scmp.eq.s32.totalorder %s36, 0
      %p273 = por %p271, %p272
      %s275 = sadd.s32 %s274, 1
      %p278 = scmp.eq.s32.totalorder %s30, 1
      %p279 = scmp.ne.s32.totalorder %s274, %s276
      %p280 = scmp.eq.s32.totalorder %s30, 0
      %p281 = por %p279, %p280
      %p282 = scmp.ne.s32.totalorder %s274, %s276
      %p283 = scmp.eq.s32.totalorder %s35, 1
      %p284 = por %p282, %p283
      %p285 = scmp.ne.s32.totalorder %s276, %s277
      %p286 = scmp.eq.s32.totalorder %s35, 0
      %p287 = por %p285, %p286
      %p288 = scmp.ne.s32.totalorder %s276, %s277
      %p289 = scmp.eq.s32.totalorder %s36, 1
      %p290 = por %p288, %p289
      %p292 = scmp.ne.s32.totalorder %s277, %s291
      %p293 = scmp.eq.s32.totalorder %s36, 0
      %p294 = por %p292, %p293
      %s296 = sadd.s32 %s295, 1
      %p299 = scmp.eq.s32.totalorder %s30, 1
      %p300 = scmp.ne.s32.totalorder %s295, %s297
      %p301 = scmp.eq.s32.totalorder %s30, 0
      %p302 = por %p300, %p301
      %p303 = scmp.ne.s32.totalorder %s295, %s297
      %p304 = scmp.eq.s32.totalorder %s35, 1
      %p305 = por %p303, %p304
      %p306 = scmp.ne.s32.totalorder %s297, %s298
      %p307 = scmp.eq.s32.totalorder %s35, 0
      %p308 = por %p306, %p307
      %p309 = scmp.ne.s32.totalorder %s297, %s298
      %p310 = scmp.eq.s32.totalorder %s36, 1
      %p311 = por %p309, %p310
      %p313 = scmp.ne.s32.totalorder %s298, %s312
      %p314 = scmp.eq.s32.totalorder %s36, 0
      %p315 = por %p313, %p314
      %s317 = sadd.s32 %s316, 1
      %p320 = scmp.eq.s32.totalorder %s30, 1
      %p321 = scmp.ne.s32.totalorder %s316, %s318
      %p322 = scmp.eq.s32.totalorder %s30, 0
      %p323 = por %p321, %p322
      %p324 = scmp.ne.s32.totalorder %s316, %s318
      %p325 = scmp.eq.s32.totalorder %s35, 1
      %p326 = por %p324, %p325
      %p327 = scmp.ne.s32.totalorder %s318, %s319
      %p328 = scmp.eq.s32.totalorder %s35, 0
      %p329 = por %p327, %p328
      %p330 = scmp.ne.s32.totalorder %s318, %s319
      %p331 = scmp.eq.s32.totalorder %s36, 1
      %p332 = por %p330, %p331
      %p334 = scmp.ne.s32.totalorder %s319, %s333
      %p335 = scmp.eq.s32.totalorder %s36, 0
      %p336 = por %p334, %p335
      %s338 = sadd.s32 %s337, 1
      %p341 = scmp.eq.s32.totalorder %s30, 1
      %p342 = scmp.ne.s32.totalorder %s337, %s339
      %p343 = scmp.eq.s32.totalorder %s30, 0
      %p344 = por %p342, %p343
      %p345 = scmp.ne.s32.totalorder %s337, %s339
      %p346 = scmp.eq.s32.totalorder %s35, 1
      %p347 = por %p345, %p346
      %p348 = scmp.ne.s32.totalorder %s339, %s340
      %p349 = scmp.eq.s32.totalorder %s35, 0
      %p350 = por %p348, %p349
      %p351 = scmp.ne.s32.totalorder %s339, %s340
      %p352 = scmp.eq.s32.totalorder %s36, 1
      %p353 = por %p351, %p352
      %p355 = scmp.ne.s32.totalorder %s340, %s354
      %p356 = scmp.eq.s32.totalorder %s36, 0
      %p357 = por %p355, %p356
      %s359 = sadd.s32 %s358, 1
      %p362 = scmp.eq.s32.totalorder %s30, 1
      %p363 = scmp.ne.s32.totalorder %s358, %s360
      %p364 = scmp.eq.s32.totalorder %s30, 0
      %p365 = por %p363, %p364
      %p366 = scmp.ne.s32.totalorder %s358, %s360
      %p367 = scmp.eq.s32.totalorder %s35, 1
      %p368 = por %p366, %p367
      %p369 = scmp.ne.s32.totalorder %s360, %s361
      %p370 = scmp.eq.s32.totalorder %s35, 0
      %p371 = por %p369, %p370
      %p372 = scmp.ne.s32.totalorder %s360, %s361
      %p373 = scmp.eq.s32.totalorder %s36, 1
      %p374 = por %p372, %p373
      %p376 = scmp.ne.s32.totalorder %s361, %s375
      %p377 = scmp.eq.s32.totalorder %s36, 0
      %p378 = por %p376, %p377
      %s380 = sadd.s32 %s379, 1
      %p383 = scmp.eq.s32.totalorder %s30, 1
      %p384 = scmp.ne.s32.totalorder %s379, %s381
      %p385 = scmp.eq.s32.totalorder %s30, 0
      %p386 = por %p384, %p385
      %p387 = scmp.ne.s32.totalorder %s379, %s381
      %p388 = scmp.eq.s32.totalorder %s35, 1
      %p389 = por %p387, %p388
      %p390 = scmp.ne.s32.totalorder %s381, %s382
      %p391 = scmp.eq.s32.totalorder %s35, 0
      %p392 = por %p390, %p391
      %p393 = scmp.ne.s32.totalorder %s381, %s382
      %p394 = scmp.eq.s32.totalorder %s36, 1
      %p395 = por %p393, %p394
      %p397 = scmp.ne.s32.totalorder %s382, %s396
      %p398 = scmp.eq.s32.totalorder %s36, 0
      %p399 = por %p397, %p398
      %s401 = sadd.s32 %s400, 1
      %p404 = scmp.eq.s32.totalorder %s30, 1
      %p405 = scmp.ne.s32.totalorder %s400, %s402
      %p406 = scmp.eq.s32.totalorder %s30, 0
      %p407 = por %p405, %p406
      %p408 = scmp.ne.s32.totalorder %s400, %s402
      %p409 = scmp.eq.s32.totalorder %s35, 1
      %p410 = por %p408, %p409
      %p411 = scmp.ne.s32.totalorder %s402, %s403
      %p412 = scmp.eq.s32.totalorder %s35, 0
      %p413 = por %p411, %p412
      %p414 = scmp.ne.s32.totalorder %s402, %s403
      %p415 = scmp.eq.s32.totalorder %s36, 1
      %p416 = por %p414, %p415
      %p418 = scmp.ne.s32.totalorder %s403, %s417
      %p419 = scmp.eq.s32.totalorder %s36, 0
      %p420 = por %p418, %p419
      %s422 = sadd.s32 %s421, 1
      %p425 = scmp.eq.s32.totalorder %s30, 1
      %p426 = scmp.ne.s32.totalorder %s421, %s423
      %p427 = scmp.eq.s32.totalorder %s30, 0
      %p428 = por %p426, %p427
      %p429 = scmp.ne.s32.totalorder %s421, %s423
      %p430 = scmp.eq.s32.totalorder %s35, 1
      %p431 = por %p429, %p430
      %p432 = scmp.ne.s32.totalorder %s423, %s424
      %p433 = scmp.eq.s32.totalorder %s35, 0
      %p434 = por %p432, %p433
      %p435 = scmp.ne.s32.totalorder %s423, %s424
      %p436 = scmp.eq.s32.totalorder %s36, 1
      %p437 = por %p435, %p436
      %p439 = scmp.ne.s32.totalorder %s424, %s438
      %p440 = scmp.eq.s32.totalorder %s36, 0
      %p441 = por %p439, %p440
      %s442 = ssub.s32 %s30, %s37
      %p443 = scmp.eq.s32.totalorder %s442, 0
      %s445 = sadd.s32 %s444, 1
      %s446 = scalar_select %p443, %s444, %s445
      %p449 = pneg %p443
      %p450 = scmp.eq.s32.totalorder %s30, 1
      %p451 = por %p449, %p450
      %p452 = scmp.ne.s32.totalorder %s444, %s447
      %p453 = scmp.eq.s32.totalorder %s30, 0
      %p454 = por %p452, %p453
      %p455 = scmp.ne.s32.totalorder %s444, %s447
      %p456 = scmp.eq.s32.totalorder %s35, 1
      %p457 = por %p455, %p456
      %p458 = scmp.ne.s32.totalorder %s447, %s448
      %p459 = scmp.eq.s32.totalorder %s35, 0
      %p460 = por %p458, %p459
      %p461 = scmp.ne.s32.totalorder %s447, %s448
      %p462 = scmp.eq.s32.totalorder %s36, 1
      %p463 = por %p461, %p462
      %p465 = scmp.ne.s32.totalorder %s448, %s464
      %p466 = scmp.eq.s32.totalorder %s36, 0
      %p467 = por %p465, %p466
      %p468 = scmp.le.s32.totalorder 1, %s30
      %p469 = scmp.lt.s32.totalorder %s30, 3
      %p470 = pnand %p468, %p469
      %p471 = pneg %p470
      // Predicated region
      $region9: #{_lambda_.3} parent=5 // pred_check
        _
      $region10: #{_lambda_.3} parent=5 // pred_check_branch
        %473 = sbr.rel (%p470) target = $region12
      $region11: #{_lambda_.3} parent=5 // pred_region
        %s474 = ssub.s32 %s30, 1
        // Predicated region
        $region13: #{_lambda_.3} parent=11 // pred_check
          %p475 = pneg %p77
        $region14: #{_lambda_.3} parent=11 // pred_check_branch
          %477 = sbr.rel (%p475) target = $region16
        $region15: #{_lambda_.3} parent=11 // pred_region
          _
        $region16: #{_lambda_.3} parent=11 // pred_fallthru
          _
        // Predicated region
        $region17: #{_lambda_.3} parent=11 // pred_check
          %p478 = pneg %p98
        $region18: #{_lambda_.3} parent=11 // pred_check_branch
          %480 = sbr.rel (%p478) target = $region20
        $region19: #{_lambda_.3} parent=11 // pred_region
          _
        $region20: #{_lambda_.3} parent=11 // pred_fallthru
          _
        // Predicated region
        $region21: #{_lambda_.3} parent=11 // pred_check
          %p481 = pneg %p119
        $region22: #{_lambda_.3} parent=11 // pred_check_branch
          %483 = sbr.rel (%p481) target = $region24
        $region23: #{_lambda_.3} parent=11 // pred_region
          _
        $region24: #{_lambda_.3} parent=11 // pred_fallthru
          _
        // Predicated region
        $region25: #{_lambda_.3} parent=11 // pred_check
          %p484 = pneg %p140
        $region26: #{_lambda_.3} parent=11 // pred_check_branch
          %486 = sbr.rel (%p484) target = $region28
        $region27: #{_lambda_.3} parent=11 // pred_region
          _
        $region28: #{_lambda_.3} parent=11 // pred_fallthru
          _
        // Predicated region
        $region29: #{_lambda_.3} parent=11 // pred_check
          %p487 = pneg %p161
        $region30: #{_lambda_.3} parent=11 // pred_check_branch
          %489 = sbr.rel (%p487) target = $region32
        $region31: #{_lambda_.3} parent=11 // pred_region
          _
        $region32: #{_lambda_.3} parent=11 // pred_fallthru
          _
        // Predicated region
        $region33: #{_lambda_.3} parent=11 // pred_check
          %p490 = pneg %p182
        $region34: #{_lambda_.3} parent=11 // pred_check_branch
          %492 = sbr.rel (%p490) target = $region36
        $region35: #{_lambda_.3} parent=11 // pred_region
          _
        $region36: #{_lambda_.3} parent=11 // pred_fallthru
          _
        // Predicated region
        $region37: #{_lambda_.3} parent=11 // pred_check
          %p493 = pneg %p203
        $region38: #{_lambda_.3} parent=11 // pred_check_branch
          %495 = sbr.rel (%p493) target = $region40
        $region39: #{_lambda_.3} parent=11 // pred_region
          _
        $region40: #{_lambda_.3} parent=11 // pred_fallthru
          _
        // Predicated region
        $region41: #{_lambda_.3} parent=11 // pred_check
          %p496 = pneg %p224
        $region42: #{_lambda_.3} parent=11 // pred_check_branch
          %498 = sbr.rel (%p496) target = $region44
        $region43: #{_lambda_.3} parent=11 // pred_region
          _
        $region44: #{_lambda_.3} parent=11 // pred_fallthru
          _
        // Predicated region
        $region45: #{_lambda_.3} parent=11 // pred_check
          %p499 = pneg %p245
        $region46: #{_lambda_.3} parent=11 // pred_check_branch
          %501 = sbr.rel (%p499) target = $region48
        $region47: #{_lambda_.3} parent=11 // pred_region
          _
        $region48: #{_lambda_.3} parent=11 // pred_fallthru
          _
        // Predicated region
        $region49: #{_lambda_.3} parent=11 // pred_check
          %p502 = pneg %p266
        $region50: #{_lambda_.3} parent=11 // pred_check_branch
          %504 = sbr.rel (%p502) target = $region52
        $region51: #{_lambda_.3} parent=11 // pred_region
          _
        $region52: #{_lambda_.3} parent=11 // pred_fallthru
          _
        // Predicated region
        $region53: #{_lambda_.3} parent=11 // pred_check
          %p505 = pneg %p287
        $region54: #{_lambda_.3} parent=11 // pred_check_branch
          %507 = sbr.rel (%p505) target = $region56
        $region55: #{_lambda_.3} parent=11 // pred_region
          _
        $region56: #{_lambda_.3} parent=11 // pred_fallthru
          _
        // Predicated region
        $region57: #{_lambda_.3} parent=11 // pred_check
          %p508 = pneg %p308
        $region58: #{_lambda_.3} parent=11 // pred_check_branch
          %510 = sbr.rel (%p508) target = $region60
        $region59: #{_lambda_.3} parent=11 // pred_region
          _
        $region60: #{_lambda_.3} parent=11 // pred_fallthru
          _
        // Predicated region
        $region61: #{_lambda_.3} parent=11 // pred_check
          %p511 = pneg %p329
        $region62: #{_lambda_.3} parent=11 // pred_check_branch
          %513 = sbr.rel (%p511) target = $region64
        $region63: #{_lambda_.3} parent=11 // pred_region
          _
        $region64: #{_lambda_.3} parent=11 // pred_fallthru
          _
        // Predicated region
        $region65: #{_lambda_.3} parent=11 // pred_check
          %p514 = pneg %p350
        $region66: #{_lambda_.3} parent=11 // pred_check_branch
          %516 = sbr.rel (%p514) target = $region68
        $region67: #{_lambda_.3} parent=11 // pred_region
          _
        $region68: #{_lambda_.3} parent=11 // pred_fallthru
          _
        // Predicated region
        $region69: #{_lambda_.3} parent=11 // pred_check
          %p517 = pneg %p371
        $region70: #{_lambda_.3} parent=11 // pred_check_branch
          %519 = sbr.rel (%p517) target = $region72
        $region71: #{_lambda_.3} parent=11 // pred_region
          _
        $region72: #{_lambda_.3} parent=11 // pred_fallthru
          _
        // Predicated region
        $region73: #{_lambda_.3} parent=11 // pred_check
          %p520 = pneg %p392
        $region74: #{_lambda_.3} parent=11 // pred_check_branch
          %522 = sbr.rel (%p520) target = $region76
        $region75: #{_lambda_.3} parent=11 // pred_region
          _
        $region76: #{_lambda_.3} parent=11 // pred_fallthru
          _
        // Predicated region
        $region77: #{_lambda_.3} parent=11 // pred_check
          %p523 = pneg %p413
        $region78: #{_lambda_.3} parent=11 // pred_check_branch
          %525 = sbr.rel (%p523) target = $region80
        $region79: #{_lambda_.3} parent=11 // pred_region
          _
        $region80: #{_lambda_.3} parent=11 // pred_fallthru
          _
        // Predicated region
        $region81: #{_lambda_.3} parent=11 // pred_check
          %p526 = pneg %p434
        $region82: #{_lambda_.3} parent=11 // pred_check_branch
          %528 = sbr.rel (%p526) target = $region84
        $region83: #{_lambda_.3} parent=11 // pred_region
          _
        $region84: #{_lambda_.3} parent=11 // pred_fallthru
          _
      $region12: #{_lambda_.3} parent=5 // pred_fallthru
        _
      %p529 = scmp.lt.s32.totalorder %s30, 2
      // Predicated region
      $region85: #{_lambda_.3} parent=5 // pred_check
        %p530 = pneg %p529
      $region86: #{_lambda_.3} parent=5 // pred_check_branch
        %532 = sbr.rel (%p530) target = $region88
      $region87: #{_lambda_.3} parent=5 // pred_region
        // Predicated region
        $region89: #{_lambda_.3} parent=87 // pred_check
          %p533 = pneg %p50
        $region90: #{_lambda_.3} parent=87 // pred_check_branch
          %535 = sbr.rel (%p533) target = $region92
        $region91: #{_lambda_.3} parent=87 // pred_region
          %p536 = scmp.lt.s32.totalorder %s30, 1
          %s537 = scalar_select %p536, %s30, 1
          %s538 = smul.addr %s537, 2
          %s539 = smul.addr %s538, 8
          %s540 = scalar_lea.vmem %s0, %s539
        $region92: #{_lambda_.3} parent=87 // pred_fallthru
          _
      $region88: #{_lambda_.3} parent=5 // pred_fallthru
        _
      %p541 = scmp.le.s32.totalorder 1, %s30
      %p542 = scmp.lt.s32.totalorder %s30, 3
      %p543 = pnand %p541, %p542
      %p544 = pneg %p543
      // Predicated region
      $region93: #{_lambda_.3} parent=5 // pred_check
        _
      $region94: #{_lambda_.3} parent=5 // pred_check_branch
        %546 = sbr.rel (%p543) target = $region96
      $region95: #{_lambda_.3} parent=5 // pred_region
        %s547 = ssub.s32 %s30, 1
        %p548 = scmp.lt.s32.totalorder %s35, 1
        %s549 = scalar_select %p548, %s35, 1
        %s550 = smul.addr %s549, 2
        %s551 = smul.addr %s550, 8
        %s552 = scalar_lea.vmem %s0, %s551
        %p553 = pneg %p56
        %p554 = pneg %p53
        %p555 = pneg %p77
        %p556 = pneg %p74
        %p557 = pneg %p98
        %p558 = pneg %p95
        %p559 = pneg %p119
        %p560 = pneg %p116
        %p561 = pneg %p140
        %p562 = pneg %p137
        %p563 = pneg %p161
        %p564 = pneg %p158
        %p565 = pneg %p182
        %p566 = pneg %p179
        %p567 = pneg %p203
        %p568 = pneg %p200
        %p569 = pneg %p224
        %p570 = pneg %p221
        %p571 = pneg %p245
        %p572 = pneg %p242
        %p573 = pneg %p266
        %p574 = pneg %p263
        %p575 = pneg %p287
        %p576 = pneg %p284
        %p577 = pneg %p308
        %p578 = pneg %p305
        %p579 = pneg %p329
        %p580 = pneg %p326
        %p581 = pneg %p350
        %p582 = pneg %p347
        %p583 = pneg %p371
        %p584 = pneg %p368
        %p585 = pneg %p392
        %p586 = pneg %p389
        %p587 = pneg %p413
        %p588 = pneg %p410
        %p589 = pneg %p434
        %p590 = pneg %p431
        %p591 = pneg %p460
        %p592 = pneg %p457
        %s593 = sand.u32 %s447, 1
        %s594 = scalar_lea.sflag [#allocation4], %s593
        %s595 = sand.u32 %s447, 1
        %s596 = scalar_lea.vmem [#allocation3], %s595
        %p597 = scmp.lt.s32.totalorder %s35, 1
        %s598 = scalar_select %p597, %s35, 1
        %s599 = smul.addr %s598, 2
        %s600 = smul.addr %s599, 8
        %s601 = scalar_lea.vmem %s0, %s600
        %v603 = vld [vmem:[%s601] sm:$0xff]
        %v604 = vld [vmem:[%s601 + $0x8] sm:$0xff]
        %v605 = vld [vmem:[%s1] sm:$0xff]
        %v606 = vld [vmem:[%s1 + $0x8] sm:$0xff]
        %v607 = vadd.f32 %v603, %v605
        %v608 = vadd.f32 %v604, %v606
        %v609 = vld [vmem:[%s2] sm:$0x1]
        %v610 = vld [vmem:[%s3] sm:$0x1]
        %vm611 = vcmask 261120
        %v612 = vsel %vm611, %v607, 0.0
        %613 = vadd.xlane.f32.xlu0 %v612
        %v614 = vpop.xlane.xlu0 %613
        %v615 = vsel %vm611, %v608, 0.0
        %616 = vadd.xlane.f32.xlu0 %v615
        %v617 = vpop.xlane.xlu0 %616
        %v618 = vrcp.pop 32.0
        %v619 = vmul.f32 32.0, %v618
        %v620 = vsub.f32 1.0, %v619
        %v621 = vmul.f32 %v618, %v620
        %v622 = vadd.f32 %v618, %v621
        %vm623 = vweird.f32 %v618
        %v624 = vsel %vm623, %v618, %v622
        %v625 = vmul.f32 %v614, %v624
        %v626 = vmul.f32 %v617, %v624
        %v627 = vsub.f32 %v607, %v625
        %v628 = vsub.f32 %v608, %v626
        %v629 = vmul.f32 %v627, %v627
        %v630 = vmul.f32 %v628, %v628
        %v631 = vsel %vm611, %v629, 0.0
        %632 = vadd.xlane.f32.xlu0 %v631
        %v633 = vpop.xlane.xlu0 %632
        %v634 = vsel %vm611, %v630, 0.0
        %635 = vadd.xlane.f32.xlu0 %v634
        %v636 = vpop.xlane.xlu0 %635
        %v637 = vmul.f32 %v633, %v624
        %v638 = vmul.f32 %v636, %v624
        %v639 = vadd.f32 %v637, 1e-05
        %v640 = vadd.f32 %v638, 1e-05
        %v641 = vrsqrt.pop %v639
        %v642 = vmul.f32 %v641, %v639
        %v643 = vmul.f32 %v642, %v641
        %v644 = vmul.f32 0.5, %v643
        %v645 = vsub.f32 1.5, %v644
        %v646 = vmul.f32 %v641, %v645
        %vm647 = vweird.f32 %v639
        %vm648 = vweird.f32 %v641
        %vm649 = vmor %vm647, %vm648
        %v650 = vsel %vm649, %v641, %v646
        %v651 = vrsqrt.pop %v640
        %v652 = vmul.f32 %v651, %v640
        %v653 = vmul.f32 %v652, %v651
        %v654 = vmul.f32 0.5, %v653
        %v655 = vsub.f32 1.5, %v654
        %v656 = vmul.f32 %v651, %v655
        %vm657 = vweird.f32 %v640
        %vm658 = vweird.f32 %v651
        %vm659 = vmor %vm657, %vm658
        %v660 = vsel %vm659, %v651, %v656
        %v661 = vmul.f32 %v627, %v650
        %v662 = vmul.f32 %v628, %v660
        %v664 = vperm.slane %v609, 0
        %v666 = vmul.f32 %v661, %v664
        %v667 = vmul.f32 %v662, %v664
        %v669 = vperm.slane %v610, 0
        %v671 = vadd.f32 %v666, %v669
        %v672 = vadd.f32 %v667, %v669
        %v673 = vpack.c.bf16 %v672, %v671
        %v674 = vld [vmem:[%s4] sm:$0xf]
        %v675 = vld [vmem:[%s4 + $0x4] sm:$0xf]
        %v676 = vld [vmem:[%s4 + $0x8] sm:$0xf]
        %v677 = vld [vmem:[%s4 + $0xc] sm:$0xf]
        %v682 = vunpack.c.l.b16 %v674
        %v683 = vunpack.c.l.b16 %v675
        %v684 = vunpack.c.l.b16 %v676
        %v685 = vunpack.c.l.b16 %v677
        %v686 = vpack.c.b16 %v683, %v682
        %v687 = vpack.c.b16 %v685, %v684
        %v691 = vsel %vm611, %v673, 0
        %693 = vmatpush.bf16.msra.mxu0 0
        %694 = vmatpush.bf16.msra.mxu0 0
        %695 = vmatpush.bf16.msra.mxu0 0
        %696 = vmatpush.bf16.msra.mxu0 0
        %697 = vmatpush.bf16.msra.mxu0 0
        %698 = vmatpush.bf16.msra.mxu0 0
        %699 = vmatpush.bf16.msra.mxu0 %v687
        %700 = vmatpush.bf16.msra.mxu0 %v686
        %701 = vmatmul.bf16.gmra.mxu0 %v691
        %v702 = vpop.f32.mrf.mxu0
        %v703 = vadd.f32 0.0, %v702
        %v704 = vpop.f32.mrf.mxu0
        %v705 = vadd.f32 0.0, %v704
        %706 = vdwg.mxu0
        %v707 = vpack.c.bf16 %v705, %v703
        %709 = vrot.lane.b32.xlu0 %v707, 96
        %v710 = vpop.permute.xlu0 %709
        %vm711 = vcmask 64512
        %v713 = vsel %vm711, %v707, 0
        %v716 = vsel %vm711, %v710, 0
        %718 = vmatpush.bf16.xpose.msra.mxu0 0
        %719 = vmatpush.bf16.xpose.msra.mxu0 0
        %720 = vmatpush.bf16.xpose.msra.mxu0 0
        %721 = vmatpush.bf16.xpose.msra.mxu0 0
        %722 = vmatpush.bf16.xpose.msra.mxu0 0
        %723 = vmatpush.bf16.xpose.msra.mxu0 0
        %724 = vmatpush.bf16.xpose.msra.mxu0 0
        %725 = vmatpush.bf16.xpose.msra.mxu0 %v716
        %726 = vmatmul.bf16.gmra.mxu0 %v713
        %v727 = vpop.f32.mrf.mxu0
        %v728 = vadd.f32 0.0, %v727
        %v729 = vpop.f32.mrf.mxu0
        %v730 = vadd.f32 0.0, %v729
        %731 = vdwg.mxu0
        %v732 = vmul.f32 %v728, 0.35355338
        %v733 = vmul.f32 %v730, 0.35355338
        %vm734 = vcmask 130048
        %v735 = vsel %vm734, %v732, -inf
        %736 = vmax.xlane.f32.xlu0 %v735
        %v737 = vpop.xlane.xlu0 %736
        %v738 = vsel %vm734, %v733, -inf
        %739 = vmax.xlane.f32.xlu0 %v738
        %v740 = vpop.xlane.xlu0 %739
        %v741 = vsub.f32 %v732, %v737
        %v742 = vsub.f32 %v733, %v740
        %v743 = vmul.f32 %v741, 1.442695
        %v744 = vpow.pop %v743
        %v745 = vmul.f32 %v742, 1.442695
        %v746 = vpow.pop %v745
        %v747 = vsel %vm734, %v744, 0.0
        %748 = vadd.xlane.f32.xlu0 %v747
        %v749 = vpop.xlane.xlu0 %748
        %v750 = vsel %vm734, %v746, 0.0
        %751 = vadd.xlane.f32.xlu0 %v750
        %v752 = vpop.xlane.xlu0 %751
        %v753 = vrcp.pop %v749
        %v754 = vrcp.pop %v752
        %v755 = vmul.f32 %v744, %v753
        %v756 = vmul.f32 %v746, %v754
        %v757 = vpack.c.bf16 %v756, %v755
        %758 = vrot.lane.b32.xlu0 %v707, 64
        %v759 = vpop.permute.xlu0 %758
        %v762 = vsel %vm734, %v757, 0
        %764 = vmatpush.bf16.msra.mxu0 0
        %765 = vmatpush.bf16.msra.mxu0 0
        %766 = vmatpush.bf16.msra.mxu0 0
        %767 = vmatpush.bf16.msra.mxu0 0
        %768 = vmatpush.bf16.msra.mxu0 0
        %769 = vmatpush.bf16.msra.mxu0 0
        %770 = vmatpush.bf16.msra.mxu0 0
        %771 = vmatpush.bf16.msra.mxu0 %v759
        %772 = vmatmul.bf16.gmra.mxu0 %v762
        %v773 = vpop.f32.mrf.mxu0
        %v774 = vadd.f32 0.0, %v773
        %v775 = vpop.f32.mrf.mxu0
        %v776 = vadd.f32 0.0, %v775
        %777 = vdwg.mxu0
        %v778 = vpack.c.bf16 %v776, %v774
        %v779 = vld [vmem:[%s5] sm:$0xf]
        %780 = vrot.lane.b32.xlu0 %v707, 120
        %v781 = vpop.permute.xlu0 %780
        %782 = vrot.lane.b32.xlu0 %v707, 88
        %v783 = vpop.permute.xlu0 %782
        %v785 = vsel %vm711, %v781, 0
        %v788 = vsel %vm711, %v783, 0
        %790 = vmatpush.bf16.xpose.msra.mxu0 0
        %791 = vmatpush.bf16.xpose.msra.mxu0 0
        %792 = vmatpush.bf16.xpose.msra.mxu0 0
        %793 = vmatpush.bf16.xpose.msra.mxu0 0
        %794 = vmatpush.bf16.xpose.msra.mxu0 0
        %795 = vmatpush.bf16.xpose.msra.mxu0 0
        %796 = vmatpush.bf16.xpose.msra.mxu0 0
        %797 = vmatpush.bf16.xpose.msra.mxu0 %v788
        %798 = vmatmul.bf16.gmra.mxu0 %v785
        %v799 = vpop.f32.mrf.mxu0
        %v800 = vadd.f32 0.0, %v799
        %v801 = vpop.f32.mrf.mxu0
        %v802 = vadd.f32 0.0, %v801
        %803 = vdwg.mxu0
        %v804 = vmul.f32 %v800, 0.35355338
        %v805 = vmul.f32 %v802, 0.35355338
        %v806 = vsel %vm734, %v804, -inf
        %807 = vmax.xlane.f32.xlu0 %v806
        %v808 = vpop.xlane.xlu0 %807
        %v809 = vsel %vm734, %v805, -inf
        %810 = vmax.xlane.f32.xlu0 %v809
        %v811 = vpop.xlane.xlu0 %810
        %v812 = vsub.f32 %v804, %v808
        %v813 = vsub.f32 %v805, %v811
        %v814 = vmul.f32 %v812, 1.442695
        %v815 = vpow.pop %v814
        %v816 = vmul.f32 %v813, 1.442695
        %v817 = vpow.pop %v816
        %v818 = vsel %vm734, %v815, 0.0
        %819 = vadd.xlane.f32.xlu0 %v818
        %v820 = vpop.xlane.xlu0 %819
        %v821 = vsel %vm734, %v817, 0.0
        %822 = vadd.xlane.f32.xlu0 %v821
        %v823 = vpop.xlane.xlu0 %822
        %v824 = vrcp.pop %v820
        %v825 = vrcp.pop %v823
        %v826 = vmul.f32 %v815, %v824
        %v827 = vmul.f32 %v817, %v825
        %v828 = vpack.c.bf16 %v827, %v826
        %829 = vrot.lane.b32.xlu0 %v707, 56
        %v830 = vpop.permute.xlu0 %829
        %v833 = vsel %vm734, %v828, 0
        %835 = vmatpush.bf16.msra.mxu0 0
        %836 = vmatpush.bf16.msra.mxu0 0
        %837 = vmatpush.bf16.msra.mxu0 0
        %838 = vmatpush.bf16.msra.mxu0 0
        %839 = vmatpush.bf16.msra.mxu0 0
        %840 = vmatpush.bf16.msra.mxu0 0
        %841 = vmatpush.bf16.msra.mxu0 0
        %842 = vmatpush.bf16.msra.mxu0 %v830
        %843 = vmatmul.bf16.gmra.mxu0 %v833
        %v844 = vpop.f32.mrf.mxu0
        %v845 = vadd.f32 0.0, %v844
        %v846 = vpop.f32.mrf.mxu0
        %v847 = vadd.f32 0.0, %v846
        %848 = vdwg.mxu0
        %v849 = vpack.c.bf16 %v847, %v845
        %s850 = scalar_lea.vmem %s5, 4
        %v851 = vld [vmem:[%s850] sm:$0xf]
        %v853 = vsel %vm711, %v849, 0
        %vm855 = vcmask 1043456
        %v857 = vsel %vm855, %v851, 0
        %859 = vmatpush.bf16.msra.mxu0 0
        %860 = vmatpush.bf16.msra.mxu0 0
        %861 = vmatpush.bf16.msra.mxu0 0
        %862 = vmatpush.bf16.msra.mxu0 0
        %863 = vmatpush.bf16.msra.mxu0 0
        %864 = vmatpush.bf16.msra.mxu0 0
        %865 = vmatpush.bf16.msra.mxu0 0
        %866 = vmatpush.bf16.msra.mxu0 %v857
        %867 = vmatmul.bf16.gmra.mxu0 %v853
        %v868 = vpop.f32.mrf.mxu0
        %v869 = vadd.f32 0.0, %v868
        %v870 = vpop.f32.mrf.mxu0
        %v871 = vadd.f32 0.0, %v870
        %872 = vdwg.mxu0
        %v874 = vsel %vm711, %v778, 0
        %v877 = vsel %vm855, %v779, 0
        %879 = vmatpush.bf16.msra.mxu0 0
        %880 = vmatpush.bf16.msra.mxu0 0
        %881 = vmatpush.bf16.msra.mxu0 0
        %882 = vmatpush.bf16.msra.mxu0 0
        %883 = vmatpush.bf16.msra.mxu0 0
        %884 = vmatpush.bf16.msra.mxu0 0
        %885 = vmatpush.bf16.msra.mxu0 0
        %886 = vmatpush.bf16.msra.mxu0 %v877
        %887 = vmatmul.bf16.gmra.mxu0 %v874
        %v888 = vpop.f32.mrf.mxu0
        %v889 = vadd.f32 %v869, %v888
        %v890 = vpop.f32.mrf.mxu0
        %v891 = vadd.f32 %v871, %v890
        %892 = vdwg.mxu0
        %893 = vrot.lane.b32.xlu0 %v707, 112
        %v894 = vpop.permute.xlu0 %893
        %895 = vrot.lane.b32.xlu0 %v707, 80
        %v896 = vpop.permute.xlu0 %895
        %v898 = vsel %vm711, %v894, 0
        %v901 = vsel %vm711, %v896, 0
        %903 = vmatpush.bf16.xpose.msra.mxu0 0
        %904 = vmatpush.bf16.xpose.msra.mxu0 0
        %905 = vmatpush.bf16.xpose.msra.mxu0 0
        %906 = vmatpush.bf16.xpose.msra.mxu0 0
        %907 = vmatpush.bf16.xpose.msra.mxu0 0
        %908 = vmatpush.bf16.xpose.msra.mxu0 0
        %909 = vmatpush.bf16.xpose.msra.mxu0 0
        %910 = vmatpush.bf16.xpose.msra.mxu0 %v901
        %911 = vmatmul.bf16.gmra.mxu0 %v898
        %v912 = vpop.f32.mrf.mxu0
        %v913 = vadd.f32 0.0, %v912
        %v914 = vpop.f32.mrf.mxu0
        %v915 = vadd.f32 0.0, %v914
        %916 = vdwg.mxu0
        %v917 = vmul.f32 %v913, 0.35355338
        %v918 = vmul.f32 %v915, 0.35355338
        %v919 = vsel %vm734, %v917, -inf
        %920 = vmax.xlane.f32.xlu0 %v919
        %v921 = vpop.xlane.xlu0 %920
        %v922 = vsel %vm734, %v918, -inf
        %923 = vmax.xlane.f32.xlu0 %v922
        %v924 = vpop.xlane.xlu0 %923
        %v925 = vsub.f32 %v917, %v921
        %v926 = vsub.f32 %v918, %v924
        %v927 = vmul.f32 %v925, 1.442695
        %v928 = vpow.pop %v927
        %v929 = vmul.f32 %v926, 1.442695
        %v930 = vpow.pop %v929
        %v931 = vsel %vm734, %v928, 0.0
        %932 = vadd.xlane.f32.xlu0 %v931
        %v933 = vpop.xlane.xlu0 %932
        %v934 = vsel %vm734, %v930, 0.0
        %935 = vadd.xlane.f32.xlu0 %v934
        %v936 = vpop.xlane.xlu0 %935
        %v937 = vrcp.pop %v933
        %v938 = vrcp.pop %v936
        %v939 = vmul.f32 %v928, %v937
        %v940 = vmul.f32 %v930, %v938
        %v941 = vpack.c.bf16 %v940, %v939
        %942 = vrot.lane.b32.xlu0 %v707, 48
        %v943 = vpop.permute.xlu0 %942
        %v946 = vsel %vm734, %v941, 0
        %948 = vmatpush.bf16.msra.mxu0 0
        %949 = vmatpush.bf16.msra.mxu0 0
        %950 = vmatpush.bf16.msra.mxu0 0
        %951 = vmatpush.bf16.msra.mxu0 0
        %952 = vmatpush.bf16.msra.mxu0 0
        %953 = vmatpush.bf16.msra.mxu0 0
        %954 = vmatpush.bf16.msra.mxu0 0
        %955 = vmatpush.bf16.msra.mxu0 %v943
        %956 = vmatmul.bf16.gmra.mxu0 %v946
        %v957 = vpop.f32.mrf.mxu0
        %v958 = vadd.f32 0.0, %v957
        %v959 = vpop.f32.mrf.mxu0
        %v960 = vadd.f32 0.0, %v959
        %961 = vdwg.mxu0
        %v962 = vpack.c.bf16 %v960, %v958
        %s963 = scalar_lea.vmem %s5, 8
        %v964 = vld [vmem:[%s963] sm:$0xf]
        %v966 = vsel %vm711, %v962, 0
        %v969 = vsel %vm855, %v964, 0
        %971 = vmatpush.bf16.msra.mxu0 0
        %972 = vmatpush.bf16.msra.mxu0 0
        %973 = vmatpush.bf16.msra.mxu0 0
        %974 = vmatpush.bf16.msra.mxu0 0
        %975 = vmatpush.bf16.msra.mxu0 0
        %976 = vmatpush.bf16.msra.mxu0 0
        %977 = vmatpush.bf16.msra.mxu0 0
        %978 = vmatpush.bf16.msra.mxu0 %v969
        %979 = vmatmul.bf16.gmra.mxu0 %v966
        %v980 = vpop.f32.mrf.mxu0
        %v981 = vadd.f32 0.0, %v980
        %v982 = vpop.f32.mrf.mxu0
        %v983 = vadd.f32 0.0, %v982
        %984 = vdwg.mxu0
        %v985 = vadd.f32 %v889, %v981
        %v986 = vadd.f32 %v891, %v983
        %987 = vrot.lane.b32.xlu0 %v707, 104
        %v988 = vpop.permute.xlu0 %987
        %989 = vrot.lane.b32.xlu0 %v707, 72
        %v990 = vpop.permute.xlu0 %989
        %v992 = vsel %vm711, %v988, 0
        %v995 = vsel %vm711, %v990, 0
        %997 = vmatpush.bf16.xpose.msra.mxu0 0
        %998 = vmatpush.bf16.xpose.msra.mxu0 0
        %999 = vmatpush.bf16.xpose.msra.mxu0 0
        %1000 = vmatpush.bf16.xpose.msra.mxu0 0
        %1001 = vmatpush.bf16.xpose.msra.mxu0 0
        %1002 = vmatpush.bf16.xpose.msra.mxu0 0
        %1003 = vmatpush.bf16.xpose.msra.mxu0 0
        %1004 = vmatpush.bf16.xpose.msra.mxu0 %v995
        %1005 = vmatmul.bf16.gmra.mxu0 %v992
        %v1006 = vpop.f32.mrf.mxu0
        %v1007 = vadd.f32 0.0, %v1006
        %v1008 = vpop.f32.mrf.mxu0
        %v1009 = vadd.f32 0.0, %v1008
        %1010 = vdwg.mxu0
        %v1011 = vmul.f32 %v1007, 0.35355338
        %v1012 = vmul.f32 %v1009, 0.35355338
        %v1013 = vsel %vm734, %v1011, -inf
        %1014 = vmax.xlane.f32.xlu0 %v1013
        %v1015 = vpop.xlane.xlu0 %1014
        %v1016 = vsel %vm734, %v1012, -inf
        %1017 = vmax.xlane.f32.xlu0 %v1016
        %v1018 = vpop.xlane.xlu0 %1017
        %v1019 = vsub.f32 %v1011, %v1015
        %v1020 = vsub.f32 %v1012, %v1018
        %v1021 = vmul.f32 %v1019, 1.442695
        %v1022 = vpow.pop %v1021
        %v1023 = vmul.f32 %v1020, 1.442695
        %v1024 = vpow.pop %v1023
        %v1025 = vsel %vm734, %v1022, 0.0
        %1026 = vadd.xlane.f32.xlu0 %v1025
        %v1027 = vpop.xlane.xlu0 %1026
        %v1028 = vsel %vm734, %v1024, 0.0
        %1029 = vadd.xlane.f32.xlu0 %v1028
        %v1030 = vpop.xlane.xlu0 %1029
        %v1031 = vrcp.pop %v1027
        %v1032 = vrcp.pop %v1030
        %v1033 = vmul.f32 %v1022, %v1031
        %v1034 = vmul.f32 %v1024, %v1032
        %v1035 = vpack.c.bf16 %v1034, %v1033
        %1036 = vrot.lane.b32.xlu0 %v707, 40
        %v1037 = vpop.permute.xlu0 %1036
        %v1040 = vsel %vm734, %v1035, 0
        %1042 = vmatpush.bf16.msra.mxu0 0
        %1043 = vmatpush.bf16.msra.mxu0 0
        %1044 = vmatpush.bf16.msra.mxu0 0
        %1045 = vmatpush.bf16.msra.mxu0 0
        %1046 = vmatpush.bf16.msra.mxu0 0
        %1047 = vmatpush.bf16.msra.mxu0 0
        %1048 = vmatpush.bf16.msra.mxu0 0
        %1049 = vmatpush.bf16.msra.mxu0 %v1037
        %1050 = vmatmul.bf16.gmra.mxu0 %v1040
        %v1051 = vpop.f32.mrf.mxu0
        %v1052 = vadd.f32 0.0, %v1051
        %v1053 = vpop.f32.mrf.mxu0
        %v1054 = vadd.f32 0.0, %v1053
        %1055 = vdwg.mxu0
        %v1056 = vpack.c.bf16 %v1054, %v1052
        %s1057 = scalar_lea.vmem %s5, 12
        %v1058 = vld [vmem:[%s1057] sm:$0xf]
        %v1060 = vsel %vm711, %v1056, 0
        %v1063 = vsel %vm855, %v1058, 0
        %1065 = vmatpush.bf16.msra.mxu0 0
        %1066 = vmatpush.bf16.msra.mxu0 0
        %1067 = vmatpush.bf16.msra.mxu0 0
        %1068 = vmatpush.bf16.msra.mxu0 0
        %1069 = vmatpush.bf16.msra.mxu0 0
        %1070 = vmatpush.bf16.msra.mxu0 0
        %1071 = vmatpush.bf16.msra.mxu0 0
        %1072 = vmatpush.bf16.msra.mxu0 %v1063
        %1073 = vmatmul.bf16.gmra.mxu0 %v1060
        %v1074 = vpop.f32.mrf.mxu0
        %v1075 = vadd.f32 0.0, %v1074
        %v1076 = vpop.f32.mrf.mxu0
        %v1077 = vadd.f32 0.0, %v1076
        %1078 = vdwg.mxu0
        %v1079 = vadd.f32 %v985, %v1075
        %v1080 = vadd.f32 %v986, %v1077
        %v1081 = vadd.f32 %v607, %v1079
        %v1082 = vadd.f32 %v608, %v1080
        %v1083 = vld [vmem:[%s6] sm:$0x1]
        %v1085 = vperm.slane %v1083, 0
        %v1087 = vadd.f32 %v1081, %v1085
        %v1088 = vadd.f32 %v1082, %v1085
        %v1089 = vld [vmem:[%s7] sm:$0x1]
        %v1090 = vld [vmem:[%s8] sm:$0x1]
        %v1091 = vsel %vm611, %v1087, 0.0
        %1092 = vadd.xlane.f32.xlu0 %v1091
        %v1093 = vpop.xlane.xlu0 %1092
        %v1094 = vsel %vm611, %v1088, 0.0
        %1095 = vadd.xlane.f32.xlu0 %v1094
        %v1096 = vpop.xlane.xlu0 %1095
        %v1097 = vmul.f32 %v1093, %v624
        %v1098 = vmul.f32 %v1096, %v624
        %v1099 = vsub.f32 %v1087, %v1097
        %v1100 = vsub.f32 %v1088, %v1098
        %v1101 = vmul.f32 %v1099, %v1099
        %v1102 = vmul.f32 %v1100, %v1100
        %v1103 = vsel %vm611, %v1101, 0.0
        %1104 = vadd.xlane.f32.xlu0 %v1103
        %v1105 = vpop.xlane.xlu0 %1104
        %v1106 = vsel %vm611, %v1102, 0.0
        %1107 = vadd.xlane.f32.xlu0 %v1106
        %v1108 = vpop.xlane.xlu0 %1107
        %v1109 = vmul.f32 %v1105, %v624
        %v1110 = vmul.f32 %v1108, %v624
        %v1111 = vadd.f32 %v1109, 1e-05
        %v1112 = vadd.f32 %v1110, 1e-05
        %v1113 = vrsqrt.pop %v1111
        %v1114 = vmul.f32 %v1113, %v1111
        %v1115 = vmul.f32 %v1114, %v1113
        %v1116 = vmul.f32 0.5, %v1115
        %v1117 = vsub.f32 1.5, %v1116
        %v1118 = vmul.f32 %v1113, %v1117
        %vm1119 = vweird.f32 %v1111
        %vm1120 = vweird.f32 %v1113
        %vm1121 = vmor %vm1119, %vm1120
        %v1122 = vsel %vm1121, %v1113, %v1118
        %v1123 = vrsqrt.pop %v1112
        %v1124 = vmul.f32 %v1123, %v1112
        %v1125 = vmul.f32 %v1124, %v1123
        %v1126 = vmul.f32 0.5, %v1125
        %v1127 = vsub.f32 1.5, %v1126
        %v1128 = vmul.f32 %v1123, %v1127
        %vm1129 = vweird.f32 %v1112
        %vm1130 = vweird.f32 %v1123
        %vm1131 = vmor %vm1129, %vm1130
        %v1132 = vsel %vm1131, %v1123, %v1128
        %v1133 = vmul.f32 %v1099, %v1122
        %v1134 = vmul.f32 %v1100, %v1132
        %v1136 = vperm.slane %v1089, 0
        %v1138 = vmul.f32 %v1133, %v1136
        %v1139 = vmul.f32 %v1134, %v1136
        %v1141 = vperm.slane %v1090, 0
        %v1143 = vadd.f32 %v1138, %v1141
        %v1144 = vadd.f32 %v1139, %v1141
        %v1145 = vpack.c.bf16 %v1144, %v1143
        %v1146 = vld [vmem:[%s9] sm:$0xf]
        %v1147 = vld [vmem:[%s9 + $0x4] sm:$0xf]
        %v1148 = vld [vmem:[%s9 + $0x8] sm:$0xf]
        %v1149 = vld [vmem:[%s9 + $0xc] sm:$0xf]
        %v1150 = vld [vmem:[%s10] sm:$0x1]
        %v1152 = vperm.slane %v1150, 0
        %v1158 = vunpack.c.l.b16 %v1146
        %v1159 = vunpack.c.l.b16 %v1147
        %v1160 = vunpack.c.l.b16 %v1148
        %v1161 = vunpack.c.l.b16 %v1149
        %v1162 = vpack.c.b16 %v1159, %v1158
        %v1163 = vpack.c.b16 %v1161, %v1160
        %v1167 = vsel %vm611, %v1145, 0
        %1169 = vmatpush.bf16.msra.mxu0 0
        %1170 = vmatpush.bf16.msra.mxu0 0
        %1171 = vmatpush.bf16.msra.mxu0 0
        %1172 = vmatpush.bf16.msra.mxu0 0
        %1173 = vmatpush.bf16.msra.mxu0 0
        %1174 = vmatpush.bf16.msra.mxu0 0
        %1175 = vmatpush.bf16.msra.mxu0 %v1163
        %1176 = vmatpush.bf16.msra.mxu0 %v1162
        %1177 = vmatmul.bf16.gmra.mxu0 %v1167
        %v1178 = vpop.f32.mrf.mxu0
        %v1179 = vadd.f32 %v1152, %v1178
        %v1180 = vpop.f32.mrf.mxu0
        %v1181 = vadd.f32 %v1152, %v1180
        %1182 = vdwg.mxu0
        %v1183 = vmul.f32 %v1179, 0.5
        %v1184 = vmul.f32 %v1181, 0.5
        %v1185 = vmul.f32 %v1179, 0.70710677
        %v1186 = vmul.f32 %v1181, 0.70710677
        %vm1187 = vcmp.ge.f32.partialorder %v1185, 0.0
        %vm1188 = vcmp.ge.f32.partialorder %v1186, 0.0
        %v1189 = vsel %vm1187, 1.0, -1.0
        %v1190 = vsel %vm1188, 1.0, -1.0
        %v1191 = vand.u32 2147483647, %v1185
        %v1192 = vand.u32 2147483647, %v1186
        %v1193 = vmul.f32 %v1191, 0.3275911
        %v1194 = vmul.f32 %v1192, 0.3275911
        %v1195 = vadd.f32 %v1193, 1.0
        %v1196 = vadd.f32 %v1194, 1.0
        %v1197 = vrcp.pop %v1195
        %v1198 = vmul.f32 %v1195, %v1197
        %v1199 = vsub.f32 1.0, %v1198
        %v1200 = vmul.f32 %v1197, %v1199
        %v1201 = vadd.f32 %v1197, %v1200
        %vm1202 = vweird.f32 %v1195
        %vm1203 = vweird.f32 %v1197
        %vm1204 = vmor %vm1202, %vm1203
        %v1205 = vsel %vm1204, %v1197, %v1201
        %v1206 = vand.u32 2147483647, %v1195
        %vm1207 = vcmp.eq.f32.partialorder %v1206, 8.507059e+37
        %v1208 = vand.u32 %v1195, 2147483648
        %v1209 = vor.u32 1.1754944e-38, %v1208
        %v1210 = vsel %vm1207, %v1209, %v1205
        %v1211 = vmul.f32 1.0, %v1210
        %v1212 = vrcp.pop %v1196
        %v1213 = vmul.f32 %v1196, %v1212
        %v1214 = vsub.f32 1.0, %v1213
        %v1215 = vmul.f32 %v1212, %v1214
        %v1216 = vadd.f32 %v1212, %v1215
        %vm1217 = vweird.f32 %v1196
        %vm1218 = vweird.f32 %v1212
        %vm1219 = vmor %vm1217, %vm1218
        %v1220 = vsel %vm1219, %v1212, %v1216
        %v1221 = vand.u32 2147483647, %v1196
        %vm1222 = vcmp.eq.f32.partialorder %v1221, 8.507059e+37
        %v1223 = vand.u32 %v1196, 2147483648
        %v1224 = vor.u32 1.1754944e-38, %v1223
        %v1225 = vsel %vm1222, %v1224, %v1220
        %v1226 = vmul.f32 1.0, %v1225
        %v1227 = vmul.f32 %v1211, 1.0614054
        %v1228 = vmul.f32 %v1226, 1.0614054
        %v1229 = vadd.f32 %v1227, -1.4531521
        %v1230 = vadd.f32 %v1228, -1.4531521
        %v1231 = vmul.f32 %v1229, %v1211
        %v1232 = vmul.f32 %v1230, %v1226
        %v1233 = vadd.f32 %v1231, 1.4214138
        %v1234 = vadd.f32 %v1232, 1.4214138
        %v1235 = vmul.f32 %v1233, %v1211
        %v1236 = vmul.f32 %v1234, %v1226
        %v1237 = vadd.f32 %v1235, -0.28449672
        %v1238 = vadd.f32 %v1236, -0.28449672
        %v1239 = vmul.f32 %v1237, %v1211
        %v1240 = vmul.f32 %v1238, %v1226
        %v1241 = vadd.f32 %v1239, 0.2548296
        %v1242 = vadd.f32 %v1240, 0.2548296
        %v1243 = vmul.f32 %v1241, %v1211
        %v1244 = vmul.f32 %v1242, %v1226
        %v1245 = vmul.f32 %v1191, %v1191
        %v1246 = vmul.f32 %v1192, %v1192
        %v1247 = vsub.f32 0.0, %v1245
        %v1248 = vsub.f32 0.0, %v1246
        %v1249 = vmul.f32 %v1247, 1.442695
        %v1250 = vpow.pop %v1249
        %v1251 = vmul.f32 %v1248, 1.442695
        %v1252 = vpow.pop %v1251
        %v1253 = vmul.f32 %v1243, %v1250
        %v1254 = vmul.f32 %v1244, %v1252
        %v1255 = vsub.f32 1.0, %v1253
        %v1256 = vsub.f32 1.0, %v1254
        %v1257 = vmul.f32 %v1189, %v1255
        %v1258 = vmul.f32 %v1190, %v1256
        %v1259 = vadd.f32 %v1257, 1.0
        %v1260 = vadd.f32 %v1258, 1.0
        %v1261 = vmul.f32 %v1183, %v1259
        %v1262 = vmul.f32 %v1184, %v1260
        %v1263 = vpack.c.bf16 %v1262, %v1261
        %v1264 = vld [vmem:[%s11] sm:$0xf]
        %v1265 = vld [vmem:[%s11 + $0x4] sm:$0xf]
        %v1266 = vld [vmem:[%s11 + $0x8] sm:$0xf]
        %v1267 = vld [vmem:[%s11 + $0xc] sm:$0xf]
        %v1268 = vld [vmem:[%s11 + $0x10] sm:$0xf]
        %v1269 = vld [vmem:[%s11 + $0x14] sm:$0xf]
        %v1270 = vld [vmem:[%s11 + $0x18] sm:$0xf]
        %v1271 = vld [vmem:[%s11 + $0x1c] sm:$0xf]
        %v1272 = vld [vmem:[%s11 + $0x20] sm:$0xf]
        %v1273 = vld [vmem:[%s11 + $0x24] sm:$0xf]
        %v1274 = vld [vmem:[%s11 + $0x28] sm:$0xf]
        %v1275 = vld [vmem:[%s11 + $0x2c] sm:$0xf]
        %v1276 = vld [vmem:[%s11 + $0x30] sm:$0xf]
        %v1277 = vld [vmem:[%s11 + $0x34] sm:$0xf]
        %v1278 = vld [vmem:[%s11 + $0x38] sm:$0xf]
        %v1279 = vld [vmem:[%s11 + $0x3c] sm:$0xf]
        %v1296 = vunpack.c.l.b16 %v1264
        %v1297 = vunpack.c.l.b16 %v1265
        %v1298 = vunpack.c.l.b16 %v1266
        %v1299 = vunpack.c.l.b16 %v1267
        %v1300 = vunpack.c.l.b16 %v1268
        %v1301 = vunpack.c.l.b16 %v1269
        %v1302 = vunpack.c.l.b16 %v1270
        %v1303 = vunpack.c.l.b16 %v1271
        %v1304 = vunpack.c.l.b16 %v1272
        %v1305 = vunpack.c.l.b16 %v1273
        %v1306 = vunpack.c.l.b16 %v1274
        %v1307 = vunpack.c.l.b16 %v1275
        %v1308 = vunpack.c.l.b16 %v1276
        %v1309 = vunpack.c.l.b16 %v1277
        %v1310 = vunpack.c.l.b16 %v1278
        %v1311 = vunpack.c.l.b16 %v1279
        %v1312 = vpack.c.b16 %v1297, %v1296
        %v1313 = vpack.c.b16 %v1299, %v1298
        %v1314 = vpack.c.b16 %v1301, %v1300
        %v1315 = vpack.c.b16 %v1303, %v1302
        %v1316 = vpack.c.b16 %v1305, %v1304
        %v1317 = vpack.c.b16 %v1307, %v1306
        %v1318 = vpack.c.b16 %v1309, %v1308
        %v1319 = vpack.c.b16 %v1311, %v1310
        %1328 = vmatpush.bf16.msra.mxu0 %v1319
        %1329 = vmatpush.bf16.msra.mxu0 %v1318
        %1330 = vmatpush.bf16.msra.mxu0 %v1317
        %1331 = vmatpush.bf16.msra.mxu0 %v1316
        %1332 = vmatpush.bf16.msra.mxu0 %v1315
        %1333 = vmatpush.bf16.msra.mxu0 %v1314
        %1334 = vmatpush.bf16.msra.mxu0 %v1313
        %1335 = vmatpush.bf16.msra.mxu0 %v1312
        %1336 = vmatmul.bf16.gmra.mxu0 %v1263
        %v1337 = vpop.f32.mrf.mxu0
        %v1338 = vadd.f32 0.0, %v1337
        %v1339 = vpop.f32.mrf.mxu0
        %v1340 = vadd.f32 0.0, %v1339
        %1341 = vdwg.mxu0
        %v1342 = vadd.f32 %v1143, %v1338
        %v1343 = vadd.f32 %v1144, %v1340
        %v1344 = vld [vmem:[%s12] sm:$0x1]
        %v1346 = vperm.slane %v1344, 0
        %v1348 = vadd.f32 %v1342, %v1346
        %v1349 = vadd.f32 %v1343, %v1346
        %s1350 = scalar_lea.vmem %s2, 1
        %v1351 = vld [vmem:[%s1350] sm:$0x1]
        %s1352 = scalar_lea.vmem %s3, 1
        %v1353 = vld [vmem:[%s1352] sm:$0x1]
        %v1354 = vsel %vm611, %v1348, 0.0
        %1355 = vadd.xlane.f32.xlu0 %v1354
        %v1356 = vpop.xlane.xlu0 %1355
        %v1357 = vsel %vm611, %v1349, 0.0
        %1358 = vadd.xlane.f32.xlu0 %v1357
        %v1359 = vpop.xlane.xlu0 %1358
        %v1360 = vmul.f32 %v1356, %v624
        %v1361 = vmul.f32 %v1359, %v624
        %v1362 = vsub.f32 %v1348, %v1360
        %v1363 = vsub.f32 %v1349, %v1361
        %v1364 = vmul.f32 %v1362, %v1362
        %v1365 = vmul.f32 %v1363, %v1363
        %v1366 = vsel %vm611, %v1364, 0.0
        %1367 = vadd.xlane.f32.xlu0 %v1366
        %v1368 = vpop.xlane.xlu0 %1367
        %v1369 = vsel %vm611, %v1365, 0.0
        %1370 = vadd.xlane.f32.xlu0 %v1369
        %v1371 = vpop.xlane.xlu0 %1370
        %v1372 = vmul.f32 %v1368, %v624
        %v1373 = vmul.f32 %v1371, %v624
        %v1374 = vadd.f32 %v1372, 1e-05
        %v1375 = vadd.f32 %v1373, 1e-05
        %v1376 = vrsqrt.pop %v1374
        %v1377 = vmul.f32 %v1376, %v1374
        %v1378 = vmul.f32 %v1377, %v1376
        %v1379 = vmul.f32 0.5, %v1378
        %v1380 = vsub.f32 1.5, %v1379
        %v1381 = vmul.f32 %v1376, %v1380
        %vm1382 = vweird.f32 %v1374
        %vm1383 = vweird.f32 %v1376
        %vm1384 = vmor %vm1382, %vm1383
        %v1385 = vsel %vm1384, %v1376, %v1381
        %v1386 = vrsqrt.pop %v1375
        %v1387 = vmul.f32 %v1386, %v1375
        %v1388 = vmul.f32 %v1387, %v1386
        %v1389 = vmul.f32 0.5, %v1388
        %v1390 = vsub.f32 1.5, %v1389
        %v1391 = vmul.f32 %v1386, %v1390
        %vm1392 = vweird.f32 %v1375
        %vm1393 = vweird.f32 %v1386
        %vm1394 = vmor %vm1392, %vm1393
        %v1395 = vsel %vm1394, %v1386, %v1391
        %v1396 = vmul.f32 %v1362, %v1385
        %v1397 = vmul.f32 %v1363, %v1395
        %v1399 = vperm.slane %v1351, 0
        %v1401 = vmul.f32 %v1396, %v1399
        %v1402 = vmul.f32 %v1397, %v1399
        %v1404 = vperm.slane %v1353, 0
        %v1406 = vadd.f32 %v1401, %v1404
        %v1407 = vadd.f32 %v1402, %v1404
        %v1408 = vpack.c.bf16 %v1407, %v1406
        %s1409 = scalar_lea.vmem %s4, 16
        %v1410 = vld [vmem:[%s1409] sm:$0xf]
        %v1411 = vld [vmem:[%s1409 + $0x4] sm:$0xf]
        %v1412 = vld [vmem:[%s1409 + $0x8] sm:$0xf]
        %v1413 = vld [vmem:[%s1409 + $0xc] sm:$0xf]
        %v1418 = vunpack.c.l.b16 %v1410
        %v1419 = vunpack.c.l.b16 %v1411
        %v1420 = vunpack.c.l.b16 %v1412
        %v1421 = vunpack.c.l.b16 %v1413
        %v1422 = vpack.c.b16 %v1419, %v1418
        %v1423 = vpack.c.b16 %v1421, %v1420
        %v1427 = vsel %vm611, %v1408, 0
        %1429 = vmatpush.bf16.msra.mxu0 0
        %1430 = vmatpush.bf16.msra.mxu0 0
        %1431 = vmatpush.bf16.msra.mxu0 0
        %1432 = vmatpush.bf16.msra.mxu0 0
        %1433 = vmatpush.bf16.msra.mxu0 0
        %1434 = vmatpush.bf16.msra.mxu0 0
        %1435 = vmatpush.bf16.msra.mxu0 %v1423
        %1436 = vmatpush.bf16.msra.mxu0 %v1422
        %1437 = vmatmul.bf16.gmra.mxu0 %v1427
        %v1438 = vpop.f32.mrf.mxu0
        %v1439 = vadd.f32 0.0, %v1438
        %v1440 = vpop.f32.mrf.mxu0
        %v1441 = vadd.f32 0.0, %v1440
        %1442 = vdwg.mxu0
        %v1443 = vpack.c.bf16 %v1441, %v1439
        %1445 = vrot.lane.b32.xlu0 %v1443, 96
        %v1446 = vpop.permute.xlu0 %1445
        %v1448 = vsel %vm711, %v1443, 0
        %v1451 = vsel %vm711, %v1446, 0
        %1453 = vmatpush.bf16.xpose.msra.mxu0 0
        %1454 = vmatpush.bf16.xpose.msra.mxu0 0
        %1455 = vmatpush.bf16.xpose.msra.mxu0 0
        %1456 = vmatpush.bf16.xpose.msra.mxu0 0
        %1457 = vmatpush.bf16.xpose.msra.mxu0 0
        %1458 = vmatpush.bf16.xpose.msra.mxu0 0
        %1459 = vmatpush.bf16.xpose.msra.mxu0 0
        %1460 = vmatpush.bf16.xpose.msra.mxu0 %v1451
        %1461 = vmatmul.bf16.gmra.mxu0 %v1448
        %v1462 = vpop.f32.mrf.mxu0
        %v1463 = vadd.f32 0.0, %v1462
        %v1464 = vpop.f32.mrf.mxu0
        %v1465 = vadd.f32 0.0, %v1464
        %1466 = vdwg.mxu0
        %v1467 = vmul.f32 %v1463, 0.35355338
        %v1468 = vmul.f32 %v1465, 0.35355338
        %v1469 = vsel %vm734, %v1467, -inf
        %1470 = vmax.xlane.f32.xlu0 %v1469
        %v1471 = vpop.xlane.xlu0 %1470
        %v1472 = vsel %vm734, %v1468, -inf
        %1473 = vmax.xlane.f32.xlu0 %v1472
        %v1474 = vpop.xlane.xlu0 %1473
        %v1475 = vsub.f32 %v1467, %v1471
        %v1476 = vsub.f32 %v1468, %v1474
        %v1477 = vmul.f32 %v1475, 1.442695
        %v1478 = vpow.pop %v1477
        %v1479 = vmul.f32 %v1476, 1.442695
        %v1480 = vpow.pop %v1479
        %v1481 = vsel %vm734, %v1478, 0.0
        %1482 = vadd.xlane.f32.xlu0 %v1481
        %v1483 = vpop.xlane.xlu0 %1482
        %v1484 = vsel %vm734, %v1480, 0.0
        %1485 = vadd.xlane.f32.xlu0 %v1484
        %v1486 = vpop.xlane.xlu0 %1485
        %v1487 = vrcp.pop %v1483
        %v1488 = vrcp.pop %v1486
        %v1489 = vmul.f32 %v1478, %v1487
        %v1490 = vmul.f32 %v1480, %v1488
        %v1491 = vpack.c.bf16 %v1490, %v1489
        %1492 = vrot.lane.b32.xlu0 %v1443, 64
        %v1493 = vpop.permute.xlu0 %1492
        %v1496 = vsel %vm734, %v1491, 0
        %1498 = vmatpush.bf16.msra.mxu0 0
        %1499 = vmatpush.bf16.msra.mxu0 0
        %1500 = vmatpush.bf16.msra.mxu0 0
        %1501 = vmatpush.bf16.msra.mxu0 0
        %1502 = vmatpush.bf16.msra.mxu0 0
        %1503 = vmatpush.bf16.msra.mxu0 0
        %1504 = vmatpush.bf16.msra.mxu0 0
        %1505 = vmatpush.bf16.msra.mxu0 %v1493
        %1506 = vmatmul.bf16.gmra.mxu0 %v1496
        %v1507 = vpop.f32.mrf.mxu0
        %v1508 = vadd.f32 0.0, %v1507
        %v1509 = vpop.f32.mrf.mxu0
        %v1510 = vadd.f32 0.0, %v1509
        %1511 = vdwg.mxu0
        %v1512 = vpack.c.bf16 %v1510, %v1508
        %s1513 = scalar_lea.vmem %s5, 16
        %v1514 = vld [vmem:[%s1513] sm:$0xf]
        %1515 = vrot.lane.b32.xlu0 %v1443, 120
        %v1516 = vpop.permute.xlu0 %1515
        %1517 = vrot.lane.b32.xlu0 %v1443, 88
        %v1518 = vpop.permute.xlu0 %1517
        %v1520 = vsel %vm711, %v1516, 0
        %v1523 = vsel %vm711, %v1518, 0
        %1525 = vmatpush.bf16.xpose.msra.mxu0 0
        %1526 = vmatpush.bf16.xpose.msra.mxu0 0
        %1527 = vmatpush.bf16.xpose.msra.mxu0 0
        %1528 = vmatpush.bf16.xpose.msra.mxu0 0
        %1529 = vmatpush.bf16.xpose.msra.mxu0 0
        %1530 = vmatpush.bf16.xpose.msra.mxu0 0
        %1531 = vmatpush.bf16.xpose.msra.mxu0 0
        %1532 = vmatpush.bf16.xpose.msra.mxu0 %v1523
        %1533 = vmatmul.bf16.gmra.mxu0 %v1520
        %v1534 = vpop.f32.mrf.mxu0
        %v1535 = vadd.f32 0.0, %v1534
        %v1536 = vpop.f32.mrf.mxu0
        %v1537 = vadd.f32 0.0, %v1536
        %1538 = vdwg.mxu0
        %v1539 = vmul.f32 %v1535, 0.35355338
        %v1540 = vmul.f32 %v1537, 0.35355338
        %v1541 = vsel %vm734, %v1539, -inf
        %1542 = vmax.xlane.f32.xlu0 %v1541
        %v1543 = vpop.xlane.xlu0 %1542
        %v1544 = vsel %vm734, %v1540, -inf
        %1545 = vmax.xlane.f32.xlu0 %v1544
        %v1546 = vpop.xlane.xlu0 %1545
        %v1547 = vsub.f32 %v1539, %v1543
        %v1548 = vsub.f32 %v1540, %v1546
        %v1549 = vmul.f32 %v1547, 1.442695
        %v1550 = vpow.pop %v1549
        %v1551 = vmul.f32 %v1548, 1.442695
        %v1552 = vpow.pop %v1551
        %v1553 = vsel %vm734, %v1550, 0.0
        %1554 = vadd.xlane.f32.xlu0 %v1553
        %v1555 = vpop.xlane.xlu0 %1554
        %v1556 = vsel %vm734, %v1552, 0.0
        %1557 = vadd.xlane.f32.xlu0 %v1556
        %v1558 = vpop.xlane.xlu0 %1557
        %v1559 = vrcp.pop %v1555
        %v1560 = vrcp.pop %v1558
        %v1561 = vmul.f32 %v1550, %v1559
        %v1562 = vmul.f32 %v1552, %v1560
        %v1563 = vpack.c.bf16 %v1562, %v1561
        %1564 = vrot.lane.b32.xlu0 %v1443, 56
        %v1565 = vpop.permute.xlu0 %1564
        %v1568 = vsel %vm734, %v1563, 0
        %1570 = vmatpush.bf16.msra.mxu0 0
        %1571 = vmatpush.bf16.msra.mxu0 0
        %1572 = vmatpush.bf16.msra.mxu0 0
        %1573 = vmatpush.bf16.msra.mxu0 0
        %1574 = vmatpush.bf16.msra.mxu0 0
        %1575 = vmatpush.bf16.msra.mxu0 0
        %1576 = vmatpush.bf16.msra.mxu0 0
        %1577 = vmatpush.bf16.msra.mxu0 %v1565
        %1578 = vmatmul.bf16.gmra.mxu0 %v1568
        %v1579 = vpop.f32.mrf.mxu0
        %v1580 = vadd.f32 0.0, %v1579
        %v1581 = vpop.f32.mrf.mxu0
        %v1582 = vadd.f32 0.0, %v1581
        %1583 = vdwg.mxu0
        %v1584 = vpack.c.bf16 %v1582, %v1580
        %s1585 = scalar_lea.vmem %s5, 20
        %v1586 = vld [vmem:[%s1585] sm:$0xf]
        %v1588 = vsel %vm711, %v1584, 0
        %v1591 = vsel %vm855, %v1586, 0
        %1593 = vmatpush.bf16.msra.mxu0 0
        %1594 = vmatpush.bf16.msra.mxu0 0
        %1595 = vmatpush.bf16.msra.mxu0 0
        %1596 = vmatpush.bf16.msra.mxu0 0
        %1597 = vmatpush.bf16.msra.mxu0 0
        %1598 = vmatpush.bf16.msra.mxu0 0
        %1599 = vmatpush.bf16.msra.mxu0 0
        %1600 = vmatpush.bf16.msra.mxu0 %v1591
        %1601 = vmatmul.bf16.gmra.mxu0 %v1588
        %v1602 = vpop.f32.mrf.mxu0
        %v1603 = vadd.f32 0.0, %v1602
        %v1604 = vpop.f32.mrf.mxu0
        %v1605 = vadd.f32 0.0, %v1604
        %1606 = vdwg.mxu0
        %v1608 = vsel %vm711, %v1512, 0
        %v1611 = vsel %vm855, %v1514, 0
        %1613 = vmatpush.bf16.msra.mxu0 0
        %1614 = vmatpush.bf16.msra.mxu0 0
        %1615 = vmatpush.bf16.msra.mxu0 0
        %1616 = vmatpush.bf16.msra.mxu0 0
        %1617 = vmatpush.bf16.msra.mxu0 0
        %1618 = vmatpush.bf16.msra.mxu0 0
        %1619 = vmatpush.bf16.msra.mxu0 0
        %1620 = vmatpush.bf16.msra.mxu0 %v1611
        %1621 = vmatmul.bf16.gmra.mxu0 %v1608
        %v1622 = vpop.f32.mrf.mxu0
        %v1623 = vadd.f32 %v1603, %v1622
        %v1624 = vpop.f32.mrf.mxu0
        %v1625 = vadd.f32 %v1605, %v1624
        %1626 = vdwg.mxu0
        %1627 = vrot.lane.b32.xlu0 %v1443, 112
        %v1628 = vpop.permute.xlu0 %1627
        %1629 = vrot.lane.b32.xlu0 %v1443, 80
        %v1630 = vpop.permute.xlu0 %1629
        %v1632 = vsel %vm711, %v1628, 0
        %v1635 = vsel %vm711, %v1630, 0
        %1637 = vmatpush.bf16.xpose.msra.mxu0 0
        %1638 = vmatpush.bf16.xpose.msra.mxu0 0
        %1639 = vmatpush.bf16.xpose.msra.mxu0 0
        %1640 = vmatpush.bf16.xpose.msra.mxu0 0
        %1641 = vmatpush.bf16.xpose.msra.mxu0 0
        %1642 = vmatpush.bf16.xpose.msra.mxu0 0
        %1643 = vmatpush.bf16.xpose.msra.mxu0 0
        %1644 = vmatpush.bf16.xpose.msra.mxu0 %v1635
        %1645 = vmatmul.bf16.gmra.mxu0 %v1632
        %v1646 = vpop.f32.mrf.mxu0
        %v1647 = vadd.f32 0.0, %v1646
        %v1648 = vpop.f32.mrf.mxu0
        %v1649 = vadd.f32 0.0, %v1648
        %1650 = vdwg.mxu0
        %v1651 = vmul.f32 %v1647, 0.35355338
        %v1652 = vmul.f32 %v1649, 0.35355338
        %v1653 = vsel %vm734, %v1651, -inf
        %1654 = vmax.xlane.f32.xlu0 %v1653
        %v1655 = vpop.xlane.xlu0 %1654
        %v1656 = vsel %vm734, %v1652, -inf
        %1657 = vmax.xlane.f32.xlu0 %v1656
        %v1658 = vpop.xlane.xlu0 %1657
        %v1659 = vsub.f32 %v1651, %v1655
        %v1660 = vsub.f32 %v1652, %v1658
        %v1661 = vmul.f32 %v1659, 1.442695
        %v1662 = vpow.pop %v1661
        %v1663 = vmul.f32 %v1660, 1.442695
        %v1664 = vpow.pop %v1663
        %v1665 = vsel %vm734, %v1662, 0.0
        %1666 = vadd.xlane.f32.xlu0 %v1665
        %v1667 = vpop.xlane.xlu0 %1666
        %v1668 = vsel %vm734, %v1664, 0.0
        %1669 = vadd.xlane.f32.xlu0 %v1668
        %v1670 = vpop.xlane.xlu0 %1669
        %v1671 = vrcp.pop %v1667
        %v1672 = vrcp.pop %v1670
        %v1673 = vmul.f32 %v1662, %v1671
        %v1674 = vmul.f32 %v1664, %v1672
        %v1675 = vpack.c.bf16 %v1674, %v1673
        %1676 = vrot.lane.b32.xlu0 %v1443, 48
        %v1677 = vpop.permute.xlu0 %1676
        %v1680 = vsel %vm734, %v1675, 0
        %1682 = vmatpush.bf16.msra.mxu0 0
        %1683 = vmatpush.bf16.msra.mxu0 0
        %1684 = vmatpush.bf16.msra.mxu0 0
        %1685 = vmatpush.bf16.msra.mxu0 0
        %1686 = vmatpush.bf16.msra.mxu0 0
        %1687 = vmatpush.bf16.msra.mxu0 0
        %1688 = vmatpush.bf16.msra.mxu0 0
        %1689 = vmatpush.bf16.msra.mxu0 %v1677
        %1690 = vmatmul.bf16.gmra.mxu0 %v1680
        %v1691 = vpop.f32.mrf.mxu0
        %v1692 = vadd.f32 0.0, %v1691
        %v1693 = vpop.f32.mrf.mxu0
        %v1694 = vadd.f32 0.0, %v1693
        %1695 = vdwg.mxu0
        %v1696 = vpack.c.bf16 %v1694, %v1692
        %s1697 = scalar_lea.vmem %s5, 24
        %v1698 = vld [vmem:[%s1697] sm:$0xf]
        %v1700 = vsel %vm711, %v1696, 0
        %v1703 = vsel %vm855, %v1698, 0
        %1705 = vmatpush.bf16.msra.mxu0 0
        %1706 = vmatpush.bf16.msra.mxu0 0
        %1707 = vmatpush.bf16.msra.mxu0 0
        %1708 = vmatpush.bf16.msra.mxu0 0
        %1709 = vmatpush.bf16.msra.mxu0 0
        %1710 = vmatpush.bf16.msra.mxu0 0
        %1711 = vmatpush.bf16.msra.mxu0 0
        %1712 = vmatpush.bf16.msra.mxu0 %v1703
        %1713 = vmatmul.bf16.gmra.mxu0 %v1700
        %v1714 = vpop.f32.mrf.mxu0
        %v1715 = vadd.f32 0.0, %v1714
        %v1716 = vpop.f32.mrf.mxu0
        %v1717 = vadd.f32 0.0, %v1716
        %1718 = vdwg.mxu0
        %v1719 = vadd.f32 %v1623, %v1715
        %v1720 = vadd.f32 %v1625, %v1717
        %1721 = vrot.lane.b32.xlu0 %v1443, 104
        %v1722 = vpop.permute.xlu0 %1721
        %1723 = vrot.lane.b32.xlu0 %v1443, 72
        %v1724 = vpop.permute.xlu0 %1723
        %v1726 = vsel %vm711, %v1722, 0
        %v1729 = vsel %vm711, %v1724, 0
        %1731 = vmatpush.bf16.xpose.msra.mxu0 0
        %1732 = vmatpush.bf16.xpose.msra.mxu0 0
        %1733 = vmatpush.bf16.xpose.msra.mxu0 0
        %1734 = vmatpush.bf16.xpose.msra.mxu0 0
        %1735 = vmatpush.bf16.xpose.msra.mxu0 0
        %1736 = vmatpush.bf16.xpose.msra.mxu0 0
        %1737 = vmatpush.bf16.xpose.msra.mxu0 0
        %1738 = vmatpush.bf16.xpose.msra.mxu0 %v1729
        %1739 = vmatmul.bf16.gmra.mxu0 %v1726
        %v1740 = vpop.f32.mrf.mxu0
        %v1741 = vadd.f32 0.0, %v1740
        %v1742 = vpop.f32.mrf.mxu0
        %v1743 = vadd.f32 0.0, %v1742
        %1744 = vdwg.mxu0
        %v1745 = vmul.f32 %v1741, 0.35355338
        %v1746 = vmul.f32 %v1743, 0.35355338
        %v1747 = vsel %vm734, %v1745, -inf
        %1748 = vmax.xlane.f32.xlu0 %v1747
        %v1749 = vpop.xlane.xlu0 %1748
        %v1750 = vsel %vm734, %v1746, -inf
        %1751 = vmax.xlane.f32.xlu0 %v1750
        %v1752 = vpop.xlane.xlu0 %1751
        %v1753 = vsub.f32 %v1745, %v1749
        %v1754 = vsub.f32 %v1746, %v1752
        %v1755 = vmul.f32 %v1753, 1.442695
        %v1756 = vpow.pop %v1755
        %v1757 = vmul.f32 %v1754, 1.442695
        %v1758 = vpow.pop %v1757
        %v1759 = vsel %vm734, %v1756, 0.0
        %1760 = vadd.xlane.f32.xlu0 %v1759
        %v1761 = vpop.xlane.xlu0 %1760
        %v1762 = vsel %vm734, %v1758, 0.0
        %1763 = vadd.xlane.f32.xlu0 %v1762
        %v1764 = vpop.xlane.xlu0 %1763
        %v1765 = vrcp.pop %v1761
        %v1766 = vrcp.pop %v1764
        %v1767 = vmul.f32 %v1756, %v1765
        %v1768 = vmul.f32 %v1758, %v1766
        %v1769 = vpack.c.bf16 %v1768, %v1767
        %1770 = vrot.lane.b32.xlu0 %v1443, 40
        %v1771 = vpop.permute.xlu0 %1770
        %v1774 = vsel %vm734, %v1769, 0
        %1776 = vmatpush.bf16.msra.mxu0 0
        %1777 = vmatpush.bf16.msra.mxu0 0
        %1778 = vmatpush.bf16.msra.mxu0 0
        %1779 = vmatpush.bf16.msra.mxu0 0
        %1780 = vmatpush.bf16.msra.mxu0 0
        %1781 = vmatpush.bf16.msra.mxu0 0
        %1782 = vmatpush.bf16.msra.mxu0 0
        %1783 = vmatpush.bf16.msra.mxu0 %v1771
        %1784 = vmatmul.bf16.gmra.mxu0 %v1774
        %v1785 = vpop.f32.mrf.mxu0
        %v1786 = vadd.f32 0.0, %v1785
        %v1787 = vpop.f32.mrf.mxu0
        %v1788 = vadd.f32 0.0, %v1787
        %1789 = vdwg.mxu0
        %v1790 = vpack.c.bf16 %v1788, %v1786
        %s1791 = scalar_lea.vmem %s5, 28
        %v1792 = vld [vmem:[%s1791] sm:$0xf]
        %v1794 = vsel %vm711, %v1790, 0
        %v1797 = vsel %vm855, %v1792, 0
        %1799 = vmatpush.bf16.msra.mxu0 0
        %1800 = vmatpush.bf16.msra.mxu0 0
        %1801 = vmatpush.bf16.msra.mxu0 0
        %1802 = vmatpush.bf16.msra.mxu0 0
        %1803 = vmatpush.bf16.msra.mxu0 0
        %1804 = vmatpush.bf16.msra.mxu0 0
        %1805 = vmatpush.bf16.msra.mxu0 0
        %1806 = vmatpush.bf16.msra.mxu0 %v1797
        %1807 = vmatmul.bf16.gmra.mxu0 %v1794
        %v1808 = vpop.f32.mrf.mxu0
        %v1809 = vadd.f32 0.0, %v1808
        %v1810 = vpop.f32.mrf.mxu0
        %v1811 = vadd.f32 0.0, %v1810
        %1812 = vdwg.mxu0
        %v1813 = vadd.f32 %v1719, %v1809
        %v1814 = vadd.f32 %v1720, %v1811
        %v1815 = vadd.f32 %v1348, %v1813
        %v1816 = vadd.f32 %v1349, %v1814
        %s1817 = scalar_lea.vmem %s6, 1
        %v1818 = vld [vmem:[%s1817] sm:$0x1]
        %v1820 = vperm.slane %v1818, 0
        %v1822 = vadd.f32 %v1815, %v1820
        %v1823 = vadd.f32 %v1816, %v1820
        %s1824 = scalar_lea.vmem %s7, 1
        %v1825 = vld [vmem:[%s1824] sm:$0x1]
        %s1826 = scalar_lea.vmem %s8, 1
        %v1827 = vld [vmem:[%s1826] sm:$0x1]
        %v1828 = vsel %vm611, %v1822, 0.0
        %1829 = vadd.xlane.f32.xlu0 %v1828
        %v1830 = vpop.xlane.xlu0 %1829
        %v1831 = vsel %vm611, %v1823, 0.0
        %1832 = vadd.xlane.f32.xlu0 %v1831
        %v1833 = vpop.xlane.xlu0 %1832
        %v1834 = vmul.f32 %v1830, %v624
        %v1835 = vmul.f32 %v1833, %v624
        %v1836 = vsub.f32 %v1822, %v1834
        %v1837 = vsub.f32 %v1823, %v1835
        %v1838 = vmul.f32 %v1836, %v1836
        %v1839 = vmul.f32 %v1837, %v1837
        %v1840 = vsel %vm611, %v1838, 0.0
        %1841 = vadd.xlane.f32.xlu0 %v1840
        %v1842 = vpop.xlane.xlu0 %1841
        %v1843 = vsel %vm611, %v1839, 0.0
        %1844 = vadd.xlane.f32.xlu0 %v1843
        %v1845 = vpop.xlane.xlu0 %1844
        %v1846 = vmul.f32 %v1842, %v624
        %v1847 = vmul.f32 %v1845, %v624
        %v1848 = vadd.f32 %v1846, 1e-05
        %v1849 = vadd.f32 %v1847, 1e-05
        %v1850 = vrsqrt.pop %v1848
        %v1851 = vmul.f32 %v1850, %v1848
        %v1852 = vmul.f32 %v1851, %v1850
        %v1853 = vmul.f32 0.5, %v1852
        %v1854 = vsub.f32 1.5, %v1853
        %v1855 = vmul.f32 %v1850, %v1854
        %vm1856 = vweird.f32 %v1848
        %vm1857 = vweird.f32 %v1850
        %vm1858 = vmor %vm1856, %vm1857
        %v1859 = vsel %vm1858, %v1850, %v1855
        %v1860 = vrsqrt.pop %v1849
        %v1861 = vmul.f32 %v1860, %v1849
        %v1862 = vmul.f32 %v1861, %v1860
        %v1863 = vmul.f32 0.5, %v1862
        %v1864 = vsub.f32 1.5, %v1863
        %v1865 = vmul.f32 %v1860, %v1864
        %vm1866 = vweird.f32 %v1849
        %vm1867 = vweird.f32 %v1860
        %vm1868 = vmor %vm1866, %vm1867
        %v1869 = vsel %vm1868, %v1860, %v1865
        %v1870 = vmul.f32 %v1836, %v1859
        %v1871 = vmul.f32 %v1837, %v1869
        %v1873 = vperm.slane %v1825, 0
        %v1875 = vmul.f32 %v1870, %v1873
        %v1876 = vmul.f32 %v1871, %v1873
        %v1878 = vperm.slane %v1827, 0
        %v1880 = vadd.f32 %v1875, %v1878
        %v1881 = vadd.f32 %v1876, %v1878
        %v1882 = vpack.c.bf16 %v1881, %v1880
        %s1883 = scalar_lea.vmem %s9, 16
        %v1884 = vld [vmem:[%s1883] sm:$0xf]
        %v1885 = vld [vmem:[%s1883 + $0x4] sm:$0xf]
        %v1886 = vld [vmem:[%s1883 + $0x8] sm:$0xf]
        %v1887 = vld [vmem:[%s1883 + $0xc] sm:$0xf]
        %s1888 = scalar_lea.vmem %s10, 1
        %v1889 = vld [vmem:[%s1888] sm:$0x1]
        %v1891 = vperm.slane %v1889, 0
        %v1897 = vunpack.c.l.b16 %v1884
        %v1898 = vunpack.c.l.b16 %v1885
        %v1899 = vunpack.c.l.b16 %v1886
        %v1900 = vunpack.c.l.b16 %v1887
        %v1901 = vpack.c.b16 %v1898, %v1897
        %v1902 = vpack.c.b16 %v1900, %v1899
        %v1906 = vsel %vm611, %v1882, 0
        %1908 = vmatpush.bf16.msra.mxu0 0
        %1909 = vmatpush.bf16.msra.mxu0 0
        %1910 = vmatpush.bf16.msra.mxu0 0
        %1911 = vmatpush.bf16.msra.mxu0 0
        %1912 = vmatpush.bf16.msra.mxu0 0
        %1913 = vmatpush.bf16.msra.mxu0 0
        %1914 = vmatpush.bf16.msra.mxu0 %v1902
        %1915 = vmatpush.bf16.msra.mxu0 %v1901
        %1916 = vmatmul.bf16.gmra.mxu0 %v1906
        %v1917 = vpop.f32.mrf.mxu0
        %v1918 = vadd.f32 %v1891, %v1917
        %v1919 = vpop.f32.mrf.mxu0
        %v1920 = vadd.f32 %v1891, %v1919
        %1921 = vdwg.mxu0
        %v1922 = vmul.f32 %v1918, 0.5
        %v1923 = vmul.f32 %v1920, 0.5
        %v1924 = vmul.f32 %v1918, 0.70710677
        %v1925 = vmul.f32 %v1920, 0.70710677
        %vm1926 = vcmp.ge.f32.partialorder %v1924, 0.0
        %vm1927 = vcmp.ge.f32.partialorder %v1925, 0.0
        %v1928 = vsel %vm1926, 1.0, -1.0
        %v1929 = vsel %vm1927, 1.0, -1.0
        %v1930 = vand.u32 2147483647, %v1924
        %v1931 = vand.u32 2147483647, %v1925
        %v1932 = vmul.f32 %v1930, 0.3275911
        %v1933 = vmul.f32 %v1931, 0.3275911
        %v1934 = vadd.f32 %v1932, 1.0
        %v1935 = vadd.f32 %v1933, 1.0
        %v1936 = vrcp.pop %v1934
        %v1937 = vmul.f32 %v1934, %v1936
        %v1938 = vsub.f32 1.0, %v1937
        %v1939 = vmul.f32 %v1936, %v1938
        %v1940 = vadd.f32 %v1936, %v1939
        %vm1941 = vweird.f32 %v1934
        %vm1942 = vweird.f32 %v1936
        %vm1943 = vmor %vm1941, %vm1942
        %v1944 = vsel %vm1943, %v1936, %v1940
        %v1945 = vand.u32 2147483647, %v1934
        %vm1946 = vcmp.eq.f32.partialorder %v1945, 8.507059e+37
        %v1947 = vand.u32 %v1934, 2147483648
        %v1948 = vor.u32 1.1754944e-38, %v1947
        %v1949 = vsel %vm1946, %v1948, %v1944
        %v1950 = vmul.f32 1.0, %v1949
        %v1951 = vrcp.pop %v1935
        %v1952 = vmul.f32 %v1935, %v1951
        %v1953 = vsub.f32 1.0, %v1952
        %v1954 = vmul.f32 %v1951, %v1953
        %v1955 = vadd.f32 %v1951, %v1954
        %vm1956 = vweird.f32 %v1935
        %vm1957 = vweird.f32 %v1951
        %vm1958 = vmor %vm1956, %vm1957
        %v1959 = vsel %vm1958, %v1951, %v1955
        %v1960 = vand.u32 2147483647, %v1935
        %vm1961 = vcmp.eq.f32.partialorder %v1960, 8.507059e+37
        %v1962 = vand.u32 %v1935, 2147483648
        %v1963 = vor.u32 1.1754944e-38, %v1962
        %v1964 = vsel %vm1961, %v1963, %v1959
        %v1965 = vmul.f32 1.0, %v1964
        %v1966 = vmul.f32 %v1950, 1.0614054
        %v1967 = vmul.f32 %v1965, 1.0614054
        %v1968 = vadd.f32 %v1966, -1.4531521
        %v1969 = vadd.f32 %v1967, -1.4531521
        %v1970 = vmul.f32 %v1968, %v1950
        %v1971 = vmul.f32 %v1969, %v1965
        %v1972 = vadd.f32 %v1970, 1.4214138
        %v1973 = vadd.f32 %v1971, 1.4214138
        %v1974 = vmul.f32 %v1972, %v1950
        %v1975 = vmul.f32 %v1973, %v1965
        %v1976 = vadd.f32 %v1974, -0.28449672
        %v1977 = vadd.f32 %v1975, -0.28449672
        %v1978 = vmul.f32 %v1976, %v1950
        %v1979 = vmul.f32 %v1977, %v1965
        %v1980 = vadd.f32 %v1978, 0.2548296
        %v1981 = vadd.f32 %v1979, 0.2548296
        %v1982 = vmul.f32 %v1980, %v1950
        %v1983 = vmul.f32 %v1981, %v1965
        %v1984 = vmul.f32 %v1930, %v1930
        %v1985 = vmul.f32 %v1931, %v1931
        %v1986 = vsub.f32 0.0, %v1984
        %v1987 = vsub.f32 0.0, %v1985
        %v1988 = vmul.f32 %v1986, 1.442695
        %v1989 = vpow.pop %v1988
        %v1990 = vmul.f32 %v1987, 1.442695
        %v1991 = vpow.pop %v1990
        %v1992 = vmul.f32 %v1982, %v1989
        %v1993 = vmul.f32 %v1983, %v1991
        %v1994 = vsub.f32 1.0, %v1992
        %v1995 = vsub.f32 1.0, %v1993
        %v1996 = vmul.f32 %v1928, %v1994
        %v1997 = vmul.f32 %v1929, %v1995
        %v1998 = vadd.f32 %v1996, 1.0
        %v1999 = vadd.f32 %v1997, 1.0
        %v2000 = vmul.f32 %v1922, %v1998
        %v2001 = vmul.f32 %v1923, %v1999
        %v2002 = vpack.c.bf16 %v2001, %v2000
        %s2003 = scalar_lea.vmem %s11, 64
        %v2004 = vld [vmem:[%s2003] sm:$0xf]
        %v2005 = vld [vmem:[%s2003 + $0x4] sm:$0xf]
        %v2006 = vld [vmem:[%s2003 + $0x8] sm:$0xf]
        %v2007 = vld [vmem:[%s2003 + $0xc] sm:$0xf]
        %v2008 = vld [vmem:[%s2003 + $0x10] sm:$0xf]
        %v2009 = vld [vmem:[%s2003 + $0x14] sm:$0xf]
        %v2010 = vld [vmem:[%s2003 + $0x18] sm:$0xf]
        %v2011 = vld [vmem:[%s2003 + $0x1c] sm:$0xf]
        %v2012 = vld [vmem:[%s2003 + $0x20] sm:$0xf]
        %v2013 = vld [vmem:[%s2003 + $0x24] sm:$0xf]
        %v2014 = vld [vmem:[%s2003 + $0x28] sm:$0xf]
        %v2015 = vld [vmem:[%s2003 + $0x2c] sm:$0xf]
        %v2016 = vld [vmem:[%s2003 + $0x30] sm:$0xf]
        %v2017 = vld [vmem:[%s2003 + $0x34] sm:$0xf]
        %v2018 = vld [vmem:[%s2003 + $0x38] sm:$0xf]
        %v2019 = vld [vmem:[%s2003 + $0x3c] sm:$0xf]
        %v2036 = vunpack.c.l.b16 %v2004
        %v2037 = vunpack.c.l.b16 %v2005
        %v2038 = vunpack.c.l.b16 %v2006
        %v2039 = vunpack.c.l.b16 %v2007
        %v2040 = vunpack.c.l.b16 %v2008
        %v2041 = vunpack.c.l.b16 %v2009
        %v2042 = vunpack.c.l.b16 %v2010
        %v2043 = vunpack.c.l.b16 %v2011
        %v2044 = vunpack.c.l.b16 %v2012
        %v2045 = vunpack.c.l.b16 %v2013
        %v2046 = vunpack.c.l.b16 %v2014
        %v2047 = vunpack.c.l.b16 %v2015
        %v2048 = vunpack.c.l.b16 %v2016
        %v2049 = vunpack.c.l.b16 %v2017
        %v2050 = vunpack.c.l.b16 %v2018
        %v2051 = vunpack.c.l.b16 %v2019
        %v2052 = vpack.c.b16 %v2037, %v2036
        %v2053 = vpack.c.b16 %v2039, %v2038
        %v2054 = vpack.c.b16 %v2041, %v2040
        %v2055 = vpack.c.b16 %v2043, %v2042
        %v2056 = vpack.c.b16 %v2045, %v2044
        %v2057 = vpack.c.b16 %v2047, %v2046
        %v2058 = vpack.c.b16 %v2049, %v2048
        %v2059 = vpack.c.b16 %v2051, %v2050
        %2068 = vmatpush.bf16.msra.mxu0 %v2059
        %2069 = vmatpush.bf16.msra.mxu0 %v2058
        %2070 = vmatpush.bf16.msra.mxu0 %v2057
        %2071 = vmatpush.bf16.msra.mxu0 %v2056
        %2072 = vmatpush.bf16.msra.mxu0 %v2055
        %2073 = vmatpush.bf16.msra.mxu0 %v2054
        %2074 = vmatpush.bf16.msra.mxu0 %v2053
        %2075 = vmatpush.bf16.msra.mxu0 %v2052
        %2076 = vmatmul.bf16.gmra.mxu0 %v2002
        %v2077 = vpop.f32.mrf.mxu0
        %v2078 = vadd.f32 0.0, %v2077
        %v2079 = vpop.f32.mrf.mxu0
        %v2080 = vadd.f32 0.0, %v2079
        %2081 = vdwg.mxu0
        %v2082 = vadd.f32 %v1880, %v2078
        %v2083 = vadd.f32 %v1881, %v2080
        %s2084 = scalar_lea.vmem %s12, 1
        %v2085 = vld [vmem:[%s2084] sm:$0x1]
        %v2087 = vperm.slane %v2085, 0
        %v2089 = vadd.f32 %v2082, %v2087
        %v2090 = vadd.f32 %v2083, %v2087
        %v2091 = vld [vmem:[%s13] sm:$0x1]
        %v2092 = vld [vmem:[%s14] sm:$0x1]
        %v2093 = vsel %vm611, %v2089, 0.0
        %2094 = vadd.xlane.f32.xlu0 %v2093
        %v2095 = vpop.xlane.xlu0 %2094
        %v2096 = vsel %vm611, %v2090, 0.0
        %2097 = vadd.xlane.f32.xlu0 %v2096
        %v2098 = vpop.xlane.xlu0 %2097
        %v2099 = vmul.f32 %v2095, %v624
        %v2100 = vmul.f32 %v2098, %v624
        %v2101 = vsub.f32 %v2089, %v2099
        %v2102 = vsub.f32 %v2090, %v2100
        %v2103 = vmul.f32 %v2101, %v2101
        %v2104 = vmul.f32 %v2102, %v2102
        %v2105 = vsel %vm611, %v2103, 0.0
        %2106 = vadd.xlane.f32.xlu0 %v2105
        %v2107 = vpop.xlane.xlu0 %2106
        %v2108 = vsel %vm611, %v2104, 0.0
        %2109 = vadd.xlane.f32.xlu0 %v2108
        %v2110 = vpop.xlane.xlu0 %2109
        %v2111 = vmul.f32 %v2107, %v624
        %v2112 = vmul.f32 %v2110, %v624
        %v2113 = vadd.f32 %v2111, 1e-05
        %v2114 = vadd.f32 %v2112, 1e-05
        %v2115 = vrsqrt.pop %v2113
        %v2116 = vmul.f32 %v2115, %v2113
        %v2117 = vmul.f32 %v2116, %v2115
        %v2118 = vmul.f32 0.5, %v2117
        %v2119 = vsub.f32 1.5, %v2118
        %v2120 = vmul.f32 %v2115, %v2119
        %vm2121 = vweird.f32 %v2113
        %vm2122 = vweird.f32 %v2115
        %vm2123 = vmor %vm2121, %vm2122
        %v2124 = vsel %vm2123, %v2115, %v2120
        %v2125 = vrsqrt.pop %v2114
        %v2126 = vmul.f32 %v2125, %v2114
        %v2127 = vmul.f32 %v2126, %v2125
        %v2128 = vmul.f32 0.5, %v2127
        %v2129 = vsub.f32 1.5, %v2128
        %v2130 = vmul.f32 %v2125, %v2129
        %vm2131 = vweird.f32 %v2114
        %vm2132 = vweird.f32 %v2125
        %vm2133 = vmor %vm2131, %vm2132
        %v2134 = vsel %vm2133, %v2125, %v2130
        %v2135 = vmul.f32 %v2101, %v2124
        %v2136 = vmul.f32 %v2102, %v2134
        %v2138 = vperm.slane %v2091, 0
        %v2140 = vmul.f32 %v2135, %v2138
        %v2141 = vmul.f32 %v2136, %v2138
        %v2143 = vperm.slane %v2092, 0
        %v2145 = vadd.f32 %v2140, %v2143
        %v2146 = vadd.f32 %v2141, %v2143
        %v2147 = vld [vmem:[%s15] sm:$0xff]
        %v2148 = vld [vmem:[%s15 + $0x8] sm:$0xff]
        %v2149 = vld [vmem:[%s15 + $0x10] sm:$0xff]
        %v2150 = vld [vmem:[%s15 + $0x18] sm:$0xff]
        %v2151 = vld [vmem:[#allocation2] sm:$0x1]
        %v2153 = vperm.slane %v2151, 0
        %v2156 = vsel %vm611, %v2145, 0
        %v2159 = vsel %vm611, %v2146, 0
        %2161 = vmatpush.msra.mxu0 0.0
        %2162 = vmatpush.msra.mxu0 0.0
        %2163 = vmatpush.msra.mxu0 0.0
        %2164 = vmatpush.msra.mxu0 0.0
        %2165 = vmatpush.msra.mxu0 0.0
        %2166 = vmatpush.msra.mxu0 0.0
        %2167 = vmatpush.msra.mxu0 0.0
        %2168 = vmatpush.msra.mxu0 0.0
        %2169 = vmatpush.msra.mxu0 0.0
        %2170 = vmatpush.msra.mxu0 0.0
        %2171 = vmatpush.msra.mxu0 0.0
        %2172 = vmatpush.msra.mxu0 0.0
        %2173 = vmatpush.msra.mxu0 %v2150
        %2174 = vmatpush.msra.mxu0 %v2149
        %2175 = vmatpush.msra.mxu0 %v2148
        %2176 = vmatpush.msra.mxu0 %v2147
        %2177 = vmatmul.f32.gmra.mxu0 %v2156
        %v2178 = vpop.f32.mrf.mxu0
        %v2179 = vadd.f32 %v2153, %v2178
        %2180 = vmatmul.f32.gmra.mxu0 %v2159
        %v2181 = vpop.f32.mrf.mxu0
        %v2182 = vadd.f32 %v2153, %v2181
        %2183 = vdwg.mxu0
        %vm2184 = vcmask 7168
        %v2185 = vsel %vm2184, %v2179, -inf
        %v2186 = vsel %vm2184, %v2182, -inf
        %v2187 = vmax.f32 %v2185, %v2186
        %v2188 = vrot.slane %v2187, 4
        %v2189 = vmax.f32 %v2187, %v2188
        %v2190 = vrot.slane %v2189, 2
        %v2191 = vmax.f32 %v2189, %v2190
        %v2192 = vrot.slane %v2191, 1
        %v2193 = vmax.f32 %v2191, %v2192
        %v2194 = vsub.f32 %v2179, %v2193
        %v2195 = vsub.f32 %v2182, %v2193
        %v2196 = vmul.f32 %v2194, 1.442695
        %v2197 = vpow.pop %v2196
        %v2198 = vmul.f32 %v2195, 1.442695
        %v2199 = vpow.pop %v2198
        %v2200 = vsel %vm2184, %v2197, 0.0
        %v2201 = vsel %vm2184, %v2199, 0.0
        %v2202 = vadd.f32 %v2200, %v2201
        %v2203 = vrot.slane %v2202, 4
        %v2204 = vadd.f32 %v2202, %v2203
        %v2205 = vrot.slane %v2204, 2
        %v2206 = vadd.f32 %v2204, %v2205
        %v2207 = vrot.slane %v2206, 1
        %v2208 = vadd.f32 %v2206, %v2207
        %v2209 = vrcp.pop %v2208
        %v2210 = vmul.f32 %v2197, %v2209
        %v2211 = vmul.f32 %v2199, %v2209
        %2213 = vset.pattern.permute.xlu0 0
        %2214 = vperm.xlu0 %2213, %v2210
        %v2215 = vpop.permute.xlu0 %2214
        %2218 = vset.pattern.permute.xlu0 0
        %2219 = vperm.xlu0 %2218, %v2211
        %v2220 = vpop.permute.xlu0 %2219
        %v2222 = vmul.f32 %v2215, %v2145
        %v2223 = vmul.f32 %v2220, %v2146
        %v2224 = vsel %vm611, %v2222, 0.0
        %v2225 = vsel %vm611, %v2223, 0.0
        %v2226 = vadd.f32 %v2224, %v2225
        %v2227 = vrot.slane %v2226, 4
        %v2228 = vadd.f32 %v2226, %v2227
        %v2229 = vrot.slane %v2228, 2
        %v2230 = vadd.f32 %v2228, %v2229
        %v2231 = vrot.slane %v2230, 1
        %v2232 = vadd.f32 %v2230, %v2231
        %v2233 = vld [vmem:[%s17] sm:$0xff]
        %v2234 = vld [vmem:[%s17 + $0x8] sm:$0xff]
        %v2235 = vld [vmem:[%s17 + $0x10] sm:$0xff]
        %v2236 = vld [vmem:[%s17 + $0x18] sm:$0xff]
        %v2237 = vld [vmem:[%s18] sm:$0x1]
        %v2239 = vsel %vm611, %v2232, 0
        %2241 = vmatpush.msra.mxu0 0.0
        %2242 = vmatpush.msra.mxu0 0.0
        %2243 = vmatpush.msra.mxu0 0.0
        %2244 = vmatpush.msra.mxu0 0.0
        %2245 = vmatpush.msra.mxu0 0.0
        %2246 = vmatpush.msra.mxu0 0.0
        %2247 = vmatpush.msra.mxu0 0.0
        %2248 = vmatpush.msra.mxu0 0.0
        %2249 = vmatpush.msra.mxu0 0.0
        %2250 = vmatpush.msra.mxu0 0.0
        %2251 = vmatpush.msra.mxu0 0.0
        %2252 = vmatpush.msra.mxu0 0.0
        %2253 = vmatpush.msra.mxu0 %v2236
        %2254 = vmatpush.msra.mxu0 %v2235
        %2255 = vmatpush.msra.mxu0 %v2234
        %2256 = vmatpush.msra.mxu0 %v2233
        %2257 = vmatmul.f32.gmra.mxu0 %v2239
        %v2258 = vpop.f32.mrf.mxu0
        %v2259 = vadd.f32 %v2237, %v2258
        %2260 = vdwg.mxu0
        %vm2261 = vcmask 73728
        %2262 = vst.msk [vmem:[%s596] sm:$0x1] %vm2261, %v2259
        %s2263 = sand.u32 %s447, 1
        %s2264 = scalar_lea.sflag [#allocation4], %s2263
        %s2265 = sand.u32 %s447, 1
        %s2266 = scalar_lea.vmem [#allocation3], %s2265
        // Predicated region
        $region97: #{_lambda_.3} parent=95 // pred_check
          %p2267 = pneg %p457
        $region98: #{_lambda_.3} parent=95 // pred_check_branch
          %2269 = sbr.rel (%p2267) target = $region100
        $region99: #{_lambda_.3} parent=95 // pred_region
          %2271 = vsyncadd %s2264, 0
          %s2272 = scalar_lea.hbm %s19, %s35
          %s2274 = sshll.u32 %s2266, 4
          %s2275 = int_to_ptr.vmem [resolvable:$true] %s2274
          %s2276 = sshll.u32 %s2272, 4
          %s2277 = int_to_ptr.hbm [resolvable:$true] %s2276
          %2279 = dma.vmem_to_hbm [thread:$0]  %s2275, 16, %s2277, %s2264
        $region100: #{_lambda_.3} parent=95 // pred_fallthru
          _
      $region96: #{_lambda_.3} parent=5 // pred_fallthru
        _
      %p2280 = scmp.le.s32.totalorder 2, %s30
      // Predicated region
      $region101: #{_lambda_.3} parent=5 // pred_check
        %p2281 = pneg %p2280
      $region102: #{_lambda_.3} parent=5 // pred_check_branch
        %2283 = sbr.rel (%p2281) target = $region104
      $region103: #{_lambda_.3} parent=5 // pred_region
        %s2284 = ssub.s32 %s30, 2
        // Predicated region
        $region105: #{_lambda_.3} parent=103 // pred_check
          %p2285 = pneg %p463
        $region106: #{_lambda_.3} parent=103 // pred_check_branch
          %2287 = sbr.rel (%p2285) target = $region108
        $region107: #{_lambda_.3} parent=103 // pred_region
          %s2288 = sand.u32 %s448, 1
          %s2289 = scalar_lea.sflag [#allocation4], %s2288
          %s2290 = sand.u32 %s448, 1
          %s2291 = scalar_lea.vmem [#allocation3], %s2290
          %2293 = dma.done %s2289, 16
        $region108: #{_lambda_.3} parent=103 // pred_fallthru
          _
      $region104: #{_lambda_.3} parent=5 // pred_fallthru
        _
    $region6: #{_lambda_.3} parent=1 // loop_footer
      %s34 = sadd.s32 1, %s30
    $region7: #{_lambda_.3} parent=1 // loop_footer_branch
      %29 = sbr.rel target = $region3
    $region8: #{_lambda_.3} parent=1 // loop_exit
      _
    %2294 = vsyncpa [#allocation4], 1
    %s2295 = scalar_lea.sflag [#allocation4], 1
    %2296 = vsyncpa %s2295, 1

</llo_original>
